<compile_context>
chip_gen: v5e
topology: v5e:2x2
jax: 0.10.0
libtpu: 0.0.40
codegen_flags: <defaults>
</compile_context>

<pallas_src>
import functools

import numpy as np
import jax
import jax.numpy as jnp
from jax import lax
from jax.experimental import pallas as pl
from jax.experimental.pallas import tpu as pltpu


def _bilinear_weight_1d(coord, pix, size):
    """Elementwise 1-D bilinear weight of sample coordinate `coord` at pixel `pix`.

    Matches maskrcnn_benchmark ROIAlign CUDA semantics:
      - coords outside [-1, size] contribute 0 (but still count in the average)
      - coords in [-1, 0) clamp to 0
      - coords with floor >= size-1 snap to the last pixel
    """
    valid = jnp.logical_and(coord >= -1.0, coord <= float(size))
    c = jnp.maximum(coord, 0.0)
    low = jnp.floor(c)
    at_edge = low >= float(size - 1)
    low = jnp.where(at_edge, float(size - 1), low)
    c = jnp.where(at_edge, low, c)
    high = jnp.where(at_edge, low, low + 1.0)
    lf = c - low
    hf = 1.0 - lf
    w = jnp.where(pix == low, hf, 0.0) + jnp.where(pix == high, lf, 0.0)
    return jnp.where(valid, w, 0.0)


def _flb_roi_align_kernel(batch_ref, level_ref, rois_ref,
                          f0_ref, f1_ref, f2_ref, f3_ref, out_ref,
                          *, scales, hw, ph, pw, sr):
    del batch_ref  # only consumed by the BlockSpec index_maps
    r = pl.program_id(0)
    lvl = level_ref[r]
    x1 = rois_ref[1, r]
    y1 = rois_ref[2, r]
    x2 = rois_ref[3, r]
    y2 = rois_ref[4, r]

    # Zero-init so out-of-range level values (e.g. padded ROIs) yield zeros.
    out_ref[...] = jnp.zeros(out_ref.shape, out_ref.dtype)

    feat_refs = (f0_ref, f1_ref, f2_ref, f3_ref)

    def compute_level(l):
        H, W = hw[l]
        scale = scales[l]
        roi_start_w = x1 * scale
        roi_start_h = y1 * scale
        roi_w = jnp.maximum(x2 * scale - roi_start_w, 1.0)
        roi_h = jnp.maximum(y2 * scale - roi_start_h, 1.0)
        bin_h = roi_h / float(ph)
        bin_w = roi_w / float(pw)

        # Fused (kron) bilinear + avg-pool weight matrix W2[(i,j), (y,x)].
        shape2 = (ph * pw, H * W)
        row = lax.broadcasted_iota(jnp.int32, shape2, 0).astype(jnp.float32)
        col = lax.broadcasted_iota(jnp.int32, shape2, 1).astype(jnp.float32)
        bin_i = jnp.floor(row / float(pw))         # output bin row index
        bin_j = row - bin_i * float(pw)            # output bin col index
        pix_y = jnp.floor(col / float(W))          # source pixel row
        pix_x = col - pix_y * float(W)             # source pixel col

        acc = jnp.zeros(shape2, jnp.float32)
        for sy in range(sr):
            cy = roi_start_h + (bin_i * float(sr) + (sy + 0.5)) * (bin_h / float(sr))
            wy = _bilinear_weight_1d(cy, pix_y, H)
            for sx in range(sr):
                cx = roi_start_w + (bin_j * float(sr) + (sx + 0.5)) * (bin_w / float(sr))
                wx = _bilinear_weight_1d(cx, pix_x, W)
                acc = acc + wy * wx
        w2 = acc * (1.0 / float(sr * sr))          # [ph*pw, H*W]

        feat = feat_refs[l][0]                     # [H*W, C], channels on lanes
        pooled = jnp.dot(w2, feat.astype(jnp.float32),
                         preferred_element_type=jnp.float32)   # [ph*pw, C]
        out_ref[0] = pooled.astype(out_ref.dtype)

    # Only the selected FPN level is computed (scalar scf.if per level).
    for l in range(4):
        pl.when(lvl == l)(functools.partial(compute_level, l))


def flb_roi_align(inputs, rois, rois_counts, level, output_size,
                  spatial_scale, sampling_ratio, is_nhwc=False):
    # TODO(synk): rois_counts is ignored (all ROIs treated as valid).
    del rois_counts
    if isinstance(output_size, int):
        ph = pw = int(output_size)
    else:
        ph, pw = int(output_size[0]), int(output_size[1])
    sr = int(sampling_ratio)

    if is_nhwc:
        feats = list(inputs)                                   # already NHWC
    else:
        feats = [jnp.transpose(x, (0, 2, 3, 1)) for x in inputs]  # NCHW -> NHWC

    N = int(feats[0].shape[0])
    C = int(feats[0].shape[3])
    hw = tuple((int(f.shape[1]), int(f.shape[2])) for f in feats)
    R = int(rois.shape[0])

    rois = rois.astype(jnp.float32)
    level = level.astype(jnp.int32)
    batch_idx = jnp.clip(rois[:, 0].astype(jnp.int32), 0, N - 1)
    rois_t = jnp.transpose(rois)                               # [5, R] for SMEM
    # Flatten spatial dims outside the kernel so the kernel sees [H*W, C] slabs.
    feats_flat = [f.reshape(N, h * w, C) for f, (h, w) in zip(feats, hw)]

    kernel = functools.partial(
        _flb_roi_align_kernel,
        scales=tuple(float(s) for s in spatial_scale),
        hw=hw, ph=ph, pw=pw, sr=sr)

    grid_spec = pltpu.PrefetchScalarGridSpec(
        num_scalar_prefetch=2,                                 # batch_idx, level
        grid=(R,),
        in_specs=[
            pl.BlockSpec((5, R), lambda i, b, lv: (0, 0),
                         memory_space=pltpu.MemorySpace.SMEM),
        ] + [
            pl.BlockSpec((1, h * w, C), lambda i, b, lv: (b[i], 0, 0))
            for (h, w) in hw
        ],
        out_specs=pl.BlockSpec((1, ph * pw, C), lambda i, b, lv: (i, 0, 0)),
    )

    out = pl.pallas_call(
        kernel,
        out_shape=jax.ShapeDtypeStruct((R, ph * pw, C), jnp.float32),
        grid_spec=grid_spec,
        compiler_params=pltpu.CompilerParams(
            dimension_semantics=("parallel",)),
    )(batch_idx, level, rois_t, *feats_flat)

    out = out.reshape(R, ph, pw, C)
    if is_nhwc:
        return out                                             # [R, ph, pw, C]
    return jnp.transpose(out, (0, 3, 1, 2))                    # [R, C, ph, pw]


class FLBROIAlign:
    """JAX/Pallas equivalent of the PyTorch FLBROIAlign module (forward only)."""

    def __init__(self, output_size, spatial_scale, sampling_ratio, is_nhwc=False):
        self.output_size = output_size
        self.spatial_scale = spatial_scale
        self.sampling_ratio = sampling_ratio
        self.nhwc = is_nhwc

    def __call__(self, input_0, input_1, input_2, input_3, rois, rois_counts, level):
        return flb_roi_align([input_0, input_1, input_2, input_3], rois,
                             rois_counts, level, self.output_size,
                             self.spatial_scale, self.sampling_ratio,
                             is_nhwc=self.nhwc)


# ----------------------- pure NumPy reference (independent) -----------------------

def _bilinear_np(fmap, y, x):  # fmap: [C, H, W]
    C, H, W = fmap.shape
    if y < -1.0 or y > H or x < -1.0 or x > W:
        return np.zeros((C,), fmap.dtype)
    y = max(y, 0.0)
    x = max(x, 0.0)
    y_low = int(np.floor(y))
    x_low = int(np.floor(x))
    if y_low >= H - 1:
        y_high = y_low = H - 1
        y = float(y_low)
    else:
        y_high = y_low + 1
    if x_low >= W - 1:
        x_high = x_low = W - 1
        x = float(x_low)
    else:
        x_high = x_low + 1
    ly = y - y_low
    lx = x - x_low
    hy = 1.0 - ly
    hx = 1.0 - lx
    return (hy * hx * fmap[:, y_low, x_low] + hy * lx * fmap[:, y_low, x_high]
            + ly * hx * fmap[:, y_high, x_low] + ly * lx * fmap[:, y_high, x_high])


def roi_align_reference(feats_nchw, scales, rois, levels, ph, pw, sr):
    feats = [np.asarray(f, np.float64) for f in feats_nchw]
    rois = np.asarray(rois, np.float64)
    levels = np.asarray(levels)
    R = rois.shape[0]
    C = feats[0].shape[1]
    out = np.zeros((R, C, ph, pw), np.float64)
    for r in range(R):
        l = int(levels[r])
        scale = float(scales[l])
        b = int(rois[r, 0])
        x1 = rois[r, 1] * scale
        y1 = rois[r, 2] * scale
        x2 = rois[r, 3] * scale
        y2 = rois[r, 4] * scale
        roi_w = max(x2 - x1, 1.0)
        roi_h = max(y2 - y1, 1.0)
        bh = roi_h / ph
        bw = roi_w / pw
        fmap = feats[l][b]
        for i in range(ph):
            for j in range(pw):
                acc = np.zeros((C,), np.float64)
                for iy in range(sr):
                    yy = y1 + i * bh + (iy + 0.5) * bh / sr
                    for ix in range(sr):
                        xx = x1 + j * bw + (ix + 0.5) * bw / sr
                        acc += _bilinear_np(fmap, yy, xx)
                out[r, :, i, j] = acc / (sr * sr)
    return out.astype(np.float32)


if __name__ == "__main__":
    key = jax.random.PRNGKey(0)
    k0, k1, k2, k3, kx, ky, kw, kh, kb, kl = jax.random.split(key, 10)

    N, C = 2, 4
    IMG = 64.0
    # FPN feature maps, NCHW (PyTorch convention).
    f0 = jax.random.normal(k0, (N, C, 16, 16), jnp.float32)
    f1 = jax.random.normal(k1, (N, C, 8, 8), jnp.float32)
    f2 = jax.random.normal(k2, (N, C, 4, 4), jnp.float32)
    f3 = jax.random.normal(k3, (N, C, 2, 2), jnp.float32)

    R = 8
    bidx = jax.random.randint(kb, (R,), 0, N).astype(jnp.float32)
    x1 = jax.random.uniform(kx, (R,), minval=0.0, maxval=40.0)
    y1 = jax.random.uniform(ky, (R,), minval=0.0, maxval=40.0)
    ww = jax.random.uniform(kw, (R,), minval=4.0, maxval=24.0)
    hh = jax.random.uniform(kh, (R,), minval=4.0, maxval=24.0)
    rois = jnp.stack([bidx, x1, y1,
                      jnp.minimum(x1 + ww, IMG),
                      jnp.minimum(y1 + hh, IMG)], axis=1)
    level = jax.random.randint(kl, (R,), 0, 4, dtype=jnp.int32)

    spatial_scale = (0.25, 0.125, 0.0625, 0.03125)
    module = FLBROIAlign(output_size=(4, 4), spatial_scale=spatial_scale,
                         sampling_ratio=2, is_nhwc=False)

    out = module(f0, f1, f2, f3, rois, None, level)
    out = jax.block_until_ready(out)

    ref = roi_align_reference([f0, f1, f2, f3], spatial_scale,
                              np.asarray(rois), np.asarray(level), 4, 4, 2)
    np.testing.assert_allclose(np.asarray(out), ref, rtol=2e-3, atol=2e-3)
    print("KERNEL_OK")
</pallas_src>

<mosaic_0001>
module attributes {stable_mosaic.version = 11 : i64} {
  func.func @_flb_roi_align_kernel(%arg0: i32, %arg1: memref<8xi32, #tpu.memory_space<smem>>, %arg2: memref<8xi32, #tpu.memory_space<smem>>, %arg3: memref<5x8xf32, #tpu.memory_space<smem>>, %arg4: memref<1x256x4xf32, #tpu.memory_space<vmem>>, %arg5: memref<1x64x4xf32, #tpu.memory_space<vmem>>, %arg6: memref<1x16x4xf32, #tpu.memory_space<vmem>>, %arg7: memref<1x4x4xf32, #tpu.memory_space<vmem>>, %arg8: memref<1x16x4xf32, #tpu.memory_space<vmem>>) attributes {dimension_semantics = [#tpu.dimension_semantics<parallel>], iteration_bounds = array<i64: 8>, scalar_prefetch = 2 : i64, scratch_operands = 0 : i64, tpu.core_type = #tpu.core_type<tc>, window_params = [{transform_indices = @transform_0, window_bounds = array<i64: 5, 8>}, {transform_indices = @transform_1, window_bounds = array<i64: 1, 256, 4>}, {transform_indices = @transform_2, window_bounds = array<i64: 1, 64, 4>}, {transform_indices = @transform_3, window_bounds = array<i64: 1, 16, 4>}, {transform_indices = @transform_4, window_bounds = array<i64: 1, 4, 4>}, {transform_indices = @transform_5, window_bounds = array<i64: 1, 16, 4>}]} {
    %0 = arith.index_cast %arg0 : i32 to index
    %1 = memref.load %arg2[%0] : memref<8xi32, #tpu.memory_space<smem>>
    %c1 = arith.constant 1 : index
    %2 = arith.index_cast %arg0 : i32 to index
    %3 = memref.load %arg3[%c1, %2] : memref<5x8xf32, #tpu.memory_space<smem>>
    %c2 = arith.constant 2 : index
    %4 = arith.index_cast %arg0 : i32 to index
    %5 = memref.load %arg3[%c2, %4] : memref<5x8xf32, #tpu.memory_space<smem>>
    %c3 = arith.constant 3 : index
    %6 = arith.index_cast %arg0 : i32 to index
    %7 = memref.load %arg3[%c3, %6] : memref<5x8xf32, #tpu.memory_space<smem>>
    %c4 = arith.constant 4 : index
    %8 = arith.index_cast %arg0 : i32 to index
    %9 = memref.load %arg3[%c4, %8] : memref<5x8xf32, #tpu.memory_space<smem>>
    %cst = arith.constant 0.000000e+00 : f32
    %10 = vector.broadcast %cst : f32 to vector<1x16x4xf32>
    %c0 = arith.constant 0 : index
    %c0_0 = arith.constant 0 : index
    %c0_1 = arith.constant 0 : index
    %11 = vector.load %arg8[%c0, %c0_0, %c0_1] : memref<1x16x4xf32, #tpu.memory_space<vmem>>, vector<1x16x4xf32>
    tpu.vector_store %arg8[%c0, %c0_0, %c0_1], %10 {strides = array<i32>} : memref<1x16x4xf32, #tpu.memory_space<vmem>>, vector<1x16x4xf32>,
    %c0_i32 = arith.constant 0 : i32
    %12 = arith.cmpi eq, %1, %c0_i32 : i32
    %13 = arith.extui %12 : i1 to i32
    %c0_i32_2 = arith.constant 0 : i32
    %14 = arith.cmpi ne, %13, %c0_i32_2 : i32
    scf.if %14 {
      %cst_6 = arith.constant 2.500000e-01 : f32
      %24 = arith.mulf %3, %cst_6 : f32
      %cst_7 = arith.constant 2.500000e-01 : f32
      %25 = arith.mulf %5, %cst_7 : f32
      %cst_8 = arith.constant 2.500000e-01 : f32
      %26 = arith.mulf %7, %cst_8 : f32
      %27 = arith.subf %26, %24 : f32
      %cst_9 = arith.constant 1.000000e+00 : f32
      %28 = arith.maximumf %27, %cst_9 : f32
      %cst_10 = arith.constant 2.500000e-01 : f32
      %29 = arith.mulf %9, %cst_10 : f32
      %30 = arith.subf %29, %25 : f32
      %cst_11 = arith.constant 1.000000e+00 : f32
      %31 = arith.maximumf %30, %cst_11 : f32
      %cst_12 = arith.constant 4.000000e+00 : f32
      %32 = arith.divf %31, %cst_12 : f32
      %cst_13 = arith.constant 4.000000e+00 : f32
      %33 = arith.divf %28, %cst_13 : f32
      %34 = tpu.iota {dimensions = array<i32: 0>} : vector<16x256xi32>
      %35 = arith.sitofp %34 : vector<16x256xi32> to vector<16x256xf32>
      %36 = tpu.iota {dimensions = array<i32: 1>} : vector<16x256xi32>
      %37 = arith.sitofp %36 : vector<16x256xi32> to vector<16x256xf32>
      %cst_14 = arith.constant 4.000000e+00 : f32
      %38 = vector.broadcast %cst_14 : f32 to vector<16x256xf32>
      %39 = arith.divf %35, %38 : vector<16x256xf32>
      %40 = math.floor %39 : vector<16x256xf32>
      %cst_15 = arith.constant 4.000000e+00 : f32
      %41 = vector.broadcast %cst_15 : f32 to vector<16x256xf32>
      %42 = arith.mulf %40, %41 : vector<16x256xf32>
      %43 = arith.subf %35, %42 : vector<16x256xf32>
      %cst_16 = arith.constant 1.600000e+01 : f32
      %44 = vector.broadcast %cst_16 : f32 to vector<16x256xf32>
      %45 = arith.divf %37, %44 : vector<16x256xf32>
      %46 = math.floor %45 : vector<16x256xf32>
      %cst_17 = arith.constant 1.600000e+01 : f32
      %47 = vector.broadcast %cst_17 : f32 to vector<16x256xf32>
      %48 = arith.mulf %46, %47 : vector<16x256xf32>
      %49 = arith.subf %37, %48 : vector<16x256xf32>
      %cst_18 = arith.constant 0.000000e+00 : f32
      %50 = vector.broadcast %cst_18 : f32 to vector<16x256xf32>
      %cst_19 = arith.constant 2.000000e+00 : f32
      %51 = vector.broadcast %cst_19 : f32 to vector<16x256xf32>
      %52 = arith.mulf %40, %51 : vector<16x256xf32>
      %cst_20 = arith.constant 5.000000e-01 : f32
      %53 = vector.broadcast %cst_20 : f32 to vector<16x256xf32>
      %54 = arith.addf %52, %53 : vector<16x256xf32>
      %cst_21 = arith.constant 2.000000e+00 : f32
      %55 = arith.divf %32, %cst_21 : f32
      %56 = vector.broadcast %55 : f32 to vector<16x256xf32>
      %57 = arith.mulf %54, %56 : vector<16x256xf32>
      %58 = vector.broadcast %25 : f32 to vector<16x256xf32>
      %59 = arith.addf %58, %57 : vector<16x256xf32>
      %cst_22 = arith.constant -1.000000e+00 : f32
      %60 = vector.broadcast %cst_22 : f32 to vector<16x256xf32>
      %61 = arith.cmpf oge, %59, %60 : vector<16x256xf32>
      %cst_23 = arith.constant 1.600000e+01 : f32
      %62 = vector.broadcast %cst_23 : f32 to vector<16x256xf32>
      %63 = arith.cmpf ole, %59, %62 : vector<16x256xf32>
      %64 = arith.andi %61, %63 : vector<16x256xi1>
      %cst_24 = arith.constant 0.000000e+00 : f32
      %65 = vector.broadcast %cst_24 : f32 to vector<16x256xf32>
      %66 = arith.maximumf %59, %65 : vector<16x256xf32>
      %67 = math.floor %66 : vector<16x256xf32>
      %cst_25 = arith.constant 1.500000e+01 : f32
      %68 = vector.broadcast %cst_25 : f32 to vector<16x256xf32>
      %69 = arith.cmpf oge, %67, %68 : vector<16x256xf32>
      %cst_26 = arith.constant 1.500000e+01 : f32
      %70 = vector.broadcast %cst_26 : f32 to vector<16x256xf32>
      %71 = arith.select %69, %70, %67 : vector<16x256xi1>, vector<16x256xf32>
      %72 = arith.select %69, %71, %66 : vector<16x256xi1>, vector<16x256xf32>
      %cst_27 = arith.constant 1.000000e+00 : f32
      %73 = vector.broadcast %cst_27 : f32 to vector<16x256xf32>
      %74 = arith.addf %71, %73 : vector<16x256xf32>
      %75 = arith.select %69, %71, %74 : vector<16x256xi1>, vector<16x256xf32>
      %76 = arith.subf %72, %71 : vector<16x256xf32>
      %cst_28 = arith.constant 1.000000e+00 : f32
      %77 = vector.broadcast %cst_28 : f32 to vector<16x256xf32>
      %78 = arith.subf %77, %76 : vector<16x256xf32>
      %79 = arith.cmpf oeq, %46, %71 : vector<16x256xf32>
      %cst_29 = arith.constant 0.000000e+00 : f32
      %80 = vector.broadcast %cst_29 : f32 to vector<16x256xf32>
      %81 = arith.select %79, %78, %80 : vector<16x256xi1>, vector<16x256xf32>
      %82 = arith.cmpf oeq, %46, %75 : vector<16x256xf32>
      %cst_30 = arith.constant 0.000000e+00 : f32
      %83 = vector.broadcast %cst_30 : f32 to vector<16x256xf32>
      %84 = arith.select %82, %76, %83 : vector<16x256xi1>, vector<16x256xf32>
      %85 = arith.addf %81, %84 : vector<16x256xf32>
      %cst_31 = arith.constant 0.000000e+00 : f32
      %86 = vector.broadcast %cst_31 : f32 to vector<16x256xf32>
      %87 = arith.select %64, %85, %86 : vector<16x256xi1>, vector<16x256xf32>
      %cst_32 = arith.constant 2.000000e+00 : f32
      %88 = vector.broadcast %cst_32 : f32 to vector<16x256xf32>
      %89 = arith.mulf %43, %88 : vector<16x256xf32>
      %cst_33 = arith.constant 5.000000e-01 : f32
      %90 = vector.broadcast %cst_33 : f32 to vector<16x256xf32>
      %91 = arith.addf %89, %90 : vector<16x256xf32>
      %cst_34 = arith.constant 2.000000e+00 : f32
      %92 = arith.divf %33, %cst_34 : f32
      %93 = vector.broadcast %92 : f32 to vector<16x256xf32>
      %94 = arith.mulf %91, %93 : vector<16x256xf32>
      %95 = vector.broadcast %24 : f32 to vector<16x256xf32>
      %96 = arith.addf %95, %94 : vector<16x256xf32>
      %cst_35 = arith.constant -1.000000e+00 : f32
      %97 = vector.broadcast %cst_35 : f32 to vector<16x256xf32>
      %98 = arith.cmpf oge, %96, %97 : vector<16x256xf32>
      %cst_36 = arith.constant 1.600000e+01 : f32
      %99 = vector.broadcast %cst_36 : f32 to vector<16x256xf32>
      %100 = arith.cmpf ole, %96, %99 : vector<16x256xf32>
      %101 = arith.andi %98, %100 : vector<16x256xi1>
      %cst_37 = arith.constant 0.000000e+00 : f32
      %102 = vector.broadcast %cst_37 : f32 to vector<16x256xf32>
      %103 = arith.maximumf %96, %102 : vector<16x256xf32>
      %104 = math.floor %103 : vector<16x256xf32>
      %cst_38 = arith.constant 1.500000e+01 : f32
      %105 = vector.broadcast %cst_38 : f32 to vector<16x256xf32>
      %106 = arith.cmpf oge, %104, %105 : vector<16x256xf32>
      %cst_39 = arith.constant 1.500000e+01 : f32
      %107 = vector.broadcast %cst_39 : f32 to vector<16x256xf32>
      %108 = arith.select %106, %107, %104 : vector<16x256xi1>, vector<16x256xf32>
      %109 = arith.select %106, %108, %103 : vector<16x256xi1>, vector<16x256xf32>
      %cst_40 = arith.constant 1.000000e+00 : f32
      %110 = vector.broadcast %cst_40 : f32 to vector<16x256xf32>
      %111 = arith.addf %108, %110 : vector<16x256xf32>
      %112 = arith.select %106, %108, %111 : vector<16x256xi1>, vector<16x256xf32>
      %113 = arith.subf %109, %108 : vector<16x256xf32>
      %cst_41 = arith.constant 1.000000e+00 : f32
      %114 = vector.broadcast %cst_41 : f32 to vector<16x256xf32>
      %115 = arith.subf %114, %113 : vector<16x256xf32>
      %116 = arith.cmpf oeq, %49, %108 : vector<16x256xf32>
      %cst_42 = arith.constant 0.000000e+00 : f32
      %117 = vector.broadcast %cst_42 : f32 to vector<16x256xf32>
      %118 = arith.select %116, %115, %117 : vector<16x256xi1>, vector<16x256xf32>
      %119 = arith.cmpf oeq, %49, %112 : vector<16x256xf32>
      %cst_43 = arith.constant 0.000000e+00 : f32
      %120 = vector.broadcast %cst_43 : f32 to vector<16x256xf32>
      %121 = arith.select %119, %113, %120 : vector<16x256xi1>, vector<16x256xf32>
      %122 = arith.addf %118, %121 : vector<16x256xf32>
      %cst_44 = arith.constant 0.000000e+00 : f32
      %123 = vector.broadcast %cst_44 : f32 to vector<16x256xf32>
      %124 = arith.select %101, %122, %123 : vector<16x256xi1>, vector<16x256xf32>
      %125 = arith.mulf %87, %124 : vector<16x256xf32>
      %126 = arith.addf %50, %125 : vector<16x256xf32>
      %cst_45 = arith.constant 2.000000e+00 : f32
      %127 = vector.broadcast %cst_45 : f32 to vector<16x256xf32>
      %128 = arith.mulf %43, %127 : vector<16x256xf32>
      %cst_46 = arith.constant 1.500000e+00 : f32
      %129 = vector.broadcast %cst_46 : f32 to vector<16x256xf32>
      %130 = arith.addf %128, %129 : vector<16x256xf32>
      %cst_47 = arith.constant 2.000000e+00 : f32
      %131 = arith.divf %33, %cst_47 : f32
      %132 = vector.broadcast %131 : f32 to vector<16x256xf32>
      %133 = arith.mulf %130, %132 : vector<16x256xf32>
      %134 = vector.broadcast %24 : f32 to vector<16x256xf32>
      %135 = arith.addf %134, %133 : vector<16x256xf32>
      %cst_48 = arith.constant -1.000000e+00 : f32
      %136 = vector.broadcast %cst_48 : f32 to vector<16x256xf32>
      %137 = arith.cmpf oge, %135, %136 : vector<16x256xf32>
      %cst_49 = arith.constant 1.600000e+01 : f32
      %138 = vector.broadcast %cst_49 : f32 to vector<16x256xf32>
      %139 = arith.cmpf ole, %135, %138 : vector<16x256xf32>
      %140 = arith.andi %137, %139 : vector<16x256xi1>
      %cst_50 = arith.constant 0.000000e+00 : f32
      %141 = vector.broadcast %cst_50 : f32 to vector<16x256xf32>
      %142 = arith.maximumf %135, %141 : vector<16x256xf32>
      %143 = math.floor %142 : vector<16x256xf32>
      %cst_51 = arith.constant 1.500000e+01 : f32
      %144 = vector.broadcast %cst_51 : f32 to vector<16x256xf32>
      %145 = arith.cmpf oge, %143, %144 : vector<16x256xf32>
      %cst_52 = arith.constant 1.500000e+01 : f32
      %146 = vector.broadcast %cst_52 : f32 to vector<16x256xf32>
      %147 = arith.select %145, %146, %143 : vector<16x256xi1>, vector<16x256xf32>
      %148 = arith.select %145, %147, %142 : vector<16x256xi1>, vector<16x256xf32>
      %cst_53 = arith.constant 1.000000e+00 : f32
      %149 = vector.broadcast %cst_53 : f32 to vector<16x256xf32>
      %150 = arith.addf %147, %149 : vector<16x256xf32>
      %151 = arith.select %145, %147, %150 : vector<16x256xi1>, vector<16x256xf32>
      %152 = arith.subf %148, %147 : vector<16x256xf32>
      %cst_54 = arith.constant 1.000000e+00 : f32
      %153 = vector.broadcast %cst_54 : f32 to vector<16x256xf32>
      %154 = arith.subf %153, %152 : vector<16x256xf32>
      %155 = arith.cmpf oeq, %49, %147 : vector<16x256xf32>
      %cst_55 = arith.constant 0.000000e+00 : f32
      %156 = vector.broadcast %cst_55 : f32 to vector<16x256xf32>
      %157 = arith.select %155, %154, %156 : vector<16x256xi1>, vector<16x256xf32>
      %158 = arith.cmpf oeq, %49, %151 : vector<16x256xf32>
      %cst_56 = arith.constant 0.000000e+00 : f32
      %159 = vector.broadcast %cst_56 : f32 to vector<16x256xf32>
      %160 = arith.select %158, %152, %159 : vector<16x256xi1>, vector<16x256xf32>
      %161 = arith.addf %157, %160 : vector<16x256xf32>
      %cst_57 = arith.constant 0.000000e+00 : f32
      %162 = vector.broadcast %cst_57 : f32 to vector<16x256xf32>
      %163 = arith.select %140, %161, %162 : vector<16x256xi1>, vector<16x256xf32>
      %164 = arith.mulf %87, %163 : vector<16x256xf32>
      %165 = arith.addf %126, %164 : vector<16x256xf32>
      %cst_58 = arith.constant 2.000000e+00 : f32
      %166 = vector.broadcast %cst_58 : f32 to vector<16x256xf32>
      %167 = arith.mulf %40, %166 : vector<16x256xf32>
      %cst_59 = arith.constant 1.500000e+00 : f32
      %168 = vector.broadcast %cst_59 : f32 to vector<16x256xf32>
      %169 = arith.addf %167, %168 : vector<16x256xf32>
      %cst_60 = arith.constant 2.000000e+00 : f32
      %170 = arith.divf %32, %cst_60 : f32
      %171 = vector.broadcast %170 : f32 to vector<16x256xf32>
      %172 = arith.mulf %169, %171 : vector<16x256xf32>
      %173 = vector.broadcast %25 : f32 to vector<16x256xf32>
      %174 = arith.addf %173, %172 : vector<16x256xf32>
      %cst_61 = arith.constant -1.000000e+00 : f32
      %175 = vector.broadcast %cst_61 : f32 to vector<16x256xf32>
      %176 = arith.cmpf oge, %174, %175 : vector<16x256xf32>
      %cst_62 = arith.constant 1.600000e+01 : f32
      %177 = vector.broadcast %cst_62 : f32 to vector<16x256xf32>
      %178 = arith.cmpf ole, %174, %177 : vector<16x256xf32>
      %179 = arith.andi %176, %178 : vector<16x256xi1>
      %cst_63 = arith.constant 0.000000e+00 : f32
      %180 = vector.broadcast %cst_63 : f32 to vector<16x256xf32>
      %181 = arith.maximumf %174, %180 : vector<16x256xf32>
      %182 = math.floor %181 : vector<16x256xf32>
      %cst_64 = arith.constant 1.500000e+01 : f32
      %183 = vector.broadcast %cst_64 : f32 to vector<16x256xf32>
      %184 = arith.cmpf oge, %182, %183 : vector<16x256xf32>
      %cst_65 = arith.constant 1.500000e+01 : f32
      %185 = vector.broadcast %cst_65 : f32 to vector<16x256xf32>
      %186 = arith.select %184, %185, %182 : vector<16x256xi1>, vector<16x256xf32>
      %187 = arith.select %184, %186, %181 : vector<16x256xi1>, vector<16x256xf32>
      %cst_66 = arith.constant 1.000000e+00 : f32
      %188 = vector.broadcast %cst_66 : f32 to vector<16x256xf32>
      %189 = arith.addf %186, %188 : vector<16x256xf32>
      %190 = arith.select %184, %186, %189 : vector<16x256xi1>, vector<16x256xf32>
      %191 = arith.subf %187, %186 : vector<16x256xf32>
      %cst_67 = arith.constant 1.000000e+00 : f32
      %192 = vector.broadcast %cst_67 : f32 to vector<16x256xf32>
      %193 = arith.subf %192, %191 : vector<16x256xf32>
      %194 = arith.cmpf oeq, %46, %186 : vector<16x256xf32>
      %cst_68 = arith.constant 0.000000e+00 : f32
      %195 = vector.broadcast %cst_68 : f32 to vector<16x256xf32>
      %196 = arith.select %194, %193, %195 : vector<16x256xi1>, vector<16x256xf32>
      %197 = arith.cmpf oeq, %46, %190 : vector<16x256xf32>
      %cst_69 = arith.constant 0.000000e+00 : f32
      %198 = vector.broadcast %cst_69 : f32 to vector<16x256xf32>
      %199 = arith.select %197, %191, %198 : vector<16x256xi1>, vector<16x256xf32>
      %200 = arith.addf %196, %199 : vector<16x256xf32>
      %cst_70 = arith.constant 0.000000e+00 : f32
      %201 = vector.broadcast %cst_70 : f32 to vector<16x256xf32>
      %202 = arith.select %179, %200, %201 : vector<16x256xi1>, vector<16x256xf32>
      %cst_71 = arith.constant 2.000000e+00 : f32
      %203 = vector.broadcast %cst_71 : f32 to vector<16x256xf32>
      %204 = arith.mulf %43, %203 : vector<16x256xf32>
      %cst_72 = arith.constant 5.000000e-01 : f32
      %205 = vector.broadcast %cst_72 : f32 to vector<16x256xf32>
      %206 = arith.addf %204, %205 : vector<16x256xf32>
      %cst_73 = arith.constant 2.000000e+00 : f32
      %207 = arith.divf %33, %cst_73 : f32
      %208 = vector.broadcast %207 : f32 to vector<16x256xf32>
      %209 = arith.mulf %206, %208 : vector<16x256xf32>
      %210 = vector.broadcast %24 : f32 to vector<16x256xf32>
      %211 = arith.addf %210, %209 : vector<16x256xf32>
      %cst_74 = arith.constant -1.000000e+00 : f32
      %212 = vector.broadcast %cst_74 : f32 to vector<16x256xf32>
      %213 = arith.cmpf oge, %211, %212 : vector<16x256xf32>
      %cst_75 = arith.constant 1.600000e+01 : f32
      %214 = vector.broadcast %cst_75 : f32 to vector<16x256xf32>
      %215 = arith.cmpf ole, %211, %214 : vector<16x256xf32>
      %216 = arith.andi %213, %215 : vector<16x256xi1>
      %cst_76 = arith.constant 0.000000e+00 : f32
      %217 = vector.broadcast %cst_76 : f32 to vector<16x256xf32>
      %218 = arith.maximumf %211, %217 : vector<16x256xf32>
      %219 = math.floor %218 : vector<16x256xf32>
      %cst_77 = arith.constant 1.500000e+01 : f32
      %220 = vector.broadcast %cst_77 : f32 to vector<16x256xf32>
      %221 = arith.cmpf oge, %219, %220 : vector<16x256xf32>
      %cst_78 = arith.constant 1.500000e+01 : f32
      %222 = vector.broadcast %cst_78 : f32 to vector<16x256xf32>
      %223 = arith.select %221, %222, %219 : vector<16x256xi1>, vector<16x256xf32>
      %224 = arith.select %221, %223, %218 : vector<16x256xi1>, vector<16x256xf32>
      %cst_79 = arith.constant 1.000000e+00 : f32
      %225 = vector.broadcast %cst_79 : f32 to vector<16x256xf32>
      %226 = arith.addf %223, %225 : vector<16x256xf32>
      %227 = arith.select %221, %223, %226 : vector<16x256xi1>, vector<16x256xf32>
      %228 = arith.subf %224, %223 : vector<16x256xf32>
      %cst_80 = arith.constant 1.000000e+00 : f32
      %229 = vector.broadcast %cst_80 : f32 to vector<16x256xf32>
      %230 = arith.subf %229, %228 : vector<16x256xf32>
      %231 = arith.cmpf oeq, %49, %223 : vector<16x256xf32>
      %cst_81 = arith.constant 0.000000e+00 : f32
      %232 = vector.broadcast %cst_81 : f32 to vector<16x256xf32>
      %233 = arith.select %231, %230, %232 : vector<16x256xi1>, vector<16x256xf32>
      %234 = arith.cmpf oeq, %49, %227 : vector<16x256xf32>
      %cst_82 = arith.constant 0.000000e+00 : f32
      %235 = vector.broadcast %cst_82 : f32 to vector<16x256xf32>
      %236 = arith.select %234, %228, %235 : vector<16x256xi1>, vector<16x256xf32>
      %237 = arith.addf %233, %236 : vector<16x256xf32>
      %cst_83 = arith.constant 0.000000e+00 : f32
      %238 = vector.broadcast %cst_83 : f32 to vector<16x256xf32>
      %239 = arith.select %216, %237, %238 : vector<16x256xi1>, vector<16x256xf32>
      %240 = arith.mulf %202, %239 : vector<16x256xf32>
      %241 = arith.addf %165, %240 : vector<16x256xf32>
      %cst_84 = arith.constant 2.000000e+00 : f32
      %242 = vector.broadcast %cst_84 : f32 to vector<16x256xf32>
      %243 = arith.mulf %43, %242 : vector<16x256xf32>
      %cst_85 = arith.constant 1.500000e+00 : f32
      %244 = vector.broadcast %cst_85 : f32 to vector<16x256xf32>
      %245 = arith.addf %243, %244 : vector<16x256xf32>
      %cst_86 = arith.constant 2.000000e+00 : f32
      %246 = arith.divf %33, %cst_86 : f32
      %247 = vector.broadcast %246 : f32 to vector<16x256xf32>
      %248 = arith.mulf %245, %247 : vector<16x256xf32>
      %249 = vector.broadcast %24 : f32 to vector<16x256xf32>
      %250 = arith.addf %249, %248 : vector<16x256xf32>
      %cst_87 = arith.constant -1.000000e+00 : f32
      %251 = vector.broadcast %cst_87 : f32 to vector<16x256xf32>
      %252 = arith.cmpf oge, %250, %251 : vector<16x256xf32>
      %cst_88 = arith.constant 1.600000e+01 : f32
      %253 = vector.broadcast %cst_88 : f32 to vector<16x256xf32>
      %254 = arith.cmpf ole, %250, %253 : vector<16x256xf32>
      %255 = arith.andi %252, %254 : vector<16x256xi1>
      %cst_89 = arith.constant 0.000000e+00 : f32
      %256 = vector.broadcast %cst_89 : f32 to vector<16x256xf32>
      %257 = arith.maximumf %250, %256 : vector<16x256xf32>
      %258 = math.floor %257 : vector<16x256xf32>
      %cst_90 = arith.constant 1.500000e+01 : f32
      %259 = vector.broadcast %cst_90 : f32 to vector<16x256xf32>
      %260 = arith.cmpf oge, %258, %259 : vector<16x256xf32>
      %cst_91 = arith.constant 1.500000e+01 : f32
      %261 = vector.broadcast %cst_91 : f32 to vector<16x256xf32>
      %262 = arith.select %260, %261, %258 : vector<16x256xi1>, vector<16x256xf32>
      %263 = arith.select %260, %262, %257 : vector<16x256xi1>, vector<16x256xf32>
      %cst_92 = arith.constant 1.000000e+00 : f32
      %264 = vector.broadcast %cst_92 : f32 to vector<16x256xf32>
      %265 = arith.addf %262, %264 : vector<16x256xf32>
      %266 = arith.select %260, %262, %265 : vector<16x256xi1>, vector<16x256xf32>
      %267 = arith.subf %263, %262 : vector<16x256xf32>
      %cst_93 = arith.constant 1.000000e+00 : f32
      %268 = vector.broadcast %cst_93 : f32 to vector<16x256xf32>
      %269 = arith.subf %268, %267 : vector<16x256xf32>
      %270 = arith.cmpf oeq, %49, %262 : vector<16x256xf32>
      %cst_94 = arith.constant 0.000000e+00 : f32
      %271 = vector.broadcast %cst_94 : f32 to vector<16x256xf32>
      %272 = arith.select %270, %269, %271 : vector<16x256xi1>, vector<16x256xf32>
      %273 = arith.cmpf oeq, %49, %266 : vector<16x256xf32>
      %cst_95 = arith.constant 0.000000e+00 : f32
      %274 = vector.broadcast %cst_95 : f32 to vector<16x256xf32>
      %275 = arith.select %273, %267, %274 : vector<16x256xi1>, vector<16x256xf32>
      %276 = arith.addf %272, %275 : vector<16x256xf32>
      %cst_96 = arith.constant 0.000000e+00 : f32
      %277 = vector.broadcast %cst_96 : f32 to vector<16x256xf32>
      %278 = arith.select %255, %276, %277 : vector<16x256xi1>, vector<16x256xf32>
      %279 = arith.mulf %202, %278 : vector<16x256xf32>
      %280 = arith.addf %241, %279 : vector<16x256xf32>
      %cst_97 = arith.constant 2.500000e-01 : f32
      %281 = vector.broadcast %cst_97 : f32 to vector<16x256xf32>
      %282 = arith.mulf %280, %281 : vector<16x256xf32>
      %c0_98 = arith.constant 0 : index
      %c0_99 = arith.constant 0 : index
      %c0_100 = arith.constant 0 : index
      %283 = vector.load %arg4[%c0_98, %c0_99, %c0_100] : memref<1x256x4xf32, #tpu.memory_space<vmem>>, vector<1x256x4xf32>
      %284 = vector.shape_cast %283 : vector<1x256x4xf32> to vector<256x4xf32>
      %cst_101 = arith.constant dense<0.000000e+00> : vector<16x4xf32>
      %285 = tpu.matmul %282, %284, %cst_101 {dimension_numbers = #tpu.dot_dimension_numbers<[1], [0], [0], [1], [0, 0, 1, 1], [], []>} : vector<16x256xf32>, vector<256x4xf32>, vector<16x4xf32> -> vector<16x4xf32>
      %c0_102 = arith.constant 0 : index
      %c0_103 = arith.constant 0 : index
      %c0_104 = arith.constant 0 : index
      %286 = vector.load %arg8[%c0_102, %c0_103, %c0_104] : memref<1x16x4xf32, #tpu.memory_space<vmem>>, vector<1x16x4xf32>
      %287 = vector.shape_cast %286 : vector<1x16x4xf32> to vector<16x4xf32>
      %288 = vector.shape_cast %285 : vector<16x4xf32> to vector<1x16x4xf32>
      tpu.vector_store %arg8[%c0_102, %c0_103, %c0_104], %288 {strides = array<i32>} : memref<1x16x4xf32, #tpu.memory_space<vmem>>, vector<1x16x4xf32>,
    } else {
    }
    %c1_i32 = arith.constant 1 : i32
    %15 = arith.cmpi eq, %1, %c1_i32 : i32
    %16 = arith.extui %15 : i1 to i32
    %c0_i32_3 = arith.constant 0 : i32
    %17 = arith.cmpi ne, %16, %c0_i32_3 : i32
    scf.if %17 {
      %cst_6 = arith.constant 1.250000e-01 : f32
      %24 = arith.mulf %3, %cst_6 : f32
      %cst_7 = arith.constant 1.250000e-01 : f32
      %25 = arith.mulf %5, %cst_7 : f32
      %cst_8 = arith.constant 1.250000e-01 : f32
      %26 = arith.mulf %7, %cst_8 : f32
      %27 = arith.subf %26, %24 : f32
      %cst_9 = arith.constant 1.000000e+00 : f32
      %28 = arith.maximumf %27, %cst_9 : f32
      %cst_10 = arith.constant 1.250000e-01 : f32
      %29 = arith.mulf %9, %cst_10 : f32
      %30 = arith.subf %29, %25 : f32
      %cst_11 = arith.constant 1.000000e+00 : f32
      %31 = arith.maximumf %30, %cst_11 : f32
      %cst_12 = arith.constant 4.000000e+00 : f32
      %32 = arith.divf %31, %cst_12 : f32
      %cst_13 = arith.constant 4.000000e+00 : f32
      %33 = arith.divf %28, %cst_13 : f32
      %34 = tpu.iota {dimensions = array<i32: 0>} : vector<16x64xi32>
      %35 = arith.sitofp %34 : vector<16x64xi32> to vector<16x64xf32>
      %36 = tpu.iota {dimensions = array<i32: 1>} : vector<16x64xi32>
      %37 = arith.sitofp %36 : vector<16x64xi32> to vector<16x64xf32>
      %cst_14 = arith.constant 4.000000e+00 : f32
      %38 = vector.broadcast %cst_14 : f32 to vector<16x64xf32>
      %39 = arith.divf %35, %38 : vector<16x64xf32>
      %40 = math.floor %39 : vector<16x64xf32>
      %cst_15 = arith.constant 4.000000e+00 : f32
      %41 = vector.broadcast %cst_15 : f32 to vector<16x64xf32>
      %42 = arith.mulf %40, %41 : vector<16x64xf32>
      %43 = arith.subf %35, %42 : vector<16x64xf32>
      %cst_16 = arith.constant 8.000000e+00 : f32
      %44 = vector.broadcast %cst_16 : f32 to vector<16x64xf32>
      %45 = arith.divf %37, %44 : vector<16x64xf32>
      %46 = math.floor %45 : vector<16x64xf32>
      %cst_17 = arith.constant 8.000000e+00 : f32
      %47 = vector.broadcast %cst_17 : f32 to vector<16x64xf32>
      %48 = arith.mulf %46, %47 : vector<16x64xf32>
      %49 = arith.subf %37, %48 : vector<16x64xf32>
      %cst_18 = arith.constant 0.000000e+00 : f32
      %50 = vector.broadcast %cst_18 : f32 to vector<16x64xf32>
      %cst_19 = arith.constant 2.000000e+00 : f32
      %51 = vector.broadcast %cst_19 : f32 to vector<16x64xf32>
      %52 = arith.mulf %40, %51 : vector<16x64xf32>
      %cst_20 = arith.constant 5.000000e-01 : f32
      %53 = vector.broadcast %cst_20 : f32 to vector<16x64xf32>
      %54 = arith.addf %52, %53 : vector<16x64xf32>
      %cst_21 = arith.constant 2.000000e+00 : f32
      %55 = arith.divf %32, %cst_21 : f32
      %56 = vector.broadcast %55 : f32 to vector<16x64xf32>
      %57 = arith.mulf %54, %56 : vector<16x64xf32>
      %58 = vector.broadcast %25 : f32 to vector<16x64xf32>
      %59 = arith.addf %58, %57 : vector<16x64xf32>
      %cst_22 = arith.constant -1.000000e+00 : f32
      %60 = vector.broadcast %cst_22 : f32 to vector<16x64xf32>
      %61 = arith.cmpf oge, %59, %60 : vector<16x64xf32>
      %cst_23 = arith.constant 8.000000e+00 : f32
      %62 = vector.broadcast %cst_23 : f32 to vector<16x64xf32>
      %63 = arith.cmpf ole, %59, %62 : vector<16x64xf32>
      %64 = arith.andi %61, %63 : vector<16x64xi1>
      %cst_24 = arith.constant 0.000000e+00 : f32
      %65 = vector.broadcast %cst_24 : f32 to vector<16x64xf32>
      %66 = arith.maximumf %59, %65 : vector<16x64xf32>
      %67 = math.floor %66 : vector<16x64xf32>
      %cst_25 = arith.constant 7.000000e+00 : f32
      %68 = vector.broadcast %cst_25 : f32 to vector<16x64xf32>
      %69 = arith.cmpf oge, %67, %68 : vector<16x64xf32>
      %cst_26 = arith.constant 7.000000e+00 : f32
      %70 = vector.broadcast %cst_26 : f32 to vector<16x64xf32>
      %71 = arith.select %69, %70, %67 : vector<16x64xi1>, vector<16x64xf32>
      %72 = arith.select %69, %71, %66 : vector<16x64xi1>, vector<16x64xf32>
      %cst_27 = arith.constant 1.000000e+00 : f32
      %73 = vector.broadcast %cst_27 : f32 to vector<16x64xf32>
      %74 = arith.addf %71, %73 : vector<16x64xf32>
      %75 = arith.select %69, %71, %74 : vector<16x64xi1>, vector<16x64xf32>
      %76 = arith.subf %72, %71 : vector<16x64xf32>
      %cst_28 = arith.constant 1.000000e+00 : f32
      %77 = vector.broadcast %cst_28 : f32 to vector<16x64xf32>
      %78 = arith.subf %77, %76 : vector<16x64xf32>
      %79 = arith.cmpf oeq, %46, %71 : vector<16x64xf32>
      %cst_29 = arith.constant 0.000000e+00 : f32
      %80 = vector.broadcast %cst_29 : f32 to vector<16x64xf32>
      %81 = arith.select %79, %78, %80 : vector<16x64xi1>, vector<16x64xf32>
      %82 = arith.cmpf oeq, %46, %75 : vector<16x64xf32>
      %cst_30 = arith.constant 0.000000e+00 : f32
      %83 = vector.broadcast %cst_30 : f32 to vector<16x64xf32>
      %84 = arith.select %82, %76, %83 : vector<16x64xi1>, vector<16x64xf32>
      %85 = arith.addf %81, %84 : vector<16x64xf32>
      %cst_31 = arith.constant 0.000000e+00 : f32
      %86 = vector.broadcast %cst_31 : f32 to vector<16x64xf32>
      %87 = arith.select %64, %85, %86 : vector<16x64xi1>, vector<16x64xf32>
      %cst_32 = arith.constant 2.000000e+00 : f32
      %88 = vector.broadcast %cst_32 : f32 to vector<16x64xf32>
      %89 = arith.mulf %43, %88 : vector<16x64xf32>
      %cst_33 = arith.constant 5.000000e-01 : f32
      %90 = vector.broadcast %cst_33 : f32 to vector<16x64xf32>
      %91 = arith.addf %89, %90 : vector<16x64xf32>
      %cst_34 = arith.constant 2.000000e+00 : f32
      %92 = arith.divf %33, %cst_34 : f32
      %93 = vector.broadcast %92 : f32 to vector<16x64xf32>
      %94 = arith.mulf %91, %93 : vector<16x64xf32>
      %95 = vector.broadcast %24 : f32 to vector<16x64xf32>
      %96 = arith.addf %95, %94 : vector<16x64xf32>
      %cst_35 = arith.constant -1.000000e+00 : f32
      %97 = vector.broadcast %cst_35 : f32 to vector<16x64xf32>
      %98 = arith.cmpf oge, %96, %97 : vector<16x64xf32>
      %cst_36 = arith.constant 8.000000e+00 : f32
      %99 = vector.broadcast %cst_36 : f32 to vector<16x64xf32>
      %100 = arith.cmpf ole, %96, %99 : vector<16x64xf32>
      %101 = arith.andi %98, %100 : vector<16x64xi1>
      %cst_37 = arith.constant 0.000000e+00 : f32
      %102 = vector.broadcast %cst_37 : f32 to vector<16x64xf32>
      %103 = arith.maximumf %96, %102 : vector<16x64xf32>
      %104 = math.floor %103 : vector<16x64xf32>
      %cst_38 = arith.constant 7.000000e+00 : f32
      %105 = vector.broadcast %cst_38 : f32 to vector<16x64xf32>
      %106 = arith.cmpf oge, %104, %105 : vector<16x64xf32>
      %cst_39 = arith.constant 7.000000e+00 : f32
      %107 = vector.broadcast %cst_39 : f32 to vector<16x64xf32>
      %108 = arith.select %106, %107, %104 : vector<16x64xi1>, vector<16x64xf32>
      %109 = arith.select %106, %108, %103 : vector<16x64xi1>, vector<16x64xf32>
      %cst_40 = arith.constant 1.000000e+00 : f32
      %110 = vector.broadcast %cst_40 : f32 to vector<16x64xf32>
      %111 = arith.addf %108, %110 : vector<16x64xf32>
      %112 = arith.select %106, %108, %111 : vector<16x64xi1>, vector<16x64xf32>
      %113 = arith.subf %109, %108 : vector<16x64xf32>
      %cst_41 = arith.constant 1.000000e+00 : f32
      %114 = vector.broadcast %cst_41 : f32 to vector<16x64xf32>
      %115 = arith.subf %114, %113 : vector<16x64xf32>
      %116 = arith.cmpf oeq, %49, %108 : vector<16x64xf32>
      %cst_42 = arith.constant 0.000000e+00 : f32
      %117 = vector.broadcast %cst_42 : f32 to vector<16x64xf32>
      %118 = arith.select %116, %115, %117 : vector<16x64xi1>, vector<16x64xf32>
      %119 = arith.cmpf oeq, %49, %112 : vector<16x64xf32>
      %cst_43 = arith.constant 0.000000e+00 : f32
      %120 = vector.broadcast %cst_43 : f32 to vector<16x64xf32>
      %121 = arith.select %119, %113, %120 : vector<16x64xi1>, vector<16x64xf32>
      %122 = arith.addf %118, %121 : vector<16x64xf32>
      %cst_44 = arith.constant 0.000000e+00 : f32
      %123 = vector.broadcast %cst_44 : f32 to vector<16x64xf32>
      %124 = arith.select %101, %122, %123 : vector<16x64xi1>, vector<16x64xf32>
      %125 = arith.mulf %87, %124 : vector<16x64xf32>
      %126 = arith.addf %50, %125 : vector<16x64xf32>
      %cst_45 = arith.constant 2.000000e+00 : f32
      %127 = vector.broadcast %cst_45 : f32 to vector<16x64xf32>
      %128 = arith.mulf %43, %127 : vector<16x64xf32>
      %cst_46 = arith.constant 1.500000e+00 : f32
      %129 = vector.broadcast %cst_46 : f32 to vector<16x64xf32>
      %130 = arith.addf %128, %129 : vector<16x64xf32>
      %cst_47 = arith.constant 2.000000e+00 : f32
      %131 = arith.divf %33, %cst_47 : f32
      %132 = vector.broadcast %131 : f32 to vector<16x64xf32>
      %133 = arith.mulf %130, %132 : vector<16x64xf32>
      %134 = vector.broadcast %24 : f32 to vector<16x64xf32>
      %135 = arith.addf %134, %133 : vector<16x64xf32>
      %cst_48 = arith.constant -1.000000e+00 : f32
      %136 = vector.broadcast %cst_48 : f32 to vector<16x64xf32>
      %137 = arith.cmpf oge, %135, %136 : vector<16x64xf32>
      %cst_49 = arith.constant 8.000000e+00 : f32
      %138 = vector.broadcast %cst_49 : f32 to vector<16x64xf32>
      %139 = arith.cmpf ole, %135, %138 : vector<16x64xf32>
      %140 = arith.andi %137, %139 : vector<16x64xi1>
      %cst_50 = arith.constant 0.000000e+00 : f32
      %141 = vector.broadcast %cst_50 : f32 to vector<16x64xf32>
      %142 = arith.maximumf %135, %141 : vector<16x64xf32>
      %143 = math.floor %142 : vector<16x64xf32>
      %cst_51 = arith.constant 7.000000e+00 : f32
      %144 = vector.broadcast %cst_51 : f32 to vector<16x64xf32>
      %145 = arith.cmpf oge, %143, %144 : vector<16x64xf32>
      %cst_52 = arith.constant 7.000000e+00 : f32
      %146 = vector.broadcast %cst_52 : f32 to vector<16x64xf32>
      %147 = arith.select %145, %146, %143 : vector<16x64xi1>, vector<16x64xf32>
      %148 = arith.select %145, %147, %142 : vector<16x64xi1>, vector<16x64xf32>
      %cst_53 = arith.constant 1.000000e+00 : f32
      %149 = vector.broadcast %cst_53 : f32 to vector<16x64xf32>
      %150 = arith.addf %147, %149 : vector<16x64xf32>
      %151 = arith.select %145, %147, %150 : vector<16x64xi1>, vector<16x64xf32>
      %152 = arith.subf %148, %147 : vector<16x64xf32>
      %cst_54 = arith.constant 1.000000e+00 : f32
      %153 = vector.broadcast %cst_54 : f32 to vector<16x64xf32>
      %154 = arith.subf %153, %152 : vector<16x64xf32>
      %155 = arith.cmpf oeq, %49, %147 : vector<16x64xf32>
      %cst_55 = arith.constant 0.000000e+00 : f32
      %156 = vector.broadcast %cst_55 : f32 to vector<16x64xf32>
      %157 = arith.select %155, %154, %156 : vector<16x64xi1>, vector<16x64xf32>
      %158 = arith.cmpf oeq, %49, %151 : vector<16x64xf32>
      %cst_56 = arith.constant 0.000000e+00 : f32
      %159 = vector.broadcast %cst_56 : f32 to vector<16x64xf32>
      %160 = arith.select %158, %152, %159 : vector<16x64xi1>, vector<16x64xf32>
      %161 = arith.addf %157, %160 : vector<16x64xf32>
      %cst_57 = arith.constant 0.000000e+00 : f32
      %162 = vector.broadcast %cst_57 : f32 to vector<16x64xf32>
      %163 = arith.select %140, %161, %162 : vector<16x64xi1>, vector<16x64xf32>
      %164 = arith.mulf %87, %163 : vector<16x64xf32>
      %165 = arith.addf %126, %164 : vector<16x64xf32>
      %cst_58 = arith.constant 2.000000e+00 : f32
      %166 = vector.broadcast %cst_58 : f32 to vector<16x64xf32>
      %167 = arith.mulf %40, %166 : vector<16x64xf32>
      %cst_59 = arith.constant 1.500000e+00 : f32
      %168 = vector.broadcast %cst_59 : f32 to vector<16x64xf32>
      %169 = arith.addf %167, %168 : vector<16x64xf32>
      %cst_60 = arith.constant 2.000000e+00 : f32
      %170 = arith.divf %32, %cst_60 : f32
      %171 = vector.broadcast %170 : f32 to vector<16x64xf32>
      %172 = arith.mulf %169, %171 : vector<16x64xf32>
      %173 = vector.broadcast %25 : f32 to vector<16x64xf32>
      %174 = arith.addf %173, %172 : vector<16x64xf32>
      %cst_61 = arith.constant -1.000000e+00 : f32
      %175 = vector.broadcast %cst_61 : f32 to vector<16x64xf32>
      %176 = arith.cmpf oge, %174, %175 : vector<16x64xf32>
      %cst_62 = arith.constant 8.000000e+00 : f32
      %177 = vector.broadcast %cst_62 : f32 to vector<16x64xf32>
      %178 = arith.cmpf ole, %174, %177 : vector<16x64xf32>
      %179 = arith.andi %176, %178 : vector<16x64xi1>
      %cst_63 = arith.constant 0.000000e+00 : f32
      %180 = vector.broadcast %cst_63 : f32 to vector<16x64xf32>
      %181 = arith.maximumf %174, %180 : vector<16x64xf32>
      %182 = math.floor %181 : vector<16x64xf32>
      %cst_64 = arith.constant 7.000000e+00 : f32
      %183 = vector.broadcast %cst_64 : f32 to vector<16x64xf32>
      %184 = arith.cmpf oge, %182, %183 : vector<16x64xf32>
      %cst_65 = arith.constant 7.000000e+00 : f32
      %185 = vector.broadcast %cst_65 : f32 to vector<16x64xf32>
      %186 = arith.select %184, %185, %182 : vector<16x64xi1>, vector<16x64xf32>
      %187 = arith.select %184, %186, %181 : vector<16x64xi1>, vector<16x64xf32>
      %cst_66 = arith.constant 1.000000e+00 : f32
      %188 = vector.broadcast %cst_66 : f32 to vector<16x64xf32>
      %189 = arith.addf %186, %188 : vector<16x64xf32>
      %190 = arith.select %184, %186, %189 : vector<16x64xi1>, vector<16x64xf32>
      %191 = arith.subf %187, %186 : vector<16x64xf32>
      %cst_67 = arith.constant 1.000000e+00 : f32
      %192 = vector.broadcast %cst_67 : f32 to vector<16x64xf32>
      %193 = arith.subf %192, %191 : vector<16x64xf32>
      %194 = arith.cmpf oeq, %46, %186 : vector<16x64xf32>
      %cst_68 = arith.constant 0.000000e+00 : f32
      %195 = vector.broadcast %cst_68 : f32 to vector<16x64xf32>
      %196 = arith.select %194, %193, %195 : vector<16x64xi1>, vector<16x64xf32>
      %197 = arith.cmpf oeq, %46, %190 : vector<16x64xf32>
      %cst_69 = arith.constant 0.000000e+00 : f32
      %198 = vector.broadcast %cst_69 : f32 to vector<16x64xf32>
      %199 = arith.select %197, %191, %198 : vector<16x64xi1>, vector<16x64xf32>
      %200 = arith.addf %196, %199 : vector<16x64xf32>
      %cst_70 = arith.constant 0.000000e+00 : f32
      %201 = vector.broadcast %cst_70 : f32 to vector<16x64xf32>
      %202 = arith.select %179, %200, %201 : vector<16x64xi1>, vector<16x64xf32>
      %cst_71 = arith.constant 2.000000e+00 : f32
      %203 = vector.broadcast %cst_71 : f32 to vector<16x64xf32>
      %204 = arith.mulf %43, %203 : vector<16x64xf32>
      %cst_72 = arith.constant 5.000000e-01 : f32
      %205 = vector.broadcast %cst_72 : f32 to vector<16x64xf32>
      %206 = arith.addf %204, %205 : vector<16x64xf32>
      %cst_73 = arith.constant 2.000000e+00 : f32
      %207 = arith.divf %33, %cst_73 : f32
      %208 = vector.broadcast %207 : f32 to vector<16x64xf32>
      %209 = arith.mulf %206, %208 : vector<16x64xf32>
      %210 = vector.broadcast %24 : f32 to vector<16x64xf32>
      %211 = arith.addf %210, %209 : vector<16x64xf32>
      %cst_74 = arith.constant -1.000000e+00 : f32
      %212 = vector.broadcast %cst_74 : f32 to vector<16x64xf32>
      %213 = arith.cmpf oge, %211, %212 : vector<16x64xf32>
      %cst_75 = arith.constant 8.000000e+00 : f32
      %214 = vector.broadcast %cst_75 : f32 to vector<16x64xf32>
      %215 = arith.cmpf ole, %211, %214 : vector<16x64xf32>
      %216 = arith.andi %213, %215 : vector<16x64xi1>
      %cst_76 = arith.constant 0.000000e+00 : f32
      %217 = vector.broadcast %cst_76 : f32 to vector<16x64xf32>
      %218 = arith.maximumf %211, %217 : vector<16x64xf32>
      %219 = math.floor %218 : vector<16x64xf32>
      %cst_77 = arith.constant 7.000000e+00 : f32
      %220 = vector.broadcast %cst_77 : f32 to vector<16x64xf32>
      %221 = arith.cmpf oge, %219, %220 : vector<16x64xf32>
      %cst_78 = arith.constant 7.000000e+00 : f32
      %222 = vector.broadcast %cst_78 : f32 to vector<16x64xf32>
      %223 = arith.select %221, %222, %219 : vector<16x64xi1>, vector<16x64xf32>
      %224 = arith.select %221, %223, %218 : vector<16x64xi1>, vector<16x64xf32>
      %cst_79 = arith.constant 1.000000e+00 : f32
      %225 = vector.broadcast %cst_79 : f32 to vector<16x64xf32>
      %226 = arith.addf %223, %225 : vector<16x64xf32>
      %227 = arith.select %221, %223, %226 : vector<16x64xi1>, vector<16x64xf32>
      %228 = arith.subf %224, %223 : vector<16x64xf32>
      %cst_80 = arith.constant 1.000000e+00 : f32
      %229 = vector.broadcast %cst_80 : f32 to vector<16x64xf32>
      %230 = arith.subf %229, %228 : vector<16x64xf32>
      %231 = arith.cmpf oeq, %49, %223 : vector<16x64xf32>
      %cst_81 = arith.constant 0.000000e+00 : f32
      %232 = vector.broadcast %cst_81 : f32 to vector<16x64xf32>
      %233 = arith.select %231, %230, %232 : vector<16x64xi1>, vector<16x64xf32>
      %234 = arith.cmpf oeq, %49, %227 : vector<16x64xf32>
      %cst_82 = arith.constant 0.000000e+00 : f32
      %235 = vector.broadcast %cst_82 : f32 to vector<16x64xf32>
      %236 = arith.select %234, %228, %235 : vector<16x64xi1>, vector<16x64xf32>
      %237 = arith.addf %233, %236 : vector<16x64xf32>
      %cst_83 = arith.constant 0.000000e+00 : f32
      %238 = vector.broadcast %cst_83 : f32 to vector<16x64xf32>
      %239 = arith.select %216, %237, %238 : vector<16x64xi1>, vector<16x64xf32>
      %240 = arith.mulf %202, %239 : vector<16x64xf32>
      %241 = arith.addf %165, %240 : vector<16x64xf32>
      %cst_84 = arith.constant 2.000000e+00 : f32
      %242 = vector.broadcast %cst_84 : f32 to vector<16x64xf32>
      %243 = arith.mulf %43, %242 : vector<16x64xf32>
      %cst_85 = arith.constant 1.500000e+00 : f32
      %244 = vector.broadcast %cst_85 : f32 to vector<16x64xf32>
      %245 = arith.addf %243, %244 : vector<16x64xf32>
      %cst_86 = arith.constant 2.000000e+00 : f32
      %246 = arith.divf %33, %cst_86 : f32
      %247 = vector.broadcast %246 : f32 to vector<16x64xf32>
      %248 = arith.mulf %245, %247 : vector<16x64xf32>
      %249 = vector.broadcast %24 : f32 to vector<16x64xf32>
      %250 = arith.addf %249, %248 : vector<16x64xf32>
      %cst_87 = arith.constant -1.000000e+00 : f32
      %251 = vector.broadcast %cst_87 : f32 to vector<16x64xf32>
      %252 = arith.cmpf oge, %250, %251 : vector<16x64xf32>
      %cst_88 = arith.constant 8.000000e+00 : f32
      %253 = vector.broadcast %cst_88 : f32 to vector<16x64xf32>
      %254 = arith.cmpf ole, %250, %253 : vector<16x64xf32>
      %255 = arith.andi %252, %254 : vector<16x64xi1>
      %cst_89 = arith.constant 0.000000e+00 : f32
      %256 = vector.broadcast %cst_89 : f32 to vector<16x64xf32>
      %257 = arith.maximumf %250, %256 : vector<16x64xf32>
      %258 = math.floor %257 : vector<16x64xf32>
      %cst_90 = arith.constant 7.000000e+00 : f32
      %259 = vector.broadcast %cst_90 : f32 to vector<16x64xf32>
      %260 = arith.cmpf oge, %258, %259 : vector<16x64xf32>
      %cst_91 = arith.constant 7.000000e+00 : f32
      %261 = vector.broadcast %cst_91 : f32 to vector<16x64xf32>
      %262 = arith.select %260, %261, %258 : vector<16x64xi1>, vector<16x64xf32>
      %263 = arith.select %260, %262, %257 : vector<16x64xi1>, vector<16x64xf32>
      %cst_92 = arith.constant 1.000000e+00 : f32
      %264 = vector.broadcast %cst_92 : f32 to vector<16x64xf32>
      %265 = arith.addf %262, %264 : vector<16x64xf32>
      %266 = arith.select %260, %262, %265 : vector<16x64xi1>, vector<16x64xf32>
      %267 = arith.subf %263, %262 : vector<16x64xf32>
      %cst_93 = arith.constant 1.000000e+00 : f32
      %268 = vector.broadcast %cst_93 : f32 to vector<16x64xf32>
      %269 = arith.subf %268, %267 : vector<16x64xf32>
      %270 = arith.cmpf oeq, %49, %262 : vector<16x64xf32>
      %cst_94 = arith.constant 0.000000e+00 : f32
      %271 = vector.broadcast %cst_94 : f32 to vector<16x64xf32>
      %272 = arith.select %270, %269, %271 : vector<16x64xi1>, vector<16x64xf32>
      %273 = arith.cmpf oeq, %49, %266 : vector<16x64xf32>
      %cst_95 = arith.constant 0.000000e+00 : f32
      %274 = vector.broadcast %cst_95 : f32 to vector<16x64xf32>
      %275 = arith.select %273, %267, %274 : vector<16x64xi1>, vector<16x64xf32>
      %276 = arith.addf %272, %275 : vector<16x64xf32>
      %cst_96 = arith.constant 0.000000e+00 : f32
      %277 = vector.broadcast %cst_96 : f32 to vector<16x64xf32>
      %278 = arith.select %255, %276, %277 : vector<16x64xi1>, vector<16x64xf32>
      %279 = arith.mulf %202, %278 : vector<16x64xf32>
      %280 = arith.addf %241, %279 : vector<16x64xf32>
      %cst_97 = arith.constant 2.500000e-01 : f32
      %281 = vector.broadcast %cst_97 : f32 to vector<16x64xf32>
      %282 = arith.mulf %280, %281 : vector<16x64xf32>
      %c0_98 = arith.constant 0 : index
      %c0_99 = arith.constant 0 : index
      %c0_100 = arith.constant 0 : index
      %283 = vector.load %arg5[%c0_98, %c0_99, %c0_100] : memref<1x64x4xf32, #tpu.memory_space<vmem>>, vector<1x64x4xf32>
      %284 = vector.shape_cast %283 : vector<1x64x4xf32> to vector<64x4xf32>
      %cst_101 = arith.constant dense<0.000000e+00> : vector<16x4xf32>
      %285 = tpu.matmul %282, %284, %cst_101 {dimension_numbers = #tpu.dot_dimension_numbers<[1], [0], [0], [1], [0, 0, 1, 1], [], []>} : vector<16x64xf32>, vector<64x4xf32>, vector<16x4xf32> -> vector<16x4xf32>
      %c0_102 = arith.constant 0 : index
      %c0_103 = arith.constant 0 : index
      %c0_104 = arith.constant 0 : index
      %286 = vector.load %arg8[%c0_102, %c0_103, %c0_104] : memref<1x16x4xf32, #tpu.memory_space<vmem>>, vector<1x16x4xf32>
      %287 = vector.shape_cast %286 : vector<1x16x4xf32> to vector<16x4xf32>
      %288 = vector.shape_cast %285 : vector<16x4xf32> to vector<1x16x4xf32>
      tpu.vector_store %arg8[%c0_102, %c0_103, %c0_104], %288 {strides = array<i32>} : memref<1x16x4xf32, #tpu.memory_space<vmem>>, vector<1x16x4xf32>,
    } else {
    }
    %c2_i32 = arith.constant 2 : i32
    %18 = arith.cmpi eq, %1, %c2_i32 : i32
    %19 = arith.extui %18 : i1 to i32
    %c0_i32_4 = arith.constant 0 : i32
    %20 = arith.cmpi ne, %19, %c0_i32_4 : i32
    scf.if %20 {
      %cst_6 = arith.constant 6.250000e-02 : f32
      %24 = arith.mulf %3, %cst_6 : f32
      %cst_7 = arith.constant 6.250000e-02 : f32
      %25 = arith.mulf %5, %cst_7 : f32
      %cst_8 = arith.constant 6.250000e-02 : f32
      %26 = arith.mulf %7, %cst_8 : f32
      %27 = arith.subf %26, %24 : f32
      %cst_9 = arith.constant 1.000000e+00 : f32
      %28 = arith.maximumf %27, %cst_9 : f32
      %cst_10 = arith.constant 6.250000e-02 : f32
      %29 = arith.mulf %9, %cst_10 : f32
      %30 = arith.subf %29, %25 : f32
      %cst_11 = arith.constant 1.000000e+00 : f32
      %31 = arith.maximumf %30, %cst_11 : f32
      %cst_12 = arith.constant 4.000000e+00 : f32
      %32 = arith.divf %31, %cst_12 : f32
      %cst_13 = arith.constant 4.000000e+00 : f32
      %33 = arith.divf %28, %cst_13 : f32
      %34 = tpu.iota {dimensions = array<i32: 0>} : vector<16x16xi32>
      %35 = arith.sitofp %34 : vector<16x16xi32> to vector<16x16xf32>
      %36 = tpu.iota {dimensions = array<i32: 1>} : vector<16x16xi32>
      %37 = arith.sitofp %36 : vector<16x16xi32> to vector<16x16xf32>
      %cst_14 = arith.constant 4.000000e+00 : f32
      %38 = vector.broadcast %cst_14 : f32 to vector<16x16xf32>
      %39 = arith.divf %35, %38 : vector<16x16xf32>
      %40 = math.floor %39 : vector<16x16xf32>
      %cst_15 = arith.constant 4.000000e+00 : f32
      %41 = vector.broadcast %cst_15 : f32 to vector<16x16xf32>
      %42 = arith.mulf %40, %41 : vector<16x16xf32>
      %43 = arith.subf %35, %42 : vector<16x16xf32>
      %cst_16 = arith.constant 4.000000e+00 : f32
      %44 = vector.broadcast %cst_16 : f32 to vector<16x16xf32>
      %45 = arith.divf %37, %44 : vector<16x16xf32>
      %46 = math.floor %45 : vector<16x16xf32>
      %cst_17 = arith.constant 4.000000e+00 : f32
      %47 = vector.broadcast %cst_17 : f32 to vector<16x16xf32>
      %48 = arith.mulf %46, %47 : vector<16x16xf32>
      %49 = arith.subf %37, %48 : vector<16x16xf32>
      %cst_18 = arith.constant 0.000000e+00 : f32
      %50 = vector.broadcast %cst_18 : f32 to vector<16x16xf32>
      %cst_19 = arith.constant 2.000000e+00 : f32
      %51 = vector.broadcast %cst_19 : f32 to vector<16x16xf32>
      %52 = arith.mulf %40, %51 : vector<16x16xf32>
      %cst_20 = arith.constant 5.000000e-01 : f32
      %53 = vector.broadcast %cst_20 : f32 to vector<16x16xf32>
      %54 = arith.addf %52, %53 : vector<16x16xf32>
      %cst_21 = arith.constant 2.000000e+00 : f32
      %55 = arith.divf %32, %cst_21 : f32
      %56 = vector.broadcast %55 : f32 to vector<16x16xf32>
      %57 = arith.mulf %54, %56 : vector<16x16xf32>
      %58 = vector.broadcast %25 : f32 to vector<16x16xf32>
      %59 = arith.addf %58, %57 : vector<16x16xf32>
      %cst_22 = arith.constant -1.000000e+00 : f32
      %60 = vector.broadcast %cst_22 : f32 to vector<16x16xf32>
      %61 = arith.cmpf oge, %59, %60 : vector<16x16xf32>
      %cst_23 = arith.constant 4.000000e+00 : f32
      %62 = vector.broadcast %cst_23 : f32 to vector<16x16xf32>
      %63 = arith.cmpf ole, %59, %62 : vector<16x16xf32>
      %64 = arith.andi %61, %63 : vector<16x16xi1>
      %cst_24 = arith.constant 0.000000e+00 : f32
      %65 = vector.broadcast %cst_24 : f32 to vector<16x16xf32>
      %66 = arith.maximumf %59, %65 : vector<16x16xf32>
      %67 = math.floor %66 : vector<16x16xf32>
      %cst_25 = arith.constant 3.000000e+00 : f32
      %68 = vector.broadcast %cst_25 : f32 to vector<16x16xf32>
      %69 = arith.cmpf oge, %67, %68 : vector<16x16xf32>
      %cst_26 = arith.constant 3.000000e+00 : f32
      %70 = vector.broadcast %cst_26 : f32 to vector<16x16xf32>
      %71 = arith.select %69, %70, %67 : vector<16x16xi1>, vector<16x16xf32>
      %72 = arith.select %69, %71, %66 : vector<16x16xi1>, vector<16x16xf32>
      %cst_27 = arith.constant 1.000000e+00 : f32
      %73 = vector.broadcast %cst_27 : f32 to vector<16x16xf32>
      %74 = arith.addf %71, %73 : vector<16x16xf32>
      %75 = arith.select %69, %71, %74 : vector<16x16xi1>, vector<16x16xf32>
      %76 = arith.subf %72, %71 : vector<16x16xf32>
      %cst_28 = arith.constant 1.000000e+00 : f32
      %77 = vector.broadcast %cst_28 : f32 to vector<16x16xf32>
      %78 = arith.subf %77, %76 : vector<16x16xf32>
      %79 = arith.cmpf oeq, %46, %71 : vector<16x16xf32>
      %cst_29 = arith.constant 0.000000e+00 : f32
      %80 = vector.broadcast %cst_29 : f32 to vector<16x16xf32>
      %81 = arith.select %79, %78, %80 : vector<16x16xi1>, vector<16x16xf32>
      %82 = arith.cmpf oeq, %46, %75 : vector<16x16xf32>
      %cst_30 = arith.constant 0.000000e+00 : f32
      %83 = vector.broadcast %cst_30 : f32 to vector<16x16xf32>
      %84 = arith.select %82, %76, %83 : vector<16x16xi1>, vector<16x16xf32>
      %85 = arith.addf %81, %84 : vector<16x16xf32>
      %cst_31 = arith.constant 0.000000e+00 : f32
      %86 = vector.broadcast %cst_31 : f32 to vector<16x16xf32>
      %87 = arith.select %64, %85, %86 : vector<16x16xi1>, vector<16x16xf32>
      %cst_32 = arith.constant 2.000000e+00 : f32
      %88 = vector.broadcast %cst_32 : f32 to vector<16x16xf32>
      %89 = arith.mulf %43, %88 : vector<16x16xf32>
      %cst_33 = arith.constant 5.000000e-01 : f32
      %90 = vector.broadcast %cst_33 : f32 to vector<16x16xf32>
      %91 = arith.addf %89, %90 : vector<16x16xf32>
      %cst_34 = arith.constant 2.000000e+00 : f32
      %92 = arith.divf %33, %cst_34 : f32
      %93 = vector.broadcast %92 : f32 to vector<16x16xf32>
      %94 = arith.mulf %91, %93 : vector<16x16xf32>
      %95 = vector.broadcast %24 : f32 to vector<16x16xf32>
      %96 = arith.addf %95, %94 : vector<16x16xf32>
      %cst_35 = arith.constant -1.000000e+00 : f32
      %97 = vector.broadcast %cst_35 : f32 to vector<16x16xf32>
      %98 = arith.cmpf oge, %96, %97 : vector<16x16xf32>
      %cst_36 = arith.constant 4.000000e+00 : f32
      %99 = vector.broadcast %cst_36 : f32 to vector<16x16xf32>
      %100 = arith.cmpf ole, %96, %99 : vector<16x16xf32>
      %101 = arith.andi %98, %100 : vector<16x16xi1>
      %cst_37 = arith.constant 0.000000e+00 : f32
      %102 = vector.broadcast %cst_37 : f32 to vector<16x16xf32>
      %103 = arith.maximumf %96, %102 : vector<16x16xf32>
      %104 = math.floor %103 : vector<16x16xf32>
      %cst_38 = arith.constant 3.000000e+00 : f32
      %105 = vector.broadcast %cst_38 : f32 to vector<16x16xf32>
      %106 = arith.cmpf oge, %104, %105 : vector<16x16xf32>
      %cst_39 = arith.constant 3.000000e+00 : f32
      %107 = vector.broadcast %cst_39 : f32 to vector<16x16xf32>
      %108 = arith.select %106, %107, %104 : vector<16x16xi1>, vector<16x16xf32>
      %109 = arith.select %106, %108, %103 : vector<16x16xi1>, vector<16x16xf32>
      %cst_40 = arith.constant 1.000000e+00 : f32
      %110 = vector.broadcast %cst_40 : f32 to vector<16x16xf32>
      %111 = arith.addf %108, %110 : vector<16x16xf32>
      %112 = arith.select %106, %108, %111 : vector<16x16xi1>, vector<16x16xf32>
      %113 = arith.subf %109, %108 : vector<16x16xf32>
      %cst_41 = arith.constant 1.000000e+00 : f32
      %114 = vector.broadcast %cst_41 : f32 to vector<16x16xf32>
      %115 = arith.subf %114, %113 : vector<16x16xf32>
      %116 = arith.cmpf oeq, %49, %108 : vector<16x16xf32>
      %cst_42 = arith.constant 0.000000e+00 : f32
      %117 = vector.broadcast %cst_42 : f32 to vector<16x16xf32>
      %118 = arith.select %116, %115, %117 : vector<16x16xi1>, vector<16x16xf32>
      %119 = arith.cmpf oeq, %49, %112 : vector<16x16xf32>
      %cst_43 = arith.constant 0.000000e+00 : f32
      %120 = vector.broadcast %cst_43 : f32 to vector<16x16xf32>
      %121 = arith.select %119, %113, %120 : vector<16x16xi1>, vector<16x16xf32>
      %122 = arith.addf %118, %121 : vector<16x16xf32>
      %cst_44 = arith.constant 0.000000e+00 : f32
      %123 = vector.broadcast %cst_44 : f32 to vector<16x16xf32>
      %124 = arith.select %101, %122, %123 : vector<16x16xi1>, vector<16x16xf32>
      %125 = arith.mulf %87, %124 : vector<16x16xf32>
      %126 = arith.addf %50, %125 : vector<16x16xf32>
      %cst_45 = arith.constant 2.000000e+00 : f32
      %127 = vector.broadcast %cst_45 : f32 to vector<16x16xf32>
      %128 = arith.mulf %43, %127 : vector<16x16xf32>
      %cst_46 = arith.constant 1.500000e+00 : f32
      %129 = vector.broadcast %cst_46 : f32 to vector<16x16xf32>
      %130 = arith.addf %128, %129 : vector<16x16xf32>
      %cst_47 = arith.constant 2.000000e+00 : f32
      %131 = arith.divf %33, %cst_47 : f32
      %132 = vector.broadcast %131 : f32 to vector<16x16xf32>
      %133 = arith.mulf %130, %132 : vector<16x16xf32>
      %134 = vector.broadcast %24 : f32 to vector<16x16xf32>
      %135 = arith.addf %134, %133 : vector<16x16xf32>
      %cst_48 = arith.constant -1.000000e+00 : f32
      %136 = vector.broadcast %cst_48 : f32 to vector<16x16xf32>
      %137 = arith.cmpf oge, %135, %136 : vector<16x16xf32>
      %cst_49 = arith.constant 4.000000e+00 : f32
      %138 = vector.broadcast %cst_49 : f32 to vector<16x16xf32>
      %139 = arith.cmpf ole, %135, %138 : vector<16x16xf32>
      %140 = arith.andi %137, %139 : vector<16x16xi1>
      %cst_50 = arith.constant 0.000000e+00 : f32
      %141 = vector.broadcast %cst_50 : f32 to vector<16x16xf32>
      %142 = arith.maximumf %135, %141 : vector<16x16xf32>
      %143 = math.floor %142 : vector<16x16xf32>
      %cst_51 = arith.constant 3.000000e+00 : f32
      %144 = vector.broadcast %cst_51 : f32 to vector<16x16xf32>
      %145 = arith.cmpf oge, %143, %144 : vector<16x16xf32>
      %cst_52 = arith.constant 3.000000e+00 : f32
      %146 = vector.broadcast %cst_52 : f32 to vector<16x16xf32>
      %147 = arith.select %145, %146, %143 : vector<16x16xi1>, vector<16x16xf32>
      %148 = arith.select %145, %147, %142 : vector<16x16xi1>, vector<16x16xf32>
      %cst_53 = arith.constant 1.000000e+00 : f32
      %149 = vector.broadcast %cst_53 : f32 to vector<16x16xf32>
      %150 = arith.addf %147, %149 : vector<16x16xf32>
      %151 = arith.select %145, %147, %150 : vector<16x16xi1>, vector<16x16xf32>
      %152 = arith.subf %148, %147 : vector<16x16xf32>
      %cst_54 = arith.constant 1.000000e+00 : f32
      %153 = vector.broadcast %cst_54 : f32 to vector<16x16xf32>
      %154 = arith.subf %153, %152 : vector<16x16xf32>
      %155 = arith.cmpf oeq, %49, %147 : vector<16x16xf32>
      %cst_55 = arith.constant 0.000000e+00 : f32
      %156 = vector.broadcast %cst_55 : f32 to vector<16x16xf32>
      %157 = arith.select %155, %154, %156 : vector<16x16xi1>, vector<16x16xf32>
      %158 = arith.cmpf oeq, %49, %151 : vector<16x16xf32>
      %cst_56 = arith.constant 0.000000e+00 : f32
      %159 = vector.broadcast %cst_56 : f32 to vector<16x16xf32>
      %160 = arith.select %158, %152, %159 : vector<16x16xi1>, vector<16x16xf32>
      %161 = arith.addf %157, %160 : vector<16x16xf32>
      %cst_57 = arith.constant 0.000000e+00 : f32
      %162 = vector.broadcast %cst_57 : f32 to vector<16x16xf32>
      %163 = arith.select %140, %161, %162 : vector<16x16xi1>, vector<16x16xf32>
      %164 = arith.mulf %87, %163 : vector<16x16xf32>
      %165 = arith.addf %126, %164 : vector<16x16xf32>
      %cst_58 = arith.constant 2.000000e+00 : f32
      %166 = vector.broadcast %cst_58 : f32 to vector<16x16xf32>
      %167 = arith.mulf %40, %166 : vector<16x16xf32>
      %cst_59 = arith.constant 1.500000e+00 : f32
      %168 = vector.broadcast %cst_59 : f32 to vector<16x16xf32>
      %169 = arith.addf %167, %168 : vector<16x16xf32>
      %cst_60 = arith.constant 2.000000e+00 : f32
      %170 = arith.divf %32, %cst_60 : f32
      %171 = vector.broadcast %170 : f32 to vector<16x16xf32>
      %172 = arith.mulf %169, %171 : vector<16x16xf32>
      %173 = vector.broadcast %25 : f32 to vector<16x16xf32>
      %174 = arith.addf %173, %172 : vector<16x16xf32>
      %cst_61 = arith.constant -1.000000e+00 : f32
      %175 = vector.broadcast %cst_61 : f32 to vector<16x16xf32>
      %176 = arith.cmpf oge, %174, %175 : vector<16x16xf32>
      %cst_62 = arith.constant 4.000000e+00 : f32
      %177 = vector.broadcast %cst_62 : f32 to vector<16x16xf32>
      %178 = arith.cmpf ole, %174, %177 : vector<16x16xf32>
      %179 = arith.andi %176, %178 : vector<16x16xi1>
      %cst_63 = arith.constant 0.000000e+00 : f32
      %180 = vector.broadcast %cst_63 : f32 to vector<16x16xf32>
      %181 = arith.maximumf %174, %180 : vector<16x16xf32>
      %182 = math.floor %181 : vector<16x16xf32>
      %cst_64 = arith.constant 3.000000e+00 : f32
      %183 = vector.broadcast %cst_64 : f32 to vector<16x16xf32>
      %184 = arith.cmpf oge, %182, %183 : vector<16x16xf32>
      %cst_65 = arith.constant 3.000000e+00 : f32
      %185 = vector.broadcast %cst_65 : f32 to vector<16x16xf32>
      %186 = arith.select %184, %185, %182 : vector<16x16xi1>, vector<16x16xf32>
      %187 = arith.select %184, %186, %181 : vector<16x16xi1>, vector<16x16xf32>
      %cst_66 = arith.constant 1.000000e+00 : f32
      %188 = vector.broadcast %cst_66 : f32 to vector<16x16xf32>
      %189 = arith.addf %186, %188 : vector<16x16xf32>
      %190 = arith.select %184, %186, %189 : vector<16x16xi1>, vector<16x16xf32>
      %191 = arith.subf %187, %186 : vector<16x16xf32>
      %cst_67 = arith.constant 1.000000e+00 : f32
      %192 = vector.broadcast %cst_67 : f32 to vector<16x16xf32>
      %193 = arith.subf %192, %191 : vector<16x16xf32>
      %194 = arith.cmpf oeq, %46, %186 : vector<16x16xf32>
      %cst_68 = arith.constant 0.000000e+00 : f32
      %195 = vector.broadcast %cst_68 : f32 to vector<16x16xf32>
      %196 = arith.select %194, %193, %195 : vector<16x16xi1>, vector<16x16xf32>
      %197 = arith.cmpf oeq, %46, %190 : vector<16x16xf32>
      %cst_69 = arith.constant 0.000000e+00 : f32
      %198 = vector.broadcast %cst_69 : f32 to vector<16x16xf32>
      %199 = arith.select %197, %191, %198 : vector<16x16xi1>, vector<16x16xf32>
      %200 = arith.addf %196, %199 : vector<16x16xf32>
      %cst_70 = arith.constant 0.000000e+00 : f32
      %201 = vector.broadcast %cst_70 : f32 to vector<16x16xf32>
      %202 = arith.select %179, %200, %201 : vector<16x16xi1>, vector<16x16xf32>
      %cst_71 = arith.constant 2.000000e+00 : f32
      %203 = vector.broadcast %cst_71 : f32 to vector<16x16xf32>
      %204 = arith.mulf %43, %203 : vector<16x16xf32>
      %cst_72 = arith.constant 5.000000e-01 : f32
      %205 = vector.broadcast %cst_72 : f32 to vector<16x16xf32>
      %206 = arith.addf %204, %205 : vector<16x16xf32>
      %cst_73 = arith.constant 2.000000e+00 : f32
      %207 = arith.divf %33, %cst_73 : f32
      %208 = vector.broadcast %207 : f32 to vector<16x16xf32>
      %209 = arith.mulf %206, %208 : vector<16x16xf32>
      %210 = vector.broadcast %24 : f32 to vector<16x16xf32>
      %211 = arith.addf %210, %209 : vector<16x16xf32>
      %cst_74 = arith.constant -1.000000e+00 : f32
      %212 = vector.broadcast %cst_74 : f32 to vector<16x16xf32>
      %213 = arith.cmpf oge, %211, %212 : vector<16x16xf32>
      %cst_75 = arith.constant 4.000000e+00 : f32
      %214 = vector.broadcast %cst_75 : f32 to vector<16x16xf32>
      %215 = arith.cmpf ole, %211, %214 : vector<16x16xf32>
      %216 = arith.andi %213, %215 : vector<16x16xi1>
      %cst_76 = arith.constant 0.000000e+00 : f32
      %217 = vector.broadcast %cst_76 : f32 to vector<16x16xf32>
      %218 = arith.maximumf %211, %217 : vector<16x16xf32>
      %219 = math.floor %218 : vector<16x16xf32>
      %cst_77 = arith.constant 3.000000e+00 : f32
      %220 = vector.broadcast %cst_77 : f32 to vector<16x16xf32>
      %221 = arith.cmpf oge, %219, %220 : vector<16x16xf32>
      %cst_78 = arith.constant 3.000000e+00 : f32
      %222 = vector.broadcast %cst_78 : f32 to vector<16x16xf32>
      %223 = arith.select %221, %222, %219 : vector<16x16xi1>, vector<16x16xf32>
      %224 = arith.select %221, %223, %218 : vector<16x16xi1>, vector<16x16xf32>
      %cst_79 = arith.constant 1.000000e+00 : f32
      %225 = vector.broadcast %cst_79 : f32 to vector<16x16xf32>
      %226 = arith.addf %223, %225 : vector<16x16xf32>
      %227 = arith.select %221, %223, %226 : vector<16x16xi1>, vector<16x16xf32>
      %228 = arith.subf %224, %223 : vector<16x16xf32>
      %cst_80 = arith.constant 1.000000e+00 : f32
      %229 = vector.broadcast %cst_80 : f32 to vector<16x16xf32>
      %230 = arith.subf %229, %228 : vector<16x16xf32>
      %231 = arith.cmpf oeq, %49, %223 : vector<16x16xf32>
      %cst_81 = arith.constant 0.000000e+00 : f32
      %232 = vector.broadcast %cst_81 : f32 to vector<16x16xf32>
      %233 = arith.select %231, %230, %232 : vector<16x16xi1>, vector<16x16xf32>
      %234 = arith.cmpf oeq, %49, %227 : vector<16x16xf32>
      %cst_82 = arith.constant 0.000000e+00 : f32
      %235 = vector.broadcast %cst_82 : f32 to vector<16x16xf32>
      %236 = arith.select %234, %228, %235 : vector<16x16xi1>, vector<16x16xf32>
      %237 = arith.addf %233, %236 : vector<16x16xf32>
      %cst_83 = arith.constant 0.000000e+00 : f32
      %238 = vector.broadcast %cst_83 : f32 to vector<16x16xf32>
      %239 = arith.select %216, %237, %238 : vector<16x16xi1>, vector<16x16xf32>
      %240 = arith.mulf %202, %239 : vector<16x16xf32>
      %241 = arith.addf %165, %240 : vector<16x16xf32>
      %cst_84 = arith.constant 2.000000e+00 : f32
      %242 = vector.broadcast %cst_84 : f32 to vector<16x16xf32>
      %243 = arith.mulf %43, %242 : vector<16x16xf32>
      %cst_85 = arith.constant 1.500000e+00 : f32
      %244 = vector.broadcast %cst_85 : f32 to vector<16x16xf32>
      %245 = arith.addf %243, %244 : vector<16x16xf32>
      %cst_86 = arith.constant 2.000000e+00 : f32
      %246 = arith.divf %33, %cst_86 : f32
      %247 = vector.broadcast %246 : f32 to vector<16x16xf32>
      %248 = arith.mulf %245, %247 : vector<16x16xf32>
      %249 = vector.broadcast %24 : f32 to vector<16x16xf32>
      %250 = arith.addf %249, %248 : vector<16x16xf32>
      %cst_87 = arith.constant -1.000000e+00 : f32
      %251 = vector.broadcast %cst_87 : f32 to vector<16x16xf32>
      %252 = arith.cmpf oge, %250, %251 : vector<16x16xf32>
      %cst_88 = arith.constant 4.000000e+00 : f32
      %253 = vector.broadcast %cst_88 : f32 to vector<16x16xf32>
      %254 = arith.cmpf ole, %250, %253 : vector<16x16xf32>
      %255 = arith.andi %252, %254 : vector<16x16xi1>
      %cst_89 = arith.constant 0.000000e+00 : f32
      %256 = vector.broadcast %cst_89 : f32 to vector<16x16xf32>
      %257 = arith.maximumf %250, %256 : vector<16x16xf32>
      %258 = math.floor %257 : vector<16x16xf32>
      %cst_90 = arith.constant 3.000000e+00 : f32
      %259 = vector.broadcast %cst_90 : f32 to vector<16x16xf32>
      %260 = arith.cmpf oge, %258, %259 : vector<16x16xf32>
      %cst_91 = arith.constant 3.000000e+00 : f32
      %261 = vector.broadcast %cst_91 : f32 to vector<16x16xf32>
      %262 = arith.select %260, %261, %258 : vector<16x16xi1>, vector<16x16xf32>
      %263 = arith.select %260, %262, %257 : vector<16x16xi1>, vector<16x16xf32>
      %cst_92 = arith.constant 1.000000e+00 : f32
      %264 = vector.broadcast %cst_92 : f32 to vector<16x16xf32>
      %265 = arith.addf %262, %264 : vector<16x16xf32>
      %266 = arith.select %260, %262, %265 : vector<16x16xi1>, vector<16x16xf32>
      %267 = arith.subf %263, %262 : vector<16x16xf32>
      %cst_93 = arith.constant 1.000000e+00 : f32
      %268 = vector.broadcast %cst_93 : f32 to vector<16x16xf32>
      %269 = arith.subf %268, %267 : vector<16x16xf32>
      %270 = arith.cmpf oeq, %49, %262 : vector<16x16xf32>
      %cst_94 = arith.constant 0.000000e+00 : f32
      %271 = vector.broadcast %cst_94 : f32 to vector<16x16xf32>
      %272 = arith.select %270, %269, %271 : vector<16x16xi1>, vector<16x16xf32>
      %273 = arith.cmpf oeq, %49, %266 : vector<16x16xf32>
      %cst_95 = arith.constant 0.000000e+00 : f32
      %274 = vector.broadcast %cst_95 : f32 to vector<16x16xf32>
      %275 = arith.select %273, %267, %274 : vector<16x16xi1>, vector<16x16xf32>
      %276 = arith.addf %272, %275 : vector<16x16xf32>
      %cst_96 = arith.constant 0.000000e+00 : f32
      %277 = vector.broadcast %cst_96 : f32 to vector<16x16xf32>
      %278 = arith.select %255, %276, %277 : vector<16x16xi1>, vector<16x16xf32>
      %279 = arith.mulf %202, %278 : vector<16x16xf32>
      %280 = arith.addf %241, %279 : vector<16x16xf32>
      %cst_97 = arith.constant 2.500000e-01 : f32
      %281 = vector.broadcast %cst_97 : f32 to vector<16x16xf32>
      %282 = arith.mulf %280, %281 : vector<16x16xf32>
      %c0_98 = arith.constant 0 : index
      %c0_99 = arith.constant 0 : index
      %c0_100 = arith.constant 0 : index
      %283 = vector.load %arg6[%c0_98, %c0_99, %c0_100] : memref<1x16x4xf32, #tpu.memory_space<vmem>>, vector<1x16x4xf32>
      %284 = vector.shape_cast %283 : vector<1x16x4xf32> to vector<16x4xf32>
      %cst_101 = arith.constant dense<0.000000e+00> : vector<16x4xf32>
      %285 = tpu.matmul %282, %284, %cst_101 {dimension_numbers = #tpu.dot_dimension_numbers<[1], [0], [0], [1], [0, 0, 1, 1], [], []>} : vector<16x16xf32>, vector<16x4xf32>, vector<16x4xf32> -> vector<16x4xf32>
      %c0_102 = arith.constant 0 : index
      %c0_103 = arith.constant 0 : index
      %c0_104 = arith.constant 0 : index
      %286 = vector.load %arg8[%c0_102, %c0_103, %c0_104] : memref<1x16x4xf32, #tpu.memory_space<vmem>>, vector<1x16x4xf32>
      %287 = vector.shape_cast %286 : vector<1x16x4xf32> to vector<16x4xf32>
      %288 = vector.shape_cast %285 : vector<16x4xf32> to vector<1x16x4xf32>
      tpu.vector_store %arg8[%c0_102, %c0_103, %c0_104], %288 {strides = array<i32>} : memref<1x16x4xf32, #tpu.memory_space<vmem>>, vector<1x16x4xf32>,
    } else {
    }
    %c3_i32 = arith.constant 3 : i32
    %21 = arith.cmpi eq, %1, %c3_i32 : i32
    %22 = arith.extui %21 : i1 to i32
    %c0_i32_5 = arith.constant 0 : i32
    %23 = arith.cmpi ne, %22, %c0_i32_5 : i32
    scf.if %23 {
      %cst_6 = arith.constant 3.125000e-02 : f32
      %24 = arith.mulf %3, %cst_6 : f32
      %cst_7 = arith.constant 3.125000e-02 : f32
      %25 = arith.mulf %5, %cst_7 : f32
      %cst_8 = arith.constant 3.125000e-02 : f32
      %26 = arith.mulf %7, %cst_8 : f32
      %27 = arith.subf %26, %24 : f32
      %cst_9 = arith.constant 1.000000e+00 : f32
      %28 = arith.maximumf %27, %cst_9 : f32
      %cst_10 = arith.constant 3.125000e-02 : f32
      %29 = arith.mulf %9, %cst_10 : f32
      %30 = arith.subf %29, %25 : f32
      %cst_11 = arith.constant 1.000000e+00 : f32
      %31 = arith.maximumf %30, %cst_11 : f32
      %cst_12 = arith.constant 4.000000e+00 : f32
      %32 = arith.divf %31, %cst_12 : f32
      %cst_13 = arith.constant 4.000000e+00 : f32
      %33 = arith.divf %28, %cst_13 : f32
      %34 = tpu.iota {dimensions = array<i32: 0>} : vector<16x4xi32>
      %35 = arith.sitofp %34 : vector<16x4xi32> to vector<16x4xf32>
      %36 = tpu.iota {dimensions = array<i32: 1>} : vector<16x4xi32>
      %37 = arith.sitofp %36 : vector<16x4xi32> to vector<16x4xf32>
      %cst_14 = arith.constant 4.000000e+00 : f32
      %38 = vector.broadcast %cst_14 : f32 to vector<16x4xf32>
      %39 = arith.divf %35, %38 : vector<16x4xf32>
      %40 = math.floor %39 : vector<16x4xf32>
      %cst_15 = arith.constant 4.000000e+00 : f32
      %41 = vector.broadcast %cst_15 : f32 to vector<16x4xf32>
      %42 = arith.mulf %40, %41 : vector<16x4xf32>
      %43 = arith.subf %35, %42 : vector<16x4xf32>
      %cst_16 = arith.constant 2.000000e+00 : f32
      %44 = vector.broadcast %cst_16 : f32 to vector<16x4xf32>
      %45 = arith.divf %37, %44 : vector<16x4xf32>
      %46 = math.floor %45 : vector<16x4xf32>
      %cst_17 = arith.constant 2.000000e+00 : f32
      %47 = vector.broadcast %cst_17 : f32 to vector<16x4xf32>
      %48 = arith.mulf %46, %47 : vector<16x4xf32>
      %49 = arith.subf %37, %48 : vector<16x4xf32>
      %cst_18 = arith.constant 0.000000e+00 : f32
      %50 = vector.broadcast %cst_18 : f32 to vector<16x4xf32>
      %cst_19 = arith.constant 2.000000e+00 : f32
      %51 = vector.broadcast %cst_19 : f32 to vector<16x4xf32>
      %52 = arith.mulf %40, %51 : vector<16x4xf32>
      %cst_20 = arith.constant 5.000000e-01 : f32
      %53 = vector.broadcast %cst_20 : f32 to vector<16x4xf32>
      %54 = arith.addf %52, %53 : vector<16x4xf32>
      %cst_21 = arith.constant 2.000000e+00 : f32
      %55 = arith.divf %32, %cst_21 : f32
      %56 = vector.broadcast %55 : f32 to vector<16x4xf32>
      %57 = arith.mulf %54, %56 : vector<16x4xf32>
      %58 = vector.broadcast %25 : f32 to vector<16x4xf32>
      %59 = arith.addf %58, %57 : vector<16x4xf32>
      %cst_22 = arith.constant -1.000000e+00 : f32
      %60 = vector.broadcast %cst_22 : f32 to vector<16x4xf32>
      %61 = arith.cmpf oge, %59, %60 : vector<16x4xf32>
      %cst_23 = arith.constant 2.000000e+00 : f32
      %62 = vector.broadcast %cst_23 : f32 to vector<16x4xf32>
      %63 = arith.cmpf ole, %59, %62 : vector<16x4xf32>
      %64 = arith.andi %61, %63 : vector<16x4xi1>
      %cst_24 = arith.constant 0.000000e+00 : f32
      %65 = vector.broadcast %cst_24 : f32 to vector<16x4xf32>
      %66 = arith.maximumf %59, %65 : vector<16x4xf32>
      %67 = math.floor %66 : vector<16x4xf32>
      %cst_25 = arith.constant 1.000000e+00 : f32
      %68 = vector.broadcast %cst_25 : f32 to vector<16x4xf32>
      %69 = arith.cmpf oge, %67, %68 : vector<16x4xf32>
      %cst_26 = arith.constant 1.000000e+00 : f32
      %70 = vector.broadcast %cst_26 : f32 to vector<16x4xf32>
      %71 = arith.select %69, %70, %67 : vector<16x4xi1>, vector<16x4xf32>
      %72 = arith.select %69, %71, %66 : vector<16x4xi1>, vector<16x4xf32>
      %cst_27 = arith.constant 1.000000e+00 : f32
      %73 = vector.broadcast %cst_27 : f32 to vector<16x4xf32>
      %74 = arith.addf %71, %73 : vector<16x4xf32>
      %75 = arith.select %69, %71, %74 : vector<16x4xi1>, vector<16x4xf32>
      %76 = arith.subf %72, %71 : vector<16x4xf32>
      %cst_28 = arith.constant 1.000000e+00 : f32
      %77 = vector.broadcast %cst_28 : f32 to vector<16x4xf32>
      %78 = arith.subf %77, %76 : vector<16x4xf32>
      %79 = arith.cmpf oeq, %46, %71 : vector<16x4xf32>
      %cst_29 = arith.constant 0.000000e+00 : f32
      %80 = vector.broadcast %cst_29 : f32 to vector<16x4xf32>
      %81 = arith.select %79, %78, %80 : vector<16x4xi1>, vector<16x4xf32>
      %82 = arith.cmpf oeq, %46, %75 : vector<16x4xf32>
      %cst_30 = arith.constant 0.000000e+00 : f32
      %83 = vector.broadcast %cst_30 : f32 to vector<16x4xf32>
      %84 = arith.select %82, %76, %83 : vector<16x4xi1>, vector<16x4xf32>
      %85 = arith.addf %81, %84 : vector<16x4xf32>
      %cst_31 = arith.constant 0.000000e+00 : f32
      %86 = vector.broadcast %cst_31 : f32 to vector<16x4xf32>
      %87 = arith.select %64, %85, %86 : vector<16x4xi1>, vector<16x4xf32>
      %cst_32 = arith.constant 2.000000e+00 : f32
      %88 = vector.broadcast %cst_32 : f32 to vector<16x4xf32>
      %89 = arith.mulf %43, %88 : vector<16x4xf32>
      %cst_33 = arith.constant 5.000000e-01 : f32
      %90 = vector.broadcast %cst_33 : f32 to vector<16x4xf32>
      %91 = arith.addf %89, %90 : vector<16x4xf32>
      %cst_34 = arith.constant 2.000000e+00 : f32
      %92 = arith.divf %33, %cst_34 : f32
      %93 = vector.broadcast %92 : f32 to vector<16x4xf32>
      %94 = arith.mulf %91, %93 : vector<16x4xf32>
      %95 = vector.broadcast %24 : f32 to vector<16x4xf32>
      %96 = arith.addf %95, %94 : vector<16x4xf32>
      %cst_35 = arith.constant -1.000000e+00 : f32
      %97 = vector.broadcast %cst_35 : f32 to vector<16x4xf32>
      %98 = arith.cmpf oge, %96, %97 : vector<16x4xf32>
      %cst_36 = arith.constant 2.000000e+00 : f32
      %99 = vector.broadcast %cst_36 : f32 to vector<16x4xf32>
      %100 = arith.cmpf ole, %96, %99 : vector<16x4xf32>
      %101 = arith.andi %98, %100 : vector<16x4xi1>
      %cst_37 = arith.constant 0.000000e+00 : f32
      %102 = vector.broadcast %cst_37 : f32 to vector<16x4xf32>
      %103 = arith.maximumf %96, %102 : vector<16x4xf32>
      %104 = math.floor %103 : vector<16x4xf32>
      %cst_38 = arith.constant 1.000000e+00 : f32
      %105 = vector.broadcast %cst_38 : f32 to vector<16x4xf32>
      %106 = arith.cmpf oge, %104, %105 : vector<16x4xf32>
      %cst_39 = arith.constant 1.000000e+00 : f32
      %107 = vector.broadcast %cst_39 : f32 to vector<16x4xf32>
      %108 = arith.select %106, %107, %104 : vector<16x4xi1>, vector<16x4xf32>
      %109 = arith.select %106, %108, %103 : vector<16x4xi1>, vector<16x4xf32>
      %cst_40 = arith.constant 1.000000e+00 : f32
      %110 = vector.broadcast %cst_40 : f32 to vector<16x4xf32>
      %111 = arith.addf %108, %110 : vector<16x4xf32>
      %112 = arith.select %106, %108, %111 : vector<16x4xi1>, vector<16x4xf32>
      %113 = arith.subf %109, %108 : vector<16x4xf32>
      %cst_41 = arith.constant 1.000000e+00 : f32
      %114 = vector.broadcast %cst_41 : f32 to vector<16x4xf32>
      %115 = arith.subf %114, %113 : vector<16x4xf32>
      %116 = arith.cmpf oeq, %49, %108 : vector<16x4xf32>
      %cst_42 = arith.constant 0.000000e+00 : f32
      %117 = vector.broadcast %cst_42 : f32 to vector<16x4xf32>
      %118 = arith.select %116, %115, %117 : vector<16x4xi1>, vector<16x4xf32>
      %119 = arith.cmpf oeq, %49, %112 : vector<16x4xf32>
      %cst_43 = arith.constant 0.000000e+00 : f32
      %120 = vector.broadcast %cst_43 : f32 to vector<16x4xf32>
      %121 = arith.select %119, %113, %120 : vector<16x4xi1>, vector<16x4xf32>
      %122 = arith.addf %118, %121 : vector<16x4xf32>
      %cst_44 = arith.constant 0.000000e+00 : f32
      %123 = vector.broadcast %cst_44 : f32 to vector<16x4xf32>
      %124 = arith.select %101, %122, %123 : vector<16x4xi1>, vector<16x4xf32>
      %125 = arith.mulf %87, %124 : vector<16x4xf32>
      %126 = arith.addf %50, %125 : vector<16x4xf32>
      %cst_45 = arith.constant 2.000000e+00 : f32
      %127 = vector.broadcast %cst_45 : f32 to vector<16x4xf32>
      %128 = arith.mulf %43, %127 : vector<16x4xf32>
      %cst_46 = arith.constant 1.500000e+00 : f32
      %129 = vector.broadcast %cst_46 : f32 to vector<16x4xf32>
      %130 = arith.addf %128, %129 : vector<16x4xf32>
      %cst_47 = arith.constant 2.000000e+00 : f32
      %131 = arith.divf %33, %cst_47 : f32
      %132 = vector.broadcast %131 : f32 to vector<16x4xf32>
      %133 = arith.mulf %130, %132 : vector<16x4xf32>
      %134 = vector.broadcast %24 : f32 to vector<16x4xf32>
      %135 = arith.addf %134, %133 : vector<16x4xf32>
      %cst_48 = arith.constant -1.000000e+00 : f32
      %136 = vector.broadcast %cst_48 : f32 to vector<16x4xf32>
      %137 = arith.cmpf oge, %135, %136 : vector<16x4xf32>
      %cst_49 = arith.constant 2.000000e+00 : f32
      %138 = vector.broadcast %cst_49 : f32 to vector<16x4xf32>
      %139 = arith.cmpf ole, %135, %138 : vector<16x4xf32>
      %140 = arith.andi %137, %139 : vector<16x4xi1>
      %cst_50 = arith.constant 0.000000e+00 : f32
      %141 = vector.broadcast %cst_50 : f32 to vector<16x4xf32>
      %142 = arith.maximumf %135, %141 : vector<16x4xf32>
      %143 = math.floor %142 : vector<16x4xf32>
      %cst_51 = arith.constant 1.000000e+00 : f32
      %144 = vector.broadcast %cst_51 : f32 to vector<16x4xf32>
      %145 = arith.cmpf oge, %143, %144 : vector<16x4xf32>
      %cst_52 = arith.constant 1.000000e+00 : f32
      %146 = vector.broadcast %cst_52 : f32 to vector<16x4xf32>
      %147 = arith.select %145, %146, %143 : vector<16x4xi1>, vector<16x4xf32>
      %148 = arith.select %145, %147, %142 : vector<16x4xi1>, vector<16x4xf32>
      %cst_53 = arith.constant 1.000000e+00 : f32
      %149 = vector.broadcast %cst_53 : f32 to vector<16x4xf32>
      %150 = arith.addf %147, %149 : vector<16x4xf32>
      %151 = arith.select %145, %147, %150 : vector<16x4xi1>, vector<16x4xf32>
      %152 = arith.subf %148, %147 : vector<16x4xf32>
      %cst_54 = arith.constant 1.000000e+00 : f32
      %153 = vector.broadcast %cst_54 : f32 to vector<16x4xf32>
      %154 = arith.subf %153, %152 : vector<16x4xf32>
      %155 = arith.cmpf oeq, %49, %147 : vector<16x4xf32>
      %cst_55 = arith.constant 0.000000e+00 : f32
      %156 = vector.broadcast %cst_55 : f32 to vector<16x4xf32>
      %157 = arith.select %155, %154, %156 : vector<16x4xi1>, vector<16x4xf32>
      %158 = arith.cmpf oeq, %49, %151 : vector<16x4xf32>
      %cst_56 = arith.constant 0.000000e+00 : f32
      %159 = vector.broadcast %cst_56 : f32 to vector<16x4xf32>
      %160 = arith.select %158, %152, %159 : vector<16x4xi1>, vector<16x4xf32>
      %161 = arith.addf %157, %160 : vector<16x4xf32>
      %cst_57 = arith.constant 0.000000e+00 : f32
      %162 = vector.broadcast %cst_57 : f32 to vector<16x4xf32>
      %163 = arith.select %140, %161, %162 : vector<16x4xi1>, vector<16x4xf32>
      %164 = arith.mulf %87, %163 : vector<16x4xf32>
      %165 = arith.addf %126, %164 : vector<16x4xf32>
      %cst_58 = arith.constant 2.000000e+00 : f32
      %166 = vector.broadcast %cst_58 : f32 to vector<16x4xf32>
      %167 = arith.mulf %40, %166 : vector<16x4xf32>
      %cst_59 = arith.constant 1.500000e+00 : f32
      %168 = vector.broadcast %cst_59 : f32 to vector<16x4xf32>
      %169 = arith.addf %167, %168 : vector<16x4xf32>
      %cst_60 = arith.constant 2.000000e+00 : f32
      %170 = arith.divf %32, %cst_60 : f32
      %171 = vector.broadcast %170 : f32 to vector<16x4xf32>
      %172 = arith.mulf %169, %171 : vector<16x4xf32>
      %173 = vector.broadcast %25 : f32 to vector<16x4xf32>
      %174 = arith.addf %173, %172 : vector<16x4xf32>
      %cst_61 = arith.constant -1.000000e+00 : f32
      %175 = vector.broadcast %cst_61 : f32 to vector<16x4xf32>
      %176 = arith.cmpf oge, %174, %175 : vector<16x4xf32>
      %cst_62 = arith.constant 2.000000e+00 : f32
      %177 = vector.broadcast %cst_62 : f32 to vector<16x4xf32>
      %178 = arith.cmpf ole, %174, %177 : vector<16x4xf32>
      %179 = arith.andi %176, %178 : vector<16x4xi1>
      %cst_63 = arith.constant 0.000000e+00 : f32
      %180 = vector.broadcast %cst_63 : f32 to vector<16x4xf32>
      %181 = arith.maximumf %174, %180 : vector<16x4xf32>
      %182 = math.floor %181 : vector<16x4xf32>
      %cst_64 = arith.constant 1.000000e+00 : f32
      %183 = vector.broadcast %cst_64 : f32 to vector<16x4xf32>
      %184 = arith.cmpf oge, %182, %183 : vector<16x4xf32>
      %cst_65 = arith.constant 1.000000e+00 : f32
      %185 = vector.broadcast %cst_65 : f32 to vector<16x4xf32>
      %186 = arith.select %184, %185, %182 : vector<16x4xi1>, vector<16x4xf32>
      %187 = arith.select %184, %186, %181 : vector<16x4xi1>, vector<16x4xf32>
      %cst_66 = arith.constant 1.000000e+00 : f32
      %188 = vector.broadcast %cst_66 : f32 to vector<16x4xf32>
      %189 = arith.addf %186, %188 : vector<16x4xf32>
      %190 = arith.select %184, %186, %189 : vector<16x4xi1>, vector<16x4xf32>
      %191 = arith.subf %187, %186 : vector<16x4xf32>
      %cst_67 = arith.constant 1.000000e+00 : f32
      %192 = vector.broadcast %cst_67 : f32 to vector<16x4xf32>
      %193 = arith.subf %192, %191 : vector<16x4xf32>
      %194 = arith.cmpf oeq, %46, %186 : vector<16x4xf32>
      %cst_68 = arith.constant 0.000000e+00 : f32
      %195 = vector.broadcast %cst_68 : f32 to vector<16x4xf32>
      %196 = arith.select %194, %193, %195 : vector<16x4xi1>, vector<16x4xf32>
      %197 = arith.cmpf oeq, %46, %190 : vector<16x4xf32>
      %cst_69 = arith.constant 0.000000e+00 : f32
      %198 = vector.broadcast %cst_69 : f32 to vector<16x4xf32>
      %199 = arith.select %197, %191, %198 : vector<16x4xi1>, vector<16x4xf32>
      %200 = arith.addf %196, %199 : vector<16x4xf32>
      %cst_70 = arith.constant 0.000000e+00 : f32
      %201 = vector.broadcast %cst_70 : f32 to vector<16x4xf32>
      %202 = arith.select %179, %200, %201 : vector<16x4xi1>, vector<16x4xf32>
      %cst_71 = arith.constant 2.000000e+00 : f32
      %203 = vector.broadcast %cst_71 : f32 to vector<16x4xf32>
      %204 = arith.mulf %43, %203 : vector<16x4xf32>
      %cst_72 = arith.constant 5.000000e-01 : f32
      %205 = vector.broadcast %cst_72 : f32 to vector<16x4xf32>
      %206 = arith.addf %204, %205 : vector<16x4xf32>
      %cst_73 = arith.constant 2.000000e+00 : f32
      %207 = arith.divf %33, %cst_73 : f32
      %208 = vector.broadcast %207 : f32 to vector<16x4xf32>
      %209 = arith.mulf %206, %208 : vector<16x4xf32>
      %210 = vector.broadcast %24 : f32 to vector<16x4xf32>
      %211 = arith.addf %210, %209 : vector<16x4xf32>
      %cst_74 = arith.constant -1.000000e+00 : f32
      %212 = vector.broadcast %cst_74 : f32 to vector<16x4xf32>
      %213 = arith.cmpf oge, %211, %212 : vector<16x4xf32>
      %cst_75 = arith.constant 2.000000e+00 : f32
      %214 = vector.broadcast %cst_75 : f32 to vector<16x4xf32>
      %215 = arith.cmpf ole, %211, %214 : vector<16x4xf32>
      %216 = arith.andi %213, %215 : vector<16x4xi1>
      %cst_76 = arith.constant 0.000000e+00 : f32
      %217 = vector.broadcast %cst_76 : f32 to vector<16x4xf32>
      %218 = arith.maximumf %211, %217 : vector<16x4xf32>
      %219 = math.floor %218 : vector<16x4xf32>
      %cst_77 = arith.constant 1.000000e+00 : f32
      %220 = vector.broadcast %cst_77 : f32 to vector<16x4xf32>
      %221 = arith.cmpf oge, %219, %220 : vector<16x4xf32>
      %cst_78 = arith.constant 1.000000e+00 : f32
      %222 = vector.broadcast %cst_78 : f32 to vector<16x4xf32>
      %223 = arith.select %221, %222, %219 : vector<16x4xi1>, vector<16x4xf32>
      %224 = arith.select %221, %223, %218 : vector<16x4xi1>, vector<16x4xf32>
      %cst_79 = arith.constant 1.000000e+00 : f32
      %225 = vector.broadcast %cst_79 : f32 to vector<16x4xf32>
      %226 = arith.addf %223, %225 : vector<16x4xf32>
      %227 = arith.select %221, %223, %226 : vector<16x4xi1>, vector<16x4xf32>
      %228 = arith.subf %224, %223 : vector<16x4xf32>
      %cst_80 = arith.constant 1.000000e+00 : f32
      %229 = vector.broadcast %cst_80 : f32 to vector<16x4xf32>
      %230 = arith.subf %229, %228 : vector<16x4xf32>
      %231 = arith.cmpf oeq, %49, %223 : vector<16x4xf32>
      %cst_81 = arith.constant 0.000000e+00 : f32
      %232 = vector.broadcast %cst_81 : f32 to vector<16x4xf32>
      %233 = arith.select %231, %230, %232 : vector<16x4xi1>, vector<16x4xf32>
      %234 = arith.cmpf oeq, %49, %227 : vector<16x4xf32>
      %cst_82 = arith.constant 0.000000e+00 : f32
      %235 = vector.broadcast %cst_82 : f32 to vector<16x4xf32>
      %236 = arith.select %234, %228, %235 : vector<16x4xi1>, vector<16x4xf32>
      %237 = arith.addf %233, %236 : vector<16x4xf32>
      %cst_83 = arith.constant 0.000000e+00 : f32
      %238 = vector.broadcast %cst_83 : f32 to vector<16x4xf32>
      %239 = arith.select %216, %237, %238 : vector<16x4xi1>, vector<16x4xf32>
      %240 = arith.mulf %202, %239 : vector<16x4xf32>
      %241 = arith.addf %165, %240 : vector<16x4xf32>
      %cst_84 = arith.constant 2.000000e+00 : f32
      %242 = vector.broadcast %cst_84 : f32 to vector<16x4xf32>
      %243 = arith.mulf %43, %242 : vector<16x4xf32>
      %cst_85 = arith.constant 1.500000e+00 : f32
      %244 = vector.broadcast %cst_85 : f32 to vector<16x4xf32>
      %245 = arith.addf %243, %244 : vector<16x4xf32>
      %cst_86 = arith.constant 2.000000e+00 : f32
      %246 = arith.divf %33, %cst_86 : f32
      %247 = vector.broadcast %246 : f32 to vector<16x4xf32>
      %248 = arith.mulf %245, %247 : vector<16x4xf32>
      %249 = vector.broadcast %24 : f32 to vector<16x4xf32>
      %250 = arith.addf %249, %248 : vector<16x4xf32>
      %cst_87 = arith.constant -1.000000e+00 : f32
      %251 = vector.broadcast %cst_87 : f32 to vector<16x4xf32>
      %252 = arith.cmpf oge, %250, %251 : vector<16x4xf32>
      %cst_88 = arith.constant 2.000000e+00 : f32
      %253 = vector.broadcast %cst_88 : f32 to vector<16x4xf32>
      %254 = arith.cmpf ole, %250, %253 : vector<16x4xf32>
      %255 = arith.andi %252, %254 : vector<16x4xi1>
      %cst_89 = arith.constant 0.000000e+00 : f32
      %256 = vector.broadcast %cst_89 : f32 to vector<16x4xf32>
      %257 = arith.maximumf %250, %256 : vector<16x4xf32>
      %258 = math.floor %257 : vector<16x4xf32>
      %cst_90 = arith.constant 1.000000e+00 : f32
      %259 = vector.broadcast %cst_90 : f32 to vector<16x4xf32>
      %260 = arith.cmpf oge, %258, %259 : vector<16x4xf32>
      %cst_91 = arith.constant 1.000000e+00 : f32
      %261 = vector.broadcast %cst_91 : f32 to vector<16x4xf32>
      %262 = arith.select %260, %261, %258 : vector<16x4xi1>, vector<16x4xf32>
      %263 = arith.select %260, %262, %257 : vector<16x4xi1>, vector<16x4xf32>
      %cst_92 = arith.constant 1.000000e+00 : f32
      %264 = vector.broadcast %cst_92 : f32 to vector<16x4xf32>
      %265 = arith.addf %262, %264 : vector<16x4xf32>
      %266 = arith.select %260, %262, %265 : vector<16x4xi1>, vector<16x4xf32>
      %267 = arith.subf %263, %262 : vector<16x4xf32>
      %cst_93 = arith.constant 1.000000e+00 : f32
      %268 = vector.broadcast %cst_93 : f32 to vector<16x4xf32>
      %269 = arith.subf %268, %267 : vector<16x4xf32>
      %270 = arith.cmpf oeq, %49, %262 : vector<16x4xf32>
      %cst_94 = arith.constant 0.000000e+00 : f32
      %271 = vector.broadcast %cst_94 : f32 to vector<16x4xf32>
      %272 = arith.select %270, %269, %271 : vector<16x4xi1>, vector<16x4xf32>
      %273 = arith.cmpf oeq, %49, %266 : vector<16x4xf32>
      %cst_95 = arith.constant 0.000000e+00 : f32
      %274 = vector.broadcast %cst_95 : f32 to vector<16x4xf32>
      %275 = arith.select %273, %267, %274 : vector<16x4xi1>, vector<16x4xf32>
      %276 = arith.addf %272, %275 : vector<16x4xf32>
      %cst_96 = arith.constant 0.000000e+00 : f32
      %277 = vector.broadcast %cst_96 : f32 to vector<16x4xf32>
      %278 = arith.select %255, %276, %277 : vector<16x4xi1>, vector<16x4xf32>
      %279 = arith.mulf %202, %278 : vector<16x4xf32>
      %280 = arith.addf %241, %279 : vector<16x4xf32>
      %cst_97 = arith.constant 2.500000e-01 : f32
      %281 = vector.broadcast %cst_97 : f32 to vector<16x4xf32>
      %282 = arith.mulf %280, %281 : vector<16x4xf32>
      %c0_98 = arith.constant 0 : index
      %c0_99 = arith.constant 0 : index
      %c0_100 = arith.constant 0 : index
      %283 = vector.load %arg7[%c0_98, %c0_99, %c0_100] : memref<1x4x4xf32, #tpu.memory_space<vmem>>, vector<1x4x4xf32>
      %284 = vector.shape_cast %283 : vector<1x4x4xf32> to vector<4x4xf32>
      %cst_101 = arith.constant dense<0.000000e+00> : vector<16x4xf32>
      %285 = tpu.matmul %282, %284, %cst_101 {dimension_numbers = #tpu.dot_dimension_numbers<[1], [0], [0], [1], [0, 0, 1, 1], [], []>} : vector<16x4xf32>, vector<4x4xf32>, vector<16x4xf32> -> vector<16x4xf32>
      %c0_102 = arith.constant 0 : index
      %c0_103 = arith.constant 0 : index
      %c0_104 = arith.constant 0 : index
      %286 = vector.load %arg8[%c0_102, %c0_103, %c0_104] : memref<1x16x4xf32, #tpu.memory_space<vmem>>, vector<1x16x4xf32>
      %287 = vector.shape_cast %286 : vector<1x16x4xf32> to vector<16x4xf32>
      %288 = vector.shape_cast %285 : vector<16x4xf32> to vector<1x16x4xf32>
      tpu.vector_store %arg8[%c0_102, %c0_103, %c0_104], %288 {strides = array<i32>} : memref<1x16x4xf32, #tpu.memory_space<vmem>>, vector<1x16x4xf32>,
    } else {
    }
    return
  }
  func.func @transform_0(%arg0: i32, %arg1: memref<8xi32, #tpu.memory_space<smem>>, %arg2: memref<8xi32, #tpu.memory_space<smem>>) -> (i32, i32) {
    %c0_i32 = arith.constant 0 : i32
    %c0_i32_0 = arith.constant 0 : i32
    %c0_i32_1 = arith.constant 0 : i32
    return %c0_i32, %c0_i32_0 : i32, i32
  }
  func.func @transform_1(%arg0: i32, %arg1: memref<8xi32, #tpu.memory_space<smem>>, %arg2: memref<8xi32, #tpu.memory_space<smem>>) -> (i32, i32, i32) {
    %0 = arith.index_cast %arg0 : i32 to index
    %1 = memref.load %arg1[%0] : memref<8xi32, #tpu.memory_space<smem>>
    %c0_i32 = arith.constant 0 : i32
    %c0_i32_0 = arith.constant 0 : i32
    %c0_i32_1 = arith.constant 0 : i32
    return %1, %c0_i32, %c0_i32_0 : i32, i32, i32
  }
  func.func @transform_2(%arg0: i32, %arg1: memref<8xi32, #tpu.memory_space<smem>>, %arg2: memref<8xi32, #tpu.memory_space<smem>>) -> (i32, i32, i32) {
    %0 = arith.index_cast %arg0 : i32 to index
    %1 = memref.load %arg1[%0] : memref<8xi32, #tpu.memory_space<smem>>
    %c0_i32 = arith.constant 0 : i32
    %c0_i32_0 = arith.constant 0 : i32
    %c0_i32_1 = arith.constant 0 : i32
    return %1, %c0_i32, %c0_i32_0 : i32, i32, i32
  }
  func.func @transform_3(%arg0: i32, %arg1: memref<8xi32, #tpu.memory_space<smem>>, %arg2: memref<8xi32, #tpu.memory_space<smem>>) -> (i32, i32, i32) {
    %0 = arith.index_cast %arg0 : i32 to index
    %1 = memref.load %arg1[%0] : memref<8xi32, #tpu.memory_space<smem>>
    %c0_i32 = arith.constant 0 : i32
    %c0_i32_0 = arith.constant 0 : i32
    %c0_i32_1 = arith.constant 0 : i32
    return %1, %c0_i32, %c0_i32_0 : i32, i32, i32
  }
  func.func @transform_4(%arg0: i32, %arg1: memref<8xi32, #tpu.memory_space<smem>>, %arg2: memref<8xi32, #tpu.memory_space<smem>>) -> (i32, i32, i32) {
    %0 = arith.index_cast %arg0 : i32 to index
    %1 = memref.load %arg1[%0] : memref<8xi32, #tpu.memory_space<smem>>
    %c0_i32 = arith.constant 0 : i32
    %c0_i32_0 = arith.constant 0 : i32
    %c0_i32_1 = arith.constant 0 : i32
    return %1, %c0_i32, %c0_i32_0 : i32, i32, i32
  }
  func.func @transform_5(%arg0: i32, %arg1: memref<8xi32, #tpu.memory_space<smem>>, %arg2: memref<8xi32, #tpu.memory_space<smem>>) -> (i32, i32, i32) {
    %c0_i32 = arith.constant 0 : i32
    %c0_i32_0 = arith.constant 0 : i32
    %c0_i32_1 = arith.constant 0 : i32
    return %arg0, %c0_i32, %c0_i32_0 : i32, i32, i32
  }
}

</mosaic_0001>

<llo_original>
// kernel: tpu_custom_call.1
$region0: #{tpu_custom_call.1}
  #allocation0 [shape = 'u32[]', space=smem, size = 0x4, offset = 0x4, fixed_abs, tag = 'smem constant byte address 0x4 - core index']
  #allocation1 [shape = 'u32[72,128]{1,0:T(1,128)}', space=vmem, size = 0x9000, scoped, tag = 'internal scratch']
  #allocation2 [shape = 's32[1]{0}', space=sflag, size = 0x4, scoped, tag = 'scoped memory for tpu_custom_call.1']
  #allocation3 [shape = 'u8[512]{0}', space=smem, size = 0x200, scoped, tag = 'prefetched SMEM operand 0']
  #allocation4 [shape = 'u8[512]{0}', space=smem, size = 0x200, scoped, tag = 'prefetched SMEM operand 1']
  %s0 = inlined_call_operand.vmem [shape: s32[8], index: 0, kind: input, shape index: {}]
  %s1 = inlined_call_operand.vmem [shape: s32[8], index: 1, kind: input, shape index: {}]
  %s2 = inlined_call_operand.vmem [shape: f32[5,8], index: 2, kind: input, shape index: {}]
  %s3 = inlined_call_operand.vmem [shape: f32[2,256,4], index: 3, kind: input, shape index: {}]
  %s4 = inlined_call_operand.vmem [shape: f32[2,64,4], index: 4, kind: input, shape index: {}]
  %s5 = inlined_call_operand.vmem [shape: f32[2,16,4], index: 5, kind: input, shape index: {}]
  %s6 = inlined_call_operand.vmem [shape: f32[2,4,4], index: 6, kind: input, shape index: {}]
  %s7 = inlined_call_operand.vmem [shape: f32[8,16,4], index: 7, kind: output, shape index: {}]
  %s8 = sld [smem:[#allocation0]]
  $region73: #{tpu_custom_call.1} parent=0
    _
  %s10 = ssub.s32 1, %s8
  %s11 = scalar_select 0, %s10, %s8
  %s13 = sshll.u32 %s0, 4
  %s14 = int_to_ptr.vmem [resolvable:$true] %s13
  %16 = dma.vmem_to_smem %s14, 16, [#allocation3], [#allocation2]
  %s18 = sshll.u32 %s1, 4
  %s19 = int_to_ptr.vmem [resolvable:$true] %s18
  %21 = dma.vmem_to_smem %s19, 16, [#allocation4], [#allocation2]
  %23 = dma.done [#allocation2], 32
  %24 = sfence
  $region1: #{tpu_custom_call.1} parent=0
    #allocation5 [shape = 'u8[4096]{0}', space=smem, size = 0x1000, scoped, tag = 'input window, operand 2, single buffered']
    #allocation6 [shape = 's32[2]{0}', space=sflag, size = 0x8, scoped, tag = 'scoped memory for tpu_custom_call.1']
    %25 = vsyncpa [#allocation6], 0
    loop: start=0, step=1, limit=10
    $region2: #{tpu_custom_call.1} parent=1 // loop_pre_header
      _
    $region3: #{tpu_custom_call.1} parent=1 // loop_header
      %s27 = sphi 0, %s31
      %p28 = scmp.ge.s32.totalorder %s27, 10
      %s35 = sphi 0, %s35
      %s37 = sphi 0, %s35
      %s38 = sphi 0, %s37
      %s52 = sphi 0, %s38
      %s60 = sphi 0, %s62
      %s63 = sphi 0, %s60
      %s64 = sphi 0, %s63
      %s80 = sphi 0, %s64
      %s88 = sphi 0, %s90
      %s91 = sphi 0, %s88
      %s92 = sphi 0, %s91
      %s108 = sphi 0, %s92
      %s116 = sphi 0, %s118
      %s119 = sphi 0, %s116
      %s120 = sphi 0, %s119
      %s136 = sphi 0, %s120
      %s144 = sphi 0, %s146
      %s147 = sphi 0, %s144
      %s148 = sphi 0, %s147
      %s164 = sphi 0, %s148
      %s170 = sphi 0, %s172
      %s173 = sphi 0, %s170
      %s174 = sphi 0, %s173
      %s190 = sphi 0, %s174
    $region4: #{tpu_custom_call.1} parent=1 // loop_header_branch
      %30 = sbr.rel (%p28) target = $region8
    $region5: #{tpu_custom_call.1} parent=1 // loop_body
      %s32 = ssub.s32 %s27, 1
      %s33 = ssub.s32 %s27, 2
      %s34 = sadd.s32 %s27, 1
      %s36 = sadd.s32 %s35, 1
      %p39 = scmp.eq.s32.totalorder %s27, 7
      %p40 = scmp.ne.s32.totalorder %s35, %s37
      %p41 = scmp.eq.s32.totalorder %s27, 0
      %p42 = por %p40, %p41
      %p43 = scmp.ne.s32.totalorder %s35, %s37
      %p44 = scmp.eq.s32.totalorder %s32, 7
      %p45 = por %p43, %p44
      %p46 = scmp.ne.s32.totalorder %s37, %s38
      %p47 = scmp.eq.s32.totalorder %s32, 0
      %p48 = por %p46, %p47
      %p49 = scmp.ne.s32.totalorder %s37, %s38
      %p50 = scmp.eq.s32.totalorder %s33, 7
      %p51 = por %p49, %p50
      %p53 = scmp.ne.s32.totalorder %s38, %s52
      %p54 = scmp.eq.s32.totalorder %s33, 0
      %p55 = por %p53, %p54
      %s56 = sld [smem:[#allocation3 + %s27]]
      %s57 = sld [smem:[#allocation3 + %s34]]
      %s58 = ssub.s32 %s56, %s57
      %p59 = scmp.eq.s32.totalorder %s58, 0
      %s61 = sadd.s32 %s60, 1
      %s62 = scalar_select %p59, %s60, %s61
      %p65 = pneg %p59
      %p66 = scmp.eq.s32.totalorder %s27, 7
      %p67 = por %p65, %p66
      %p68 = scmp.ne.s32.totalorder %s60, %s63
      %p69 = scmp.eq.s32.totalorder %s27, 0
      %p70 = por %p68, %p69
      %p71 = scmp.ne.s32.totalorder %s60, %s63
      %p72 = scmp.eq.s32.totalorder %s32, 7
      %p73 = por %p71, %p72
      %p74 = scmp.ne.s32.totalorder %s63, %s64
      %p75 = scmp.eq.s32.totalorder %s32, 0
      %p76 = por %p74, %p75
      %p77 = scmp.ne.s32.totalorder %s63, %s64
      %p78 = scmp.eq.s32.totalorder %s33, 7
      %p79 = por %p77, %p78
      %p81 = scmp.ne.s32.totalorder %s64, %s80
      %p82 = scmp.eq.s32.totalorder %s33, 0
      %p83 = por %p81, %p82
      %s84 = sld [smem:[#allocation3 + %s27]]
      %s85 = sld [smem:[#allocation3 + %s34]]
      %s86 = ssub.s32 %s84, %s85
      %p87 = scmp.eq.s32.totalorder %s86, 0
      %s89 = sadd.s32 %s88, 1
      %s90 = scalar_select %p87, %s88, %s89
      %p93 = pneg %p87
      %p94 = scmp.eq.s32.totalorder %s27, 7
      %p95 = por %p93, %p94
      %p96 = scmp.ne.s32.totalorder %s88, %s91
      %p97 = scmp.eq.s32.totalorder %s27, 0
      %p98 = por %p96, %p97
      %p99 = scmp.ne.s32.totalorder %s88, %s91
      %p100 = scmp.eq.s32.totalorder %s32, 7
      %p101 = por %p99, %p100
      %p102 = scmp.ne.s32.totalorder %s91, %s92
      %p103 = scmp.eq.s32.totalorder %s32, 0
      %p104 = por %p102, %p103
      %p105 = scmp.ne.s32.totalorder %s91, %s92
      %p106 = scmp.eq.s32.totalorder %s33, 7
      %p107 = por %p105, %p106
      %p109 = scmp.ne.s32.totalorder %s92, %s108
      %p110 = scmp.eq.s32.totalorder %s33, 0
      %p111 = por %p109, %p110
      %s112 = sld [smem:[#allocation3 + %s27]]
      %s113 = sld [smem:[#allocation3 + %s34]]
      %s114 = ssub.s32 %s112, %s113
      %p115 = scmp.eq.s32.totalorder %s114, 0
      %s117 = sadd.s32 %s116, 1
      %s118 = scalar_select %p115, %s116, %s117
      %p121 = pneg %p115
      %p122 = scmp.eq.s32.totalorder %s27, 7
      %p123 = por %p121, %p122
      %p124 = scmp.ne.s32.totalorder %s116, %s119
      %p125 = scmp.eq.s32.totalorder %s27, 0
      %p126 = por %p124, %p125
      %p127 = scmp.ne.s32.totalorder %s116, %s119
      %p128 = scmp.eq.s32.totalorder %s32, 7
      %p129 = por %p127, %p128
      %p130 = scmp.ne.s32.totalorder %s119, %s120
      %p131 = scmp.eq.s32.totalorder %s32, 0
      %p132 = por %p130, %p131
      %p133 = scmp.ne.s32.totalorder %s119, %s120
      %p134 = scmp.eq.s32.totalorder %s33, 7
      %p135 = por %p133, %p134
      %p137 = scmp.ne.s32.totalorder %s120, %s136
      %p138 = scmp.eq.s32.totalorder %s33, 0
      %p139 = por %p137, %p138
      %s140 = sld [smem:[#allocation3 + %s27]]
      %s141 = sld [smem:[#allocation3 + %s34]]
      %s142 = ssub.s32 %s140, %s141
      %p143 = scmp.eq.s32.totalorder %s142, 0
      %s145 = sadd.s32 %s144, 1
      %s146 = scalar_select %p143, %s144, %s145
      %p149 = pneg %p143
      %p150 = scmp.eq.s32.totalorder %s27, 7
      %p151 = por %p149, %p150
      %p152 = scmp.ne.s32.totalorder %s144, %s147
      %p153 = scmp.eq.s32.totalorder %s27, 0
      %p154 = por %p152, %p153
      %p155 = scmp.ne.s32.totalorder %s144, %s147
      %p156 = scmp.eq.s32.totalorder %s32, 7
      %p157 = por %p155, %p156
      %p158 = scmp.ne.s32.totalorder %s147, %s148
      %p159 = scmp.eq.s32.totalorder %s32, 0
      %p160 = por %p158, %p159
      %p161 = scmp.ne.s32.totalorder %s147, %s148
      %p162 = scmp.eq.s32.totalorder %s33, 7
      %p163 = por %p161, %p162
      %p165 = scmp.ne.s32.totalorder %s148, %s164
      %p166 = scmp.eq.s32.totalorder %s33, 0
      %p167 = por %p165, %p166
      %s168 = ssub.s32 %s27, %s34
      %p169 = scmp.eq.s32.totalorder %s168, 0
      %s171 = sadd.s32 %s170, 1
      %s172 = scalar_select %p169, %s170, %s171
      %p175 = pneg %p169
      %p176 = scmp.eq.s32.totalorder %s27, 7
      %p177 = por %p175, %p176
      %p178 = scmp.ne.s32.totalorder %s170, %s173
      %p179 = scmp.eq.s32.totalorder %s27, 0
      %p180 = por %p178, %p179
      %p181 = scmp.ne.s32.totalorder %s170, %s173
      %p182 = scmp.eq.s32.totalorder %s32, 7
      %p183 = por %p181, %p182
      %p184 = scmp.ne.s32.totalorder %s173, %s174
      %p185 = scmp.eq.s32.totalorder %s32, 0
      %p186 = por %p184, %p185
      %p187 = scmp.ne.s32.totalorder %s173, %s174
      %p188 = scmp.eq.s32.totalorder %s33, 7
      %p189 = por %p187, %p188
      %p191 = scmp.ne.s32.totalorder %s174, %s190
      %p192 = scmp.eq.s32.totalorder %s33, 0
      %p193 = por %p191, %p192
      %p194 = scmp.le.s32.totalorder 1, %s27
      %p195 = scmp.lt.s32.totalorder %s27, 9
      %p196 = pnand %p194, %p195
      %p197 = pneg %p196
      // Predicated region
      $region9: #{tpu_custom_call.1} parent=5 // pred_check
        _
      $region10: #{tpu_custom_call.1} parent=5 // pred_check_branch
        %199 = sbr.rel (%p196) target = $region12
      $region11: #{tpu_custom_call.1} parent=5 // pred_region
        %s200 = ssub.s32 %s27, 1
        // Predicated region
        $region13: #{tpu_custom_call.1} parent=11 // pred_check
          %p201 = pneg %p48
        $region14: #{tpu_custom_call.1} parent=11 // pred_check_branch
          %203 = sbr.rel (%p201) target = $region16
        $region15: #{tpu_custom_call.1} parent=11 // pred_region
          %205 = vsyncadd [#allocation6], 0
          %s207 = sshll.u32 %s2, 4
          %s208 = int_to_ptr.vmem [resolvable:$true] %s207
          %210 = dma.vmem_to_smem %s208, 128, [#allocation5], [#allocation6]
        $region16: #{tpu_custom_call.1} parent=11 // pred_fallthru
          _
      $region12: #{tpu_custom_call.1} parent=5 // pred_fallthru
        _
      %p211 = scmp.lt.s32.totalorder %s27, 8
      // Predicated region
      $region17: #{tpu_custom_call.1} parent=5 // pred_check
        %p212 = pneg %p211
      $region18: #{tpu_custom_call.1} parent=5 // pred_check_branch
        %214 = sbr.rel (%p212) target = $region20
      $region19: #{tpu_custom_call.1} parent=5 // pred_region
        // Predicated region
        $region21: #{tpu_custom_call.1} parent=19 // pred_check
          %p215 = pneg %p70
        $region22: #{tpu_custom_call.1} parent=19 // pred_check_branch
          %217 = sbr.rel (%p215) target = $region24
        $region23: #{tpu_custom_call.1} parent=19 // pred_region
          %s218 = sld [smem:[#allocation3 + %s27]]
          %p219 = scmp.lt.s32.totalorder %s218, 1
          %s220 = scalar_select %p219, %s218, 1
          %s221 = smul.addr %s220, 32
          %s222 = smul.addr %s221, 8
          %s223 = scalar_lea.vmem %s3, %s222
          %s224 = sld [smem:[#allocation3 + %s27]]
        $region24: #{tpu_custom_call.1} parent=19 // pred_fallthru
          _
        // Predicated region
        $region25: #{tpu_custom_call.1} parent=19 // pred_check
          %p225 = pneg %p98
        $region26: #{tpu_custom_call.1} parent=19 // pred_check_branch
          %227 = sbr.rel (%p225) target = $region28
        $region27: #{tpu_custom_call.1} parent=19 // pred_region
          %s228 = sld [smem:[#allocation3 + %s27]]
          %p229 = scmp.lt.s32.totalorder %s228, 1
          %s230 = scalar_select %p229, %s228, 1
          %s231 = smul.addr %s230, 8
          %s232 = smul.addr %s231, 8
          %s233 = scalar_lea.vmem %s4, %s232
          %s234 = sld [smem:[#allocation3 + %s27]]
        $region28: #{tpu_custom_call.1} parent=19 // pred_fallthru
          _
        // Predicated region
        $region29: #{tpu_custom_call.1} parent=19 // pred_check
          %p235 = pneg %p126
        $region30: #{tpu_custom_call.1} parent=19 // pred_check_branch
          %237 = sbr.rel (%p235) target = $region32
        $region31: #{tpu_custom_call.1} parent=19 // pred_region
          %s238 = sld [smem:[#allocation3 + %s27]]
          %p239 = scmp.lt.s32.totalorder %s238, 1
          %s240 = scalar_select %p239, %s238, 1
          %s241 = smul.addr %s240, 2
          %s242 = smul.addr %s241, 8
          %s243 = scalar_lea.vmem %s5, %s242
          %s244 = sld [smem:[#allocation3 + %s27]]
        $region32: #{tpu_custom_call.1} parent=19 // pred_fallthru
          _
        // Predicated region
        $region33: #{tpu_custom_call.1} parent=19 // pred_check
          %p245 = pneg %p154
        $region34: #{tpu_custom_call.1} parent=19 // pred_check_branch
          %247 = sbr.rel (%p245) target = $region36
        $region35: #{tpu_custom_call.1} parent=19 // pred_region
          %s248 = sld [smem:[#allocation3 + %s27]]
          %p249 = scmp.lt.s32.totalorder %s248, 1
          %s250 = scalar_select %p249, %s248, 1
          %s251 = smul.addr %s250, 4
          %s252 = scalar_lea.vmem %s6, %s251
          %s253 = sld [smem:[#allocation3 + %s27]]
        $region36: #{tpu_custom_call.1} parent=19 // pred_fallthru
          _
      $region20: #{tpu_custom_call.1} parent=5 // pred_fallthru
        _
      %p254 = scmp.le.s32.totalorder 1, %s27
      %p255 = scmp.lt.s32.totalorder %s27, 9
      %p256 = pnand %p254, %p255
      %p257 = pneg %p256
      // Predicated region
      $region37: #{tpu_custom_call.1} parent=5 // pred_check
        _
      $region38: #{tpu_custom_call.1} parent=5 // pred_check_branch
        %259 = sbr.rel (%p256) target = $region40
      $region39: #{tpu_custom_call.1} parent=5 // pred_region
        %s260 = ssub.s32 %s27, 1
        // Predicated region
        $region41: #{tpu_custom_call.1} parent=39 // pred_check
          %p261 = pneg %p48
        $region42: #{tpu_custom_call.1} parent=39 // pred_check_branch
          %263 = sbr.rel (%p261) target = $region44
        $region43: #{tpu_custom_call.1} parent=39 // pred_region
          %265 = dma.done [#allocation6], 128
        $region44: #{tpu_custom_call.1} parent=39 // pred_fallthru
          _
        %266 = sfence
        %p267 = pneg %p48
        %p268 = pneg %p45
        %s269 = sld [smem:[#allocation3 + %s32]]
        %p270 = scmp.lt.s32.totalorder %s269, 1
        %s271 = scalar_select %p270, %s269, 1
        %s272 = smul.addr %s271, 32
        %s273 = smul.addr %s272, 8
        %s274 = scalar_lea.vmem %s3, %s273
        %p275 = pneg %p76
        %p276 = pneg %p73
        %s277 = sld [smem:[#allocation3 + %s32]]
        %p278 = scmp.lt.s32.totalorder %s277, 1
        %s279 = scalar_select %p278, %s277, 1
        %s280 = smul.addr %s279, 8
        %s281 = smul.addr %s280, 8
        %s282 = scalar_lea.vmem %s4, %s281
        %p283 = pneg %p104
        %p284 = pneg %p101
        %s285 = sld [smem:[#allocation3 + %s32]]
        %p286 = scmp.lt.s32.totalorder %s285, 1
        %s287 = scalar_select %p286, %s285, 1
        %s288 = smul.addr %s287, 2
        %s289 = smul.addr %s288, 8
        %s290 = scalar_lea.vmem %s5, %s289
        %p291 = pneg %p132
        %p292 = pneg %p129
        %s293 = sld [smem:[#allocation3 + %s32]]
        %p294 = scmp.lt.s32.totalorder %s293, 1
        %s295 = scalar_select %p294, %s293, 1
        %s296 = smul.addr %s295, 4
        %s297 = scalar_lea.vmem %s6, %s296
        %p298 = pneg %p160
        %p299 = pneg %p157
        %p300 = pneg %p186
        %p301 = pneg %p183
        %p302 = scmp.lt.s32.totalorder %s32, 7
        %s303 = scalar_select %p302, %s32, 7
        %s304 = smul.addr %s303, 2
        %s305 = smul.addr %s304, 8
        %s306 = scalar_lea.vmem %s7, %s305
        %s307 = sld [smem:[#allocation3 + %s32]]
        %p308 = scmp.lt.s32.totalorder %s307, 1
        %s309 = scalar_select %p308, %s307, 1
        %s310 = smul.addr %s309, 32
        %s311 = smul.addr %s310, 8
        %s312 = scalar_lea.vmem %s3, %s311
        %s313 = sld [smem:[#allocation3 + %s32]]
        %s314 = sld [smem:[#allocation3 + %s32]]
        %p315 = scmp.lt.s32.totalorder %s314, 1
        %s316 = scalar_select %p315, %s314, 1
        %s317 = smul.addr %s316, 8
        %s318 = smul.addr %s317, 8
        %s319 = scalar_lea.vmem %s4, %s318
        %s320 = sld [smem:[#allocation3 + %s32]]
        %s321 = sld [smem:[#allocation3 + %s32]]
        %p322 = scmp.lt.s32.totalorder %s321, 1
        %s323 = scalar_select %p322, %s321, 1
        %s324 = smul.addr %s323, 2
        %s325 = smul.addr %s324, 8
        %s326 = scalar_lea.vmem %s5, %s325
        %s327 = sld [smem:[#allocation3 + %s32]]
        %s328 = sld [smem:[#allocation3 + %s32]]
        %p329 = scmp.lt.s32.totalorder %s328, 1
        %s330 = scalar_select %p329, %s328, 1
        %s331 = smul.addr %s330, 4
        %s332 = scalar_lea.vmem %s6, %s331
        %s333 = sld [smem:[#allocation3 + %s32]]
        %p334 = scmp.lt.s32.totalorder %s32, 7
        %s335 = scalar_select %p334, %s32, 7
        %s336 = smul.addr %s335, 2
        %s337 = smul.addr %s336, 8
        %s338 = scalar_lea.vmem %s7, %s337
        %s339 = sld [smem:[#allocation4 + %s32]]
        %s340 = sshra.s32 %s32, 7
        %s341 = sand.u32 %s32, 127
        %s342 = sadd.s32 %s340, 1
        %s343 = smul.u32 %s342, 128
        %s344 = sshra.s32 %s32, 7
        %s345 = sand.u32 %s32, 127
        %s346 = sadd.s32 %s343, %s345
        %s347 = sld [smem:[#allocation5 + %s346]]
        %s348 = sadd.s32 %s340, 2
        %s349 = smul.u32 %s348, 128
        %s350 = sadd.s32 %s349, %s345
        %s351 = sld [smem:[#allocation5 + %s350]]
        %s352 = sadd.s32 %s340, 3
        %s353 = smul.u32 %s352, 128
        %s354 = sadd.s32 %s353, %s345
        %s355 = sld [smem:[#allocation5 + %s354]]
        %s356 = sadd.s32 %s340, 4
        %s357 = smul.u32 %s356, 128
        %s358 = sadd.s32 %s357, %s345
        %s359 = sld [smem:[#allocation5 + %s358]]
        %vm360 = vcmask 31744
        %361 = vst.msk [vmem:[%s338] sm:$0xff] %vm360, 0.0
        %362 = vst.msk [vmem:[%s338 + $0x8] sm:$0xff] %vm360, 0.0
        %p363 = scmp.eq.s32.totalorder %s339, 0
        // Predicated region
        $region45: #{tpu_custom_call.1} parent=39 // pred_check
          %p364 = pneg %p363
        $region46: #{tpu_custom_call.1} parent=39 // pred_check_branch
          %366 = sbr.rel (%p364) target = $region48
        $region47: #{tpu_custom_call.1} parent=39 // pred_region
          %s367 = smul.f32 %s347, 0.25
          %s368 = smul.f32 %s351, 0.25
          %s369 = smul.f32 %s355, 0.25
          %s370 = ssub.f32 %s369, %s367
          %s371 = smax.f32 %s370, 1.0
          %s372 = smul.f32 %s359, 0.25
          %s373 = ssub.f32 %s372, %s368
          %s374 = smax.f32 %s373, 1.0
          %v375 = vrcp.pop 4.0
          %v376 = vmul.f32 4.0, %v375
          %v377 = vsub.f32 1.0, %v376
          %v378 = vmul.f32 %v375, %v377
          %v379 = vadd.f32 %v375, %v378
          %vm380 = vweird.f32 %v375
          %v381 = vsel %vm380, %v375, %v379
          %s382 = vtos %v381
          %s383 = smul.f32 %s374, %s382
          %v384 = vrcp.pop 4.0
          %v385 = vmul.f32 4.0, %v384
          %v386 = vsub.f32 1.0, %v385
          %v387 = vmul.f32 %v384, %v386
          %v388 = vadd.f32 %v384, %v387
          %vm389 = vweird.f32 %v384
          %v390 = vsel %vm389, %v384, %v388
          %s391 = vtos %v390
          %s392 = smul.f32 %s371, %s391
          %v393 = vlaneseq
          %v394 = vshrl.u32 %v393, 7
          %v395 = vadd.s32 %v394, 8
          %v396 = vcvt.s32.f32 %v394
          %v397 = vcvt.s32.f32 %v395
          %v398 = vlaneseq
          %v399 = vand.u32 %v398, 127
          %v400 = vadd.s32 %v399, 128
          %v401 = vcvt.s32.f32 %v399
          %v402 = vcvt.s32.f32 %v400
          %v403 = vrcp.pop 4.0
          %v404 = vmul.f32 4.0, %v403
          %v405 = vsub.f32 1.0, %v404
          %v406 = vmul.f32 %v403, %v405
          %v407 = vadd.f32 %v403, %v406
          %vm408 = vweird.f32 %v403
          %v409 = vsel %vm408, %v403, %v407
          %v410 = vmul.f32 %v396, %v409
          %v411 = vmul.f32 %v397, %v409
          %v412 = vfloor.f32 %v410
          %v413 = vfloor.f32 %v411
          %v414 = vmul.f32 %v412, 4.0
          %v415 = vmul.f32 %v413, 4.0
          %v416 = vsub.f32 %v396, %v414
          %v417 = vsub.f32 %v397, %v415
          %v418 = vrcp.pop 16.0
          %v419 = vmul.f32 16.0, %v418
          %v420 = vsub.f32 1.0, %v419
          %v421 = vmul.f32 %v418, %v420
          %v422 = vadd.f32 %v418, %v421
          %vm423 = vweird.f32 %v418
          %v424 = vsel %vm423, %v418, %v422
          %v425 = vmul.f32 %v401, %v424
          %v426 = vmul.f32 %v402, %v424
          %v427 = vfloor.f32 %v425
          %v428 = vfloor.f32 %v426
          %v429 = vmul.f32 %v427, 16.0
          %v430 = vmul.f32 %v428, 16.0
          %v431 = vsub.f32 %v401, %v429
          %v432 = vsub.f32 %v402, %v430
          %v433 = vmul.f32 %v412, 2.0
          %v434 = vmul.f32 %v413, 2.0
          %v435 = vadd.f32 %v433, 0.5
          %v436 = vadd.f32 %v434, 0.5
          %v437 = vrcp.pop 2.0
          %v438 = vmul.f32 2.0, %v437
          %v439 = vsub.f32 1.0, %v438
          %v440 = vmul.f32 %v437, %v439
          %v441 = vadd.f32 %v437, %v440
          %vm442 = vweird.f32 %v437
          %v443 = vsel %vm442, %v437, %v441
          %s444 = vtos %v443
          %s445 = smul.f32 %s383, %s444
          %v446 = vstv %s445
          %v447 = vmul.f32 %v435, %v446
          %v448 = vmul.f32 %v436, %v446
          %v449 = vstv %s368
          %v450 = vadd.f32 %v449, %v447
          %v451 = vadd.f32 %v449, %v448
          %vm452 = vcmp.ge.f32.partialorder %v450, -1.0
          %vm453 = vcmp.ge.f32.partialorder %v451, -1.0
          %vm454 = vcmp.le.f32.partialorder %v450, 16.0
          %vm455 = vcmp.le.f32.partialorder %v451, 16.0
          %vm456 = vmand %vm452, %vm454
          %vm457 = vmand %vm453, %vm455
          %v458 = vmax.f32 %v450, 0.0
          %v459 = vmax.f32 %v451, 0.0
          %v460 = vfloor.f32 %v458
          %v461 = vfloor.f32 %v459
          %vm462 = vcmp.ge.f32.partialorder %v460, 15.0
          %vm463 = vcmp.ge.f32.partialorder %v461, 15.0
          %v464 = vsel %vm462, 15.0, %v460
          %v465 = vsel %vm463, 15.0, %v461
          %v466 = vsel %vm462, 15.0, %v458
          %v467 = vsel %vm463, 15.0, %v459
          %v468 = vadd.f32 %v464, 1.0
          %v469 = vadd.f32 %v465, 1.0
          %v470 = vsel %vm462, 15.0, %v468
          %v471 = vsel %vm463, 15.0, %v469
          %v472 = vsub.f32 %v466, %v464
          %v473 = vsub.f32 %v467, %v465
          %v474 = vsub.f32 1.0, %v472
          %v475 = vsub.f32 1.0, %v473
          %vm476 = vcmp.eq.f32.partialorder %v427, %v464
          %vm477 = vcmp.eq.f32.partialorder %v428, %v464
          %vm478 = vcmp.eq.f32.partialorder %v427, %v465
          %vm479 = vcmp.eq.f32.partialorder %v428, %v465
          %v480 = vsel %vm476, %v474, 0.0
          %v481 = vsel %vm477, %v474, 0.0
          %v482 = vsel %vm478, %v475, 0.0
          %v483 = vsel %vm479, %v475, 0.0
          %vm484 = vcmp.eq.f32.partialorder %v427, %v470
          %vm485 = vcmp.eq.f32.partialorder %v428, %v470
          %vm486 = vcmp.eq.f32.partialorder %v427, %v471
          %vm487 = vcmp.eq.f32.partialorder %v428, %v471
          %v488 = vsel %vm484, %v472, 0.0
          %v489 = vsel %vm485, %v472, 0.0
          %v490 = vsel %vm486, %v473, 0.0
          %v491 = vsel %vm487, %v473, 0.0
          %v492 = vadd.f32 %v480, %v488
          %v493 = vadd.f32 %v481, %v489
          %v494 = vadd.f32 %v482, %v490
          %v495 = vadd.f32 %v483, %v491
          %v496 = vsel %vm456, %v492, 0.0
          %v497 = vsel %vm456, %v493, 0.0
          %v498 = vsel %vm457, %v494, 0.0
          %v499 = vsel %vm457, %v495, 0.0
          %v500 = vmul.f32 %v416, 2.0
          %v501 = vmul.f32 %v417, 2.0
          %v502 = vadd.f32 %v500, 0.5
          %v503 = vadd.f32 %v501, 0.5
          %v504 = vrcp.pop 2.0
          %v505 = vmul.f32 2.0, %v504
          %v506 = vsub.f32 1.0, %v505
          %v507 = vmul.f32 %v504, %v506
          %v508 = vadd.f32 %v504, %v507
          %vm509 = vweird.f32 %v504
          %v510 = vsel %vm509, %v504, %v508
          %s511 = vtos %v510
          %s512 = smul.f32 %s392, %s511
          %v513 = vstv %s512
          %v514 = vmul.f32 %v502, %v513
          %v515 = vmul.f32 %v503, %v513
          %v516 = vstv %s367
          %v517 = vadd.f32 %v516, %v514
          %v518 = vadd.f32 %v516, %v515
          %vm519 = vcmp.ge.f32.partialorder %v517, -1.0
          %vm520 = vcmp.ge.f32.partialorder %v518, -1.0
          %vm521 = vcmp.le.f32.partialorder %v517, 16.0
          %vm522 = vcmp.le.f32.partialorder %v518, 16.0
          %vm523 = vmand %vm519, %vm521
          %vm524 = vmand %vm520, %vm522
          %v525 = vmax.f32 %v517, 0.0
          %v526 = vmax.f32 %v518, 0.0
          %v527 = vfloor.f32 %v525
          %v528 = vfloor.f32 %v526
          %vm529 = vcmp.ge.f32.partialorder %v527, 15.0
          %vm530 = vcmp.ge.f32.partialorder %v528, 15.0
          %v531 = vsel %vm529, 15.0, %v527
          %v532 = vsel %vm530, 15.0, %v528
          %v533 = vsel %vm529, 15.0, %v525
          %v534 = vsel %vm530, 15.0, %v526
          %v535 = vadd.f32 %v531, 1.0
          %v536 = vadd.f32 %v532, 1.0
          %v537 = vsel %vm529, 15.0, %v535
          %v538 = vsel %vm530, 15.0, %v536
          %v539 = vsub.f32 %v533, %v531
          %v540 = vsub.f32 %v534, %v532
          %v541 = vsub.f32 1.0, %v539
          %v542 = vsub.f32 1.0, %v540
          %vm543 = vcmp.eq.f32.partialorder %v431, %v531
          %vm544 = vcmp.eq.f32.partialorder %v432, %v531
          %vm545 = vcmp.eq.f32.partialorder %v431, %v532
          %vm546 = vcmp.eq.f32.partialorder %v432, %v532
          %v547 = vsel %vm543, %v541, 0.0
          %v548 = vsel %vm544, %v541, 0.0
          %v549 = vsel %vm545, %v542, 0.0
          %v550 = vsel %vm546, %v542, 0.0
          %vm551 = vcmp.eq.f32.partialorder %v431, %v537
          %vm552 = vcmp.eq.f32.partialorder %v432, %v537
          %vm553 = vcmp.eq.f32.partialorder %v431, %v538
          %vm554 = vcmp.eq.f32.partialorder %v432, %v538
          %v555 = vsel %vm551, %v539, 0.0
          %v556 = vsel %vm552, %v539, 0.0
          %v557 = vsel %vm553, %v540, 0.0
          %v558 = vsel %vm554, %v540, 0.0
          %v559 = vadd.f32 %v547, %v555
          %v560 = vadd.f32 %v548, %v556
          %v561 = vadd.f32 %v549, %v557
          %v562 = vadd.f32 %v550, %v558
          %v563 = vsel %vm523, %v559, 0.0
          %v564 = vsel %vm523, %v560, 0.0
          %v565 = vsel %vm524, %v561, 0.0
          %v566 = vsel %vm524, %v562, 0.0
          %v567 = vmul.f32 %v496, %v563
          %v568 = vmul.f32 %v497, %v564
          %v569 = vmul.f32 %v498, %v565
          %v570 = vmul.f32 %v499, %v566
          %v571 = vadd.f32 %v567, 0.0
          %v572 = vadd.f32 %v568, 0.0
          %v573 = vadd.f32 %v569, 0.0
          %v574 = vadd.f32 %v570, 0.0
          %v575 = vadd.f32 %v500, 1.5
          %v576 = vadd.f32 %v501, 1.5
          %v577 = vmul.f32 %v575, %v513
          %v578 = vmul.f32 %v576, %v513
          %v579 = vadd.f32 %v516, %v577
          %v580 = vadd.f32 %v516, %v578
          %vm581 = vcmp.ge.f32.partialorder %v579, -1.0
          %vm582 = vcmp.ge.f32.partialorder %v580, -1.0
          %vm583 = vcmp.le.f32.partialorder %v579, 16.0
          %vm584 = vcmp.le.f32.partialorder %v580, 16.0
          %vm585 = vmand %vm581, %vm583
          %vm586 = vmand %vm582, %vm584
          %v587 = vmax.f32 %v579, 0.0
          %v588 = vmax.f32 %v580, 0.0
          %v589 = vfloor.f32 %v587
          %v590 = vfloor.f32 %v588
          %vm591 = vcmp.ge.f32.partialorder %v589, 15.0
          %vm592 = vcmp.ge.f32.partialorder %v590, 15.0
          %v593 = vsel %vm591, 15.0, %v589
          %v594 = vsel %vm592, 15.0, %v590
          %v595 = vsel %vm591, 15.0, %v587
          %v596 = vsel %vm592, 15.0, %v588
          %v597 = vadd.f32 %v593, 1.0
          %v598 = vadd.f32 %v594, 1.0
          %v599 = vsel %vm591, 15.0, %v597
          %v600 = vsel %vm592, 15.0, %v598
          %v601 = vsub.f32 %v595, %v593
          %v602 = vsub.f32 %v596, %v594
          %v603 = vsub.f32 1.0, %v601
          %v604 = vsub.f32 1.0, %v602
          %vm605 = vcmp.eq.f32.partialorder %v431, %v593
          %vm606 = vcmp.eq.f32.partialorder %v432, %v593
          %vm607 = vcmp.eq.f32.partialorder %v431, %v594
          %vm608 = vcmp.eq.f32.partialorder %v432, %v594
          %v609 = vsel %vm605, %v603, 0.0
          %v610 = vsel %vm606, %v603, 0.0
          %v611 = vsel %vm607, %v604, 0.0
          %v612 = vsel %vm608, %v604, 0.0
          %vm613 = vcmp.eq.f32.partialorder %v431, %v599
          %vm614 = vcmp.eq.f32.partialorder %v432, %v599
          %vm615 = vcmp.eq.f32.partialorder %v431, %v600
          %vm616 = vcmp.eq.f32.partialorder %v432, %v600
          %v617 = vsel %vm613, %v601, 0.0
          %v618 = vsel %vm614, %v601, 0.0
          %v619 = vsel %vm615, %v602, 0.0
          %v620 = vsel %vm616, %v602, 0.0
          %v621 = vadd.f32 %v609, %v617
          %v622 = vadd.f32 %v610, %v618
          %v623 = vadd.f32 %v611, %v619
          %v624 = vadd.f32 %v612, %v620
          %v625 = vsel %vm585, %v621, 0.0
          %v626 = vsel %vm585, %v622, 0.0
          %v627 = vsel %vm586, %v623, 0.0
          %v628 = vsel %vm586, %v624, 0.0
          %v629 = vmul.f32 %v496, %v625
          %v630 = vmul.f32 %v497, %v626
          %v631 = vmul.f32 %v498, %v627
          %v632 = vmul.f32 %v499, %v628
          %v633 = vadd.f32 %v571, %v629
          %v634 = vadd.f32 %v572, %v630
          %v635 = vadd.f32 %v573, %v631
          %v636 = vadd.f32 %v574, %v632
          %v637 = vadd.f32 %v433, 1.5
          %v638 = vadd.f32 %v434, 1.5
          %v639 = vmul.f32 %v637, %v446
          %v640 = vmul.f32 %v638, %v446
          %v641 = vadd.f32 %v449, %v639
          %v642 = vadd.f32 %v449, %v640
          %vm643 = vcmp.ge.f32.partialorder %v641, -1.0
          %vm644 = vcmp.ge.f32.partialorder %v642, -1.0
          %vm645 = vcmp.le.f32.partialorder %v641, 16.0
          %vm646 = vcmp.le.f32.partialorder %v642, 16.0
          %vm647 = vmand %vm643, %vm645
          %vm648 = vmand %vm644, %vm646
          %v649 = vmax.f32 %v641, 0.0
          %v650 = vmax.f32 %v642, 0.0
          %v651 = vfloor.f32 %v649
          %v652 = vfloor.f32 %v650
          %vm653 = vcmp.ge.f32.partialorder %v651, 15.0
          %vm654 = vcmp.ge.f32.partialorder %v652, 15.0
          %v655 = vsel %vm653, 15.0, %v651
          %v656 = vsel %vm654, 15.0, %v652
          %v657 = vsel %vm653, 15.0, %v649
          %v658 = vsel %vm654, 15.0, %v650
          %v659 = vadd.f32 %v655, 1.0
          %v660 = vadd.f32 %v656, 1.0
          %v661 = vsel %vm653, 15.0, %v659
          %v662 = vsel %vm654, 15.0, %v660
          %v663 = vsub.f32 %v657, %v655
          %v664 = vsub.f32 %v658, %v656
          %v665 = vsub.f32 1.0, %v663
          %v666 = vsub.f32 1.0, %v664
          %vm667 = vcmp.eq.f32.partialorder %v427, %v655
          %vm668 = vcmp.eq.f32.partialorder %v428, %v655
          %vm669 = vcmp.eq.f32.partialorder %v427, %v656
          %vm670 = vcmp.eq.f32.partialorder %v428, %v656
          %v671 = vsel %vm667, %v665, 0.0
          %v672 = vsel %vm668, %v665, 0.0
          %v673 = vsel %vm669, %v666, 0.0
          %v674 = vsel %vm670, %v666, 0.0
          %vm675 = vcmp.eq.f32.partialorder %v427, %v661
          %vm676 = vcmp.eq.f32.partialorder %v428, %v661
          %vm677 = vcmp.eq.f32.partialorder %v427, %v662
          %vm678 = vcmp.eq.f32.partialorder %v428, %v662
          %v679 = vsel %vm675, %v663, 0.0
          %v680 = vsel %vm676, %v663, 0.0
          %v681 = vsel %vm677, %v664, 0.0
          %v682 = vsel %vm678, %v664, 0.0
          %v683 = vadd.f32 %v671, %v679
          %v684 = vadd.f32 %v672, %v680
          %v685 = vadd.f32 %v673, %v681
          %v686 = vadd.f32 %v674, %v682
          %v687 = vsel %vm647, %v683, 0.0
          %v688 = vsel %vm647, %v684, 0.0
          %v689 = vsel %vm648, %v685, 0.0
          %v690 = vsel %vm648, %v686, 0.0
          %v691 = vmul.f32 %v687, %v563
          %v692 = vmul.f32 %v688, %v564
          %v693 = vmul.f32 %v689, %v565
          %v694 = vmul.f32 %v690, %v566
          %v695 = vadd.f32 %v633, %v691
          %v696 = vadd.f32 %v634, %v692
          %v697 = vadd.f32 %v635, %v693
          %v698 = vadd.f32 %v636, %v694
          %v699 = vmul.f32 %v687, %v625
          %v700 = vmul.f32 %v688, %v626
          %v701 = vmul.f32 %v689, %v627
          %v702 = vmul.f32 %v690, %v628
          %v703 = vadd.f32 %v695, %v699
          %v704 = vadd.f32 %v696, %v700
          %v705 = vadd.f32 %v697, %v701
          %v706 = vadd.f32 %v698, %v702
          %v707 = vmul.f32 %v703, 0.25
          %v708 = vmul.f32 %v704, 0.25
          %v709 = vmul.f32 %v705, 0.25
          %v710 = vmul.f32 %v706, 0.25
          %v711 = vld [vmem:[%s312] sm:$0xff]
          %v712 = vld [vmem:[%s312 + $0x8] sm:$0xff]
          %v713 = vld [vmem:[%s312 + $0x10] sm:$0xff]
          %v714 = vld [vmem:[%s312 + $0x18] sm:$0xff]
          %v715 = vld [vmem:[%s312 + $0x20] sm:$0xff]
          %v716 = vld [vmem:[%s312 + $0x28] sm:$0xff]
          %v717 = vld [vmem:[%s312 + $0x30] sm:$0xff]
          %v718 = vld [vmem:[%s312 + $0x38] sm:$0xff]
          %v719 = vld [vmem:[%s312 + $0x40] sm:$0xff]
          %v720 = vld [vmem:[%s312 + $0x48] sm:$0xff]
          %v721 = vld [vmem:[%s312 + $0x50] sm:$0xff]
          %v722 = vld [vmem:[%s312 + $0x58] sm:$0xff]
          %v723 = vld [vmem:[%s312 + $0x60] sm:$0xff]
          %v724 = vld [vmem:[%s312 + $0x68] sm:$0xff]
          %v725 = vld [vmem:[%s312 + $0x70] sm:$0xff]
          %v726 = vld [vmem:[%s312 + $0x78] sm:$0xff]
          %v727 = vld [vmem:[%s312 + $0x80] sm:$0xff]
          %v728 = vld [vmem:[%s312 + $0x88] sm:$0xff]
          %v729 = vld [vmem:[%s312 + $0x90] sm:$0xff]
          %v730 = vld [vmem:[%s312 + $0x98] sm:$0xff]
          %v731 = vld [vmem:[%s312 + $0xa0] sm:$0xff]
          %v732 = vld [vmem:[%s312 + $0xa8] sm:$0xff]
          %v733 = vld [vmem:[%s312 + $0xb0] sm:$0xff]
          %v734 = vld [vmem:[%s312 + $0xb8] sm:$0xff]
          %v735 = vld [vmem:[%s312 + $0xc0] sm:$0xff]
          %v736 = vld [vmem:[%s312 + $0xc8] sm:$0xff]
          %v737 = vld [vmem:[%s312 + $0xd0] sm:$0xff]
          %v738 = vld [vmem:[%s312 + $0xd8] sm:$0xff]
          %v739 = vld [vmem:[%s312 + $0xe0] sm:$0xff]
          %v740 = vld [vmem:[%s312 + $0xe8] sm:$0xff]
          %v741 = vld [vmem:[%s312 + $0xf0] sm:$0xff]
          %v742 = vld [vmem:[%s312 + $0xf8] sm:$0xff]
          %743 = vmatpush.msra.mxu0 %v726
          %744 = vmatpush.msra.mxu0 %v725
          %745 = vmatpush.msra.mxu0 %v724
          %746 = vmatpush.msra.mxu0 %v723
          %747 = vmatpush.msra.mxu0 %v722
          %748 = vmatpush.msra.mxu0 %v721
          %749 = vmatpush.msra.mxu0 %v720
          %750 = vmatpush.msra.mxu0 %v719
          %751 = vmatpush.msra.mxu0 %v718
          %752 = vmatpush.msra.mxu0 %v717
          %753 = vmatpush.msra.mxu0 %v716
          %754 = vmatpush.msra.mxu0 %v715
          %755 = vmatpush.msra.mxu0 %v714
          %756 = vmatpush.msra.mxu0 %v713
          %757 = vmatpush.msra.mxu0 %v712
          %758 = vmatpush.msra.mxu0 %v711
          %759 = vmatmul.f32.gmra.mxu0 %v707
          %v760 = vpop.f32.mrf.mxu0
          %v761 = vadd.f32 0.0, %v760
          %762 = vmatmul.f32.gmra.mxu0 %v709
          %v763 = vpop.f32.mrf.mxu0
          %v764 = vadd.f32 0.0, %v763
          %765 = vdwg.mxu0
          %766 = vmatpush.msra.mxu0 %v742
          %767 = vmatpush.msra.mxu0 %v741
          %768 = vmatpush.msra.mxu0 %v740
          %769 = vmatpush.msra.mxu0 %v739
          %770 = vmatpush.msra.mxu0 %v738
          %771 = vmatpush.msra.mxu0 %v737
          %772 = vmatpush.msra.mxu0 %v736
          %773 = vmatpush.msra.mxu0 %v735
          %774 = vmatpush.msra.mxu0 %v734
          %775 = vmatpush.msra.mxu0 %v733
          %776 = vmatpush.msra.mxu0 %v732
          %777 = vmatpush.msra.mxu0 %v731
          %778 = vmatpush.msra.mxu0 %v730
          %779 = vmatpush.msra.mxu0 %v729
          %780 = vmatpush.msra.mxu0 %v728
          %781 = vmatpush.msra.mxu0 %v727
          %782 = vmatmul.f32.gmra.mxu0 %v708
          %v783 = vpop.f32.mrf.mxu0
          %v784 = vadd.f32 %v761, %v783
          %785 = vmatmul.f32.gmra.mxu0 %v710
          %v786 = vpop.f32.mrf.mxu0
          %v787 = vadd.f32 %v764, %v786
          %788 = vdwg.mxu0
          %789 = vst.msk [vmem:[%s338] sm:$0xff] %vm360, %v784
          %790 = vst.msk [vmem:[%s338 + $0x8] sm:$0xff] %vm360, %v787
        $region48: #{tpu_custom_call.1} parent=39 // pred_fallthru
          _
        %p791 = scmp.eq.s32.totalorder %s339, 1
        // Predicated region
        $region49: #{tpu_custom_call.1} parent=39 // pred_check
          %p792 = pneg %p791
        $region50: #{tpu_custom_call.1} parent=39 // pred_check_branch
          %794 = sbr.rel (%p792) target = $region52
        $region51: #{tpu_custom_call.1} parent=39 // pred_region
          %s795 = smul.f32 %s347, 0.125
          %s796 = smul.f32 %s351, 0.125
          %s797 = smul.f32 %s355, 0.125
          %s798 = ssub.f32 %s797, %s795
          %s799 = smax.f32 %s798, 1.0
          %s800 = smul.f32 %s359, 0.125
          %s801 = ssub.f32 %s800, %s796
          %s802 = smax.f32 %s801, 1.0
          %v803 = vrcp.pop 4.0
          %v804 = vmul.f32 4.0, %v803
          %v805 = vsub.f32 1.0, %v804
          %v806 = vmul.f32 %v803, %v805
          %v807 = vadd.f32 %v803, %v806
          %vm808 = vweird.f32 %v803
          %v809 = vsel %vm808, %v803, %v807
          %s810 = vtos %v809
          %s811 = smul.f32 %s802, %s810
          %v812 = vrcp.pop 4.0
          %v813 = vmul.f32 4.0, %v812
          %v814 = vsub.f32 1.0, %v813
          %v815 = vmul.f32 %v812, %v814
          %v816 = vadd.f32 %v812, %v815
          %vm817 = vweird.f32 %v812
          %v818 = vsel %vm817, %v812, %v816
          %s819 = vtos %v818
          %s820 = smul.f32 %s799, %s819
          %v821 = vlaneseq
          %v822 = vshrl.u32 %v821, 7
          %v823 = vadd.s32 %v822, 8
          %v824 = vcvt.s32.f32 %v822
          %v825 = vcvt.s32.f32 %v823
          %v826 = vlaneseq
          %v827 = vand.u32 %v826, 127
          %v828 = vcvt.s32.f32 %v827
          %v829 = vrcp.pop 4.0
          %v830 = vmul.f32 4.0, %v829
          %v831 = vsub.f32 1.0, %v830
          %v832 = vmul.f32 %v829, %v831
          %v833 = vadd.f32 %v829, %v832
          %vm834 = vweird.f32 %v829
          %v835 = vsel %vm834, %v829, %v833
          %v836 = vmul.f32 %v824, %v835
          %v837 = vmul.f32 %v825, %v835
          %v838 = vfloor.f32 %v836
          %v839 = vfloor.f32 %v837
          %v840 = vmul.f32 %v838, 4.0
          %v841 = vmul.f32 %v839, 4.0
          %v842 = vsub.f32 %v824, %v840
          %v843 = vsub.f32 %v825, %v841
          %v844 = vrcp.pop 8.0
          %v845 = vmul.f32 8.0, %v844
          %v846 = vsub.f32 1.0, %v845
          %v847 = vmul.f32 %v844, %v846
          %v848 = vadd.f32 %v844, %v847
          %vm849 = vweird.f32 %v844
          %v850 = vsel %vm849, %v844, %v848
          %v851 = vmul.f32 %v828, %v850
          %v852 = vfloor.f32 %v851
          %v853 = vmul.f32 %v852, 8.0
          %v854 = vsub.f32 %v828, %v853
          %v855 = vmul.f32 %v838, 2.0
          %v856 = vmul.f32 %v839, 2.0
          %v857 = vadd.f32 %v855, 0.5
          %v858 = vadd.f32 %v856, 0.5
          %v859 = vrcp.pop 2.0
          %v860 = vmul.f32 2.0, %v859
          %v861 = vsub.f32 1.0, %v860
          %v862 = vmul.f32 %v859, %v861
          %v863 = vadd.f32 %v859, %v862
          %vm864 = vweird.f32 %v859
          %v865 = vsel %vm864, %v859, %v863
          %s866 = vtos %v865
          %s867 = smul.f32 %s811, %s866
          %v868 = vstv %s867
          %v869 = vmul.f32 %v857, %v868
          %v870 = vmul.f32 %v858, %v868
          %v871 = vstv %s796
          %v872 = vadd.f32 %v871, %v869
          %v873 = vadd.f32 %v871, %v870
          %vm874 = vcmp.ge.f32.partialorder %v872, -1.0
          %vm875 = vcmp.ge.f32.partialorder %v873, -1.0
          %vm876 = vcmp.le.f32.partialorder %v872, 8.0
          %vm877 = vcmp.le.f32.partialorder %v873, 8.0
          %vm878 = vmand %vm874, %vm876
          %vm879 = vmand %vm875, %vm877
          %v880 = vmax.f32 %v872, 0.0
          %v881 = vmax.f32 %v873, 0.0
          %v882 = vfloor.f32 %v880
          %v883 = vfloor.f32 %v881
          %vm884 = vcmp.ge.f32.partialorder %v882, 7.0
          %vm885 = vcmp.ge.f32.partialorder %v883, 7.0
          %v886 = vsel %vm884, 7.0, %v882
          %v887 = vsel %vm885, 7.0, %v883
          %v888 = vsel %vm884, 7.0, %v880
          %v889 = vsel %vm885, 7.0, %v881
          %v890 = vadd.f32 %v886, 1.0
          %v891 = vadd.f32 %v887, 1.0
          %v892 = vsel %vm884, 7.0, %v890
          %v893 = vsel %vm885, 7.0, %v891
          %v894 = vsub.f32 %v888, %v886
          %v895 = vsub.f32 %v889, %v887
          %v896 = vsub.f32 1.0, %v894
          %v897 = vsub.f32 1.0, %v895
          %vm898 = vcmp.eq.f32.partialorder %v852, %v886
          %vm899 = vcmp.eq.f32.partialorder %v852, %v887
          %v900 = vsel %vm898, %v896, 0.0
          %v901 = vsel %vm899, %v897, 0.0
          %vm902 = vcmp.eq.f32.partialorder %v852, %v892
          %vm903 = vcmp.eq.f32.partialorder %v852, %v893
          %v904 = vsel %vm902, %v894, 0.0
          %v905 = vsel %vm903, %v895, 0.0
          %v906 = vadd.f32 %v900, %v904
          %v907 = vadd.f32 %v901, %v905
          %v908 = vsel %vm878, %v906, 0.0
          %v909 = vsel %vm879, %v907, 0.0
          %v910 = vmul.f32 %v842, 2.0
          %v911 = vmul.f32 %v843, 2.0
          %v912 = vadd.f32 %v910, 0.5
          %v913 = vadd.f32 %v911, 0.5
          %v914 = vrcp.pop 2.0
          %v915 = vmul.f32 2.0, %v914
          %v916 = vsub.f32 1.0, %v915
          %v917 = vmul.f32 %v914, %v916
          %v918 = vadd.f32 %v914, %v917
          %vm919 = vweird.f32 %v914
          %v920 = vsel %vm919, %v914, %v918
          %s921 = vtos %v920
          %s922 = smul.f32 %s820, %s921
          %v923 = vstv %s922
          %v924 = vmul.f32 %v912, %v923
          %v925 = vmul.f32 %v913, %v923
          %v926 = vstv %s795
          %v927 = vadd.f32 %v926, %v924
          %v928 = vadd.f32 %v926, %v925
          %vm929 = vcmp.ge.f32.partialorder %v927, -1.0
          %vm930 = vcmp.ge.f32.partialorder %v928, -1.0
          %vm931 = vcmp.le.f32.partialorder %v927, 8.0
          %vm932 = vcmp.le.f32.partialorder %v928, 8.0
          %vm933 = vmand %vm929, %vm931
          %vm934 = vmand %vm930, %vm932
          %v935 = vmax.f32 %v927, 0.0
          %v936 = vmax.f32 %v928, 0.0
          %v937 = vfloor.f32 %v935
          %v938 = vfloor.f32 %v936
          %vm939 = vcmp.ge.f32.partialorder %v937, 7.0
          %vm940 = vcmp.ge.f32.partialorder %v938, 7.0
          %v941 = vsel %vm939, 7.0, %v937
          %v942 = vsel %vm940, 7.0, %v938
          %v943 = vsel %vm939, 7.0, %v935
          %v944 = vsel %vm940, 7.0, %v936
          %v945 = vadd.f32 %v941, 1.0
          %v946 = vadd.f32 %v942, 1.0
          %v947 = vsel %vm939, 7.0, %v945
          %v948 = vsel %vm940, 7.0, %v946
          %v949 = vsub.f32 %v943, %v941
          %v950 = vsub.f32 %v944, %v942
          %v951 = vsub.f32 1.0, %v949
          %v952 = vsub.f32 1.0, %v950
          %vm953 = vcmp.eq.f32.partialorder %v854, %v941
          %vm954 = vcmp.eq.f32.partialorder %v854, %v942
          %v955 = vsel %vm953, %v951, 0.0
          %v956 = vsel %vm954, %v952, 0.0
          %vm957 = vcmp.eq.f32.partialorder %v854, %v947
          %vm958 = vcmp.eq.f32.partialorder %v854, %v948
          %v959 = vsel %vm957, %v949, 0.0
          %v960 = vsel %vm958, %v950, 0.0
          %v961 = vadd.f32 %v955, %v959
          %v962 = vadd.f32 %v956, %v960
          %v963 = vsel %vm933, %v961, 0.0
          %v964 = vsel %vm934, %v962, 0.0
          %v965 = vmul.f32 %v908, %v963
          %v966 = vmul.f32 %v909, %v964
          %v967 = vadd.f32 %v965, 0.0
          %v968 = vadd.f32 %v966, 0.0
          %v969 = vadd.f32 %v910, 1.5
          %v970 = vadd.f32 %v911, 1.5
          %v971 = vmul.f32 %v969, %v923
          %v972 = vmul.f32 %v970, %v923
          %v973 = vadd.f32 %v926, %v971
          %v974 = vadd.f32 %v926, %v972
          %vm975 = vcmp.ge.f32.partialorder %v973, -1.0
          %vm976 = vcmp.ge.f32.partialorder %v974, -1.0
          %vm977 = vcmp.le.f32.partialorder %v973, 8.0
          %vm978 = vcmp.le.f32.partialorder %v974, 8.0
          %vm979 = vmand %vm975, %vm977
          %vm980 = vmand %vm976, %vm978
          %v981 = vmax.f32 %v973, 0.0
          %v982 = vmax.f32 %v974, 0.0
          %v983 = vfloor.f32 %v981
          %v984 = vfloor.f32 %v982
          %vm985 = vcmp.ge.f32.partialorder %v983, 7.0
          %vm986 = vcmp.ge.f32.partialorder %v984, 7.0
          %v987 = vsel %vm985, 7.0, %v983
          %v988 = vsel %vm986, 7.0, %v984
          %v989 = vsel %vm985, 7.0, %v981
          %v990 = vsel %vm986, 7.0, %v982
          %v991 = vadd.f32 %v987, 1.0
          %v992 = vadd.f32 %v988, 1.0
          %v993 = vsel %vm985, 7.0, %v991
          %v994 = vsel %vm986, 7.0, %v992
          %v995 = vsub.f32 %v989, %v987
          %v996 = vsub.f32 %v990, %v988
          %v997 = vsub.f32 1.0, %v995
          %v998 = vsub.f32 1.0, %v996
          %vm999 = vcmp.eq.f32.partialorder %v854, %v987
          %vm1000 = vcmp.eq.f32.partialorder %v854, %v988
          %v1001 = vsel %vm999, %v997, 0.0
          %v1002 = vsel %vm1000, %v998, 0.0
          %vm1003 = vcmp.eq.f32.partialorder %v854, %v993
          %vm1004 = vcmp.eq.f32.partialorder %v854, %v994
          %v1005 = vsel %vm1003, %v995, 0.0
          %v1006 = vsel %vm1004, %v996, 0.0
          %v1007 = vadd.f32 %v1001, %v1005
          %v1008 = vadd.f32 %v1002, %v1006
          %v1009 = vsel %vm979, %v1007, 0.0
          %v1010 = vsel %vm980, %v1008, 0.0
          %v1011 = vmul.f32 %v908, %v1009
          %v1012 = vmul.f32 %v909, %v1010
          %v1013 = vadd.f32 %v967, %v1011
          %v1014 = vadd.f32 %v968, %v1012
          %v1015 = vadd.f32 %v855, 1.5
          %v1016 = vadd.f32 %v856, 1.5
          %v1017 = vmul.f32 %v1015, %v868
          %v1018 = vmul.f32 %v1016, %v868
          %v1019 = vadd.f32 %v871, %v1017
          %v1020 = vadd.f32 %v871, %v1018
          %vm1021 = vcmp.ge.f32.partialorder %v1019, -1.0
          %vm1022 = vcmp.ge.f32.partialorder %v1020, -1.0
          %vm1023 = vcmp.le.f32.partialorder %v1019, 8.0
          %vm1024 = vcmp.le.f32.partialorder %v1020, 8.0
          %vm1025 = vmand %vm1021, %vm1023
          %vm1026 = vmand %vm1022, %vm1024
          %v1027 = vmax.f32 %v1019, 0.0
          %v1028 = vmax.f32 %v1020, 0.0
          %v1029 = vfloor.f32 %v1027
          %v1030 = vfloor.f32 %v1028
          %vm1031 = vcmp.ge.f32.partialorder %v1029, 7.0
          %vm1032 = vcmp.ge.f32.partialorder %v1030, 7.0
          %v1033 = vsel %vm1031, 7.0, %v1029
          %v1034 = vsel %vm1032, 7.0, %v1030
          %v1035 = vsel %vm1031, 7.0, %v1027
          %v1036 = vsel %vm1032, 7.0, %v1028
          %v1037 = vadd.f32 %v1033, 1.0
          %v1038 = vadd.f32 %v1034, 1.0
          %v1039 = vsel %vm1031, 7.0, %v1037
          %v1040 = vsel %vm1032, 7.0, %v1038
          %v1041 = vsub.f32 %v1035, %v1033
          %v1042 = vsub.f32 %v1036, %v1034
          %v1043 = vsub.f32 1.0, %v1041
          %v1044 = vsub.f32 1.0, %v1042
          %vm1045 = vcmp.eq.f32.partialorder %v852, %v1033
          %vm1046 = vcmp.eq.f32.partialorder %v852, %v1034
          %v1047 = vsel %vm1045, %v1043, 0.0
          %v1048 = vsel %vm1046, %v1044, 0.0
          %vm1049 = vcmp.eq.f32.partialorder %v852, %v1039
          %vm1050 = vcmp.eq.f32.partialorder %v852, %v1040
          %v1051 = vsel %vm1049, %v1041, 0.0
          %v1052 = vsel %vm1050, %v1042, 0.0
          %v1053 = vadd.f32 %v1047, %v1051
          %v1054 = vadd.f32 %v1048, %v1052
          %v1055 = vsel %vm1025, %v1053, 0.0
          %v1056 = vsel %vm1026, %v1054, 0.0
          %v1057 = vmul.f32 %v1055, %v963
          %v1058 = vmul.f32 %v1056, %v964
          %v1059 = vadd.f32 %v1013, %v1057
          %v1060 = vadd.f32 %v1014, %v1058
          %v1061 = vmul.f32 %v1055, %v1009
          %v1062 = vmul.f32 %v1056, %v1010
          %v1063 = vadd.f32 %v1059, %v1061
          %v1064 = vadd.f32 %v1060, %v1062
          %v1065 = vmul.f32 %v1063, 0.25
          %v1066 = vmul.f32 %v1064, 0.25
          %v1067 = vld [vmem:[%s319] sm:$0xff]
          %v1068 = vld [vmem:[%s319 + $0x8] sm:$0xff]
          %v1069 = vld [vmem:[%s319 + $0x10] sm:$0xff]
          %v1070 = vld [vmem:[%s319 + $0x18] sm:$0xff]
          %v1071 = vld [vmem:[%s319 + $0x20] sm:$0xff]
          %v1072 = vld [vmem:[%s319 + $0x28] sm:$0xff]
          %v1073 = vld [vmem:[%s319 + $0x30] sm:$0xff]
          %v1074 = vld [vmem:[%s319 + $0x38] sm:$0xff]
          %vm1075 = vcmask 523264
          %v1077 = vsel %vm1075, %v1065, 0
          %v1080 = vsel %vm1075, %v1066, 0
          %1082 = vmatpush.msra.mxu0 0.0
          %1083 = vmatpush.msra.mxu0 0.0
          %1084 = vmatpush.msra.mxu0 0.0
          %1085 = vmatpush.msra.mxu0 0.0
          %1086 = vmatpush.msra.mxu0 0.0
          %1087 = vmatpush.msra.mxu0 0.0
          %1088 = vmatpush.msra.mxu0 0.0
          %1089 = vmatpush.msra.mxu0 0.0
          %1090 = vmatpush.msra.mxu0 %v1074
          %1091 = vmatpush.msra.mxu0 %v1073
          %1092 = vmatpush.msra.mxu0 %v1072
          %1093 = vmatpush.msra.mxu0 %v1071
          %1094 = vmatpush.msra.mxu0 %v1070
          %1095 = vmatpush.msra.mxu0 %v1069
          %1096 = vmatpush.msra.mxu0 %v1068
          %1097 = vmatpush.msra.mxu0 %v1067
          %1098 = vmatmul.f32.gmra.mxu0 %v1077
          %v1099 = vpop.f32.mrf.mxu0
          %v1100 = vadd.f32 0.0, %v1099
          %1101 = vmatmul.f32.gmra.mxu0 %v1080
          %v1102 = vpop.f32.mrf.mxu0
          %v1103 = vadd.f32 0.0, %v1102
          %1104 = vdwg.mxu0
          %1105 = vst.msk [vmem:[%s338] sm:$0xff] %vm360, %v1100
          %1106 = vst.msk [vmem:[%s338 + $0x8] sm:$0xff] %vm360, %v1103
        $region52: #{tpu_custom_call.1} parent=39 // pred_fallthru
          _
        %p1107 = scmp.eq.s32.totalorder %s339, 2
        // Predicated region
        $region53: #{tpu_custom_call.1} parent=39 // pred_check
          %p1108 = pneg %p1107
        $region54: #{tpu_custom_call.1} parent=39 // pred_check_branch
          %1110 = sbr.rel (%p1108) target = $region56
        $region55: #{tpu_custom_call.1} parent=39 // pred_region
          %s1111 = smul.f32 %s347, 0.0625
          %s1112 = smul.f32 %s351, 0.0625
          %s1113 = smul.f32 %s355, 0.0625
          %s1114 = ssub.f32 %s1113, %s1111
          %s1115 = smax.f32 %s1114, 1.0
          %s1116 = smul.f32 %s359, 0.0625
          %s1117 = ssub.f32 %s1116, %s1112
          %s1118 = smax.f32 %s1117, 1.0
          %v1119 = vrcp.pop 4.0
          %v1120 = vmul.f32 4.0, %v1119
          %v1121 = vsub.f32 1.0, %v1120
          %v1122 = vmul.f32 %v1119, %v1121
          %v1123 = vadd.f32 %v1119, %v1122
          %vm1124 = vweird.f32 %v1119
          %v1125 = vsel %vm1124, %v1119, %v1123
          %s1126 = vtos %v1125
          %s1127 = smul.f32 %s1118, %s1126
          %v1128 = vrcp.pop 4.0
          %v1129 = vmul.f32 4.0, %v1128
          %v1130 = vsub.f32 1.0, %v1129
          %v1131 = vmul.f32 %v1128, %v1130
          %v1132 = vadd.f32 %v1128, %v1131
          %vm1133 = vweird.f32 %v1128
          %v1134 = vsel %vm1133, %v1128, %v1132
          %s1135 = vtos %v1134
          %s1136 = smul.f32 %s1115, %s1135
          %v1137 = vlaneseq
          %v1138 = vshrl.u32 %v1137, 7
          %v1139 = vadd.s32 %v1138, 8
          %v1140 = vcvt.s32.f32 %v1138
          %v1141 = vcvt.s32.f32 %v1139
          %v1142 = vlaneseq
          %v1143 = vand.u32 %v1142, 127
          %v1144 = vcvt.s32.f32 %v1143
          %v1145 = vrcp.pop 4.0
          %v1146 = vmul.f32 4.0, %v1145
          %v1147 = vsub.f32 1.0, %v1146
          %v1148 = vmul.f32 %v1145, %v1147
          %v1149 = vadd.f32 %v1145, %v1148
          %vm1150 = vweird.f32 %v1145
          %v1151 = vsel %vm1150, %v1145, %v1149
          %v1152 = vmul.f32 %v1140, %v1151
          %v1153 = vmul.f32 %v1141, %v1151
          %v1154 = vfloor.f32 %v1152
          %v1155 = vfloor.f32 %v1153
          %v1156 = vmul.f32 %v1154, 4.0
          %v1157 = vmul.f32 %v1155, 4.0
          %v1158 = vsub.f32 %v1140, %v1156
          %v1159 = vsub.f32 %v1141, %v1157
          %v1160 = vmul.f32 %v1144, %v1151
          %v1161 = vfloor.f32 %v1160
          %v1162 = vmul.f32 %v1161, 4.0
          %v1163 = vsub.f32 %v1144, %v1162
          %v1164 = vmul.f32 %v1154, 2.0
          %v1165 = vmul.f32 %v1155, 2.0
          %v1166 = vadd.f32 %v1164, 0.5
          %v1167 = vadd.f32 %v1165, 0.5
          %v1168 = vrcp.pop 2.0
          %v1169 = vmul.f32 2.0, %v1168
          %v1170 = vsub.f32 1.0, %v1169
          %v1171 = vmul.f32 %v1168, %v1170
          %v1172 = vadd.f32 %v1168, %v1171
          %vm1173 = vweird.f32 %v1168
          %v1174 = vsel %vm1173, %v1168, %v1172
          %s1175 = vtos %v1174
          %s1176 = smul.f32 %s1127, %s1175
          %v1177 = vstv %s1176
          %v1178 = vmul.f32 %v1166, %v1177
          %v1179 = vmul.f32 %v1167, %v1177
          %v1180 = vstv %s1112
          %v1181 = vadd.f32 %v1180, %v1178
          %v1182 = vadd.f32 %v1180, %v1179
          %vm1183 = vcmp.ge.f32.partialorder %v1181, -1.0
          %vm1184 = vcmp.ge.f32.partialorder %v1182, -1.0
          %vm1185 = vcmp.le.f32.partialorder %v1181, 4.0
          %vm1186 = vcmp.le.f32.partialorder %v1182, 4.0
          %vm1187 = vmand %vm1183, %vm1185
          %vm1188 = vmand %vm1184, %vm1186
          %v1189 = vmax.f32 %v1181, 0.0
          %v1190 = vmax.f32 %v1182, 0.0
          %v1191 = vfloor.f32 %v1189
          %v1192 = vfloor.f32 %v1190
          %vm1193 = vcmp.ge.f32.partialorder %v1191, 3.0
          %vm1194 = vcmp.ge.f32.partialorder %v1192, 3.0
          %v1195 = vsel %vm1193, 3.0, %v1191
          %v1196 = vsel %vm1194, 3.0, %v1192
          %v1197 = vsel %vm1193, 3.0, %v1189
          %v1198 = vsel %vm1194, 3.0, %v1190
          %v1199 = vadd.f32 %v1195, 1.0
          %v1200 = vadd.f32 %v1196, 1.0
          %v1201 = vsel %vm1193, 3.0, %v1199
          %v1202 = vsel %vm1194, 3.0, %v1200
          %v1203 = vsub.f32 %v1197, %v1195
          %v1204 = vsub.f32 %v1198, %v1196
          %v1205 = vsub.f32 1.0, %v1203
          %v1206 = vsub.f32 1.0, %v1204
          %vm1207 = vcmp.eq.f32.partialorder %v1161, %v1195
          %vm1208 = vcmp.eq.f32.partialorder %v1161, %v1196
          %v1209 = vsel %vm1207, %v1205, 0.0
          %v1210 = vsel %vm1208, %v1206, 0.0
          %vm1211 = vcmp.eq.f32.partialorder %v1161, %v1201
          %vm1212 = vcmp.eq.f32.partialorder %v1161, %v1202
          %v1213 = vsel %vm1211, %v1203, 0.0
          %v1214 = vsel %vm1212, %v1204, 0.0
          %v1215 = vadd.f32 %v1209, %v1213
          %v1216 = vadd.f32 %v1210, %v1214
          %v1217 = vsel %vm1187, %v1215, 0.0
          %v1218 = vsel %vm1188, %v1216, 0.0
          %v1219 = vmul.f32 %v1158, 2.0
          %v1220 = vmul.f32 %v1159, 2.0
          %v1221 = vadd.f32 %v1219, 0.5
          %v1222 = vadd.f32 %v1220, 0.5
          %v1223 = vrcp.pop 2.0
          %v1224 = vmul.f32 2.0, %v1223
          %v1225 = vsub.f32 1.0, %v1224
          %v1226 = vmul.f32 %v1223, %v1225
          %v1227 = vadd.f32 %v1223, %v1226
          %vm1228 = vweird.f32 %v1223
          %v1229 = vsel %vm1228, %v1223, %v1227
          %s1230 = vtos %v1229
          %s1231 = smul.f32 %s1136, %s1230
          %v1232 = vstv %s1231
          %v1233 = vmul.f32 %v1221, %v1232
          %v1234 = vmul.f32 %v1222, %v1232
          %v1235 = vstv %s1111
          %v1236 = vadd.f32 %v1235, %v1233
          %v1237 = vadd.f32 %v1235, %v1234
          %vm1238 = vcmp.ge.f32.partialorder %v1236, -1.0
          %vm1239 = vcmp.ge.f32.partialorder %v1237, -1.0
          %vm1240 = vcmp.le.f32.partialorder %v1236, 4.0
          %vm1241 = vcmp.le.f32.partialorder %v1237, 4.0
          %vm1242 = vmand %vm1238, %vm1240
          %vm1243 = vmand %vm1239, %vm1241
          %v1244 = vmax.f32 %v1236, 0.0
          %v1245 = vmax.f32 %v1237, 0.0
          %v1246 = vfloor.f32 %v1244
          %v1247 = vfloor.f32 %v1245
          %vm1248 = vcmp.ge.f32.partialorder %v1246, 3.0
          %vm1249 = vcmp.ge.f32.partialorder %v1247, 3.0
          %v1250 = vsel %vm1248, 3.0, %v1246
          %v1251 = vsel %vm1249, 3.0, %v1247
          %v1252 = vsel %vm1248, 3.0, %v1244
          %v1253 = vsel %vm1249, 3.0, %v1245
          %v1254 = vadd.f32 %v1250, 1.0
          %v1255 = vadd.f32 %v1251, 1.0
          %v1256 = vsel %vm1248, 3.0, %v1254
          %v1257 = vsel %vm1249, 3.0, %v1255
          %v1258 = vsub.f32 %v1252, %v1250
          %v1259 = vsub.f32 %v1253, %v1251
          %v1260 = vsub.f32 1.0, %v1258
          %v1261 = vsub.f32 1.0, %v1259
          %vm1262 = vcmp.eq.f32.partialorder %v1163, %v1250
          %vm1263 = vcmp.eq.f32.partialorder %v1163, %v1251
          %v1264 = vsel %vm1262, %v1260, 0.0
          %v1265 = vsel %vm1263, %v1261, 0.0
          %vm1266 = vcmp.eq.f32.partialorder %v1163, %v1256
          %vm1267 = vcmp.eq.f32.partialorder %v1163, %v1257
          %v1268 = vsel %vm1266, %v1258, 0.0
          %v1269 = vsel %vm1267, %v1259, 0.0
          %v1270 = vadd.f32 %v1264, %v1268
          %v1271 = vadd.f32 %v1265, %v1269
          %v1272 = vsel %vm1242, %v1270, 0.0
          %v1273 = vsel %vm1243, %v1271, 0.0
          %v1274 = vmul.f32 %v1217, %v1272
          %v1275 = vmul.f32 %v1218, %v1273
          %v1276 = vadd.f32 %v1274, 0.0
          %v1277 = vadd.f32 %v1275, 0.0
          %v1278 = vadd.f32 %v1219, 1.5
          %v1279 = vadd.f32 %v1220, 1.5
          %v1280 = vmul.f32 %v1278, %v1232
          %v1281 = vmul.f32 %v1279, %v1232
          %v1282 = vadd.f32 %v1235, %v1280
          %v1283 = vadd.f32 %v1235, %v1281
          %vm1284 = vcmp.ge.f32.partialorder %v1282, -1.0
          %vm1285 = vcmp.ge.f32.partialorder %v1283, -1.0
          %vm1286 = vcmp.le.f32.partialorder %v1282, 4.0
          %vm1287 = vcmp.le.f32.partialorder %v1283, 4.0
          %vm1288 = vmand %vm1284, %vm1286
          %vm1289 = vmand %vm1285, %vm1287
          %v1290 = vmax.f32 %v1282, 0.0
          %v1291 = vmax.f32 %v1283, 0.0
          %v1292 = vfloor.f32 %v1290
          %v1293 = vfloor.f32 %v1291
          %vm1294 = vcmp.ge.f32.partialorder %v1292, 3.0
          %vm1295 = vcmp.ge.f32.partialorder %v1293, 3.0
          %v1296 = vsel %vm1294, 3.0, %v1292
          %v1297 = vsel %vm1295, 3.0, %v1293
          %v1298 = vsel %vm1294, 3.0, %v1290
          %v1299 = vsel %vm1295, 3.0, %v1291
          %v1300 = vadd.f32 %v1296, 1.0
          %v1301 = vadd.f32 %v1297, 1.0
          %v1302 = vsel %vm1294, 3.0, %v1300
          %v1303 = vsel %vm1295, 3.0, %v1301
          %v1304 = vsub.f32 %v1298, %v1296
          %v1305 = vsub.f32 %v1299, %v1297
          %v1306 = vsub.f32 1.0, %v1304
          %v1307 = vsub.f32 1.0, %v1305
          %vm1308 = vcmp.eq.f32.partialorder %v1163, %v1296
          %vm1309 = vcmp.eq.f32.partialorder %v1163, %v1297
          %v1310 = vsel %vm1308, %v1306, 0.0
          %v1311 = vsel %vm1309, %v1307, 0.0
          %vm1312 = vcmp.eq.f32.partialorder %v1163, %v1302
          %vm1313 = vcmp.eq.f32.partialorder %v1163, %v1303
          %v1314 = vsel %vm1312, %v1304, 0.0
          %v1315 = vsel %vm1313, %v1305, 0.0
          %v1316 = vadd.f32 %v1310, %v1314
          %v1317 = vadd.f32 %v1311, %v1315
          %v1318 = vsel %vm1288, %v1316, 0.0
          %v1319 = vsel %vm1289, %v1317, 0.0
          %v1320 = vmul.f32 %v1217, %v1318
          %v1321 = vmul.f32 %v1218, %v1319
          %v1322 = vadd.f32 %v1276, %v1320
          %v1323 = vadd.f32 %v1277, %v1321
          %v1324 = vadd.f32 %v1164, 1.5
          %v1325 = vadd.f32 %v1165, 1.5
          %v1326 = vmul.f32 %v1324, %v1177
          %v1327 = vmul.f32 %v1325, %v1177
          %v1328 = vadd.f32 %v1180, %v1326
          %v1329 = vadd.f32 %v1180, %v1327
          %vm1330 = vcmp.ge.f32.partialorder %v1328, -1.0
          %vm1331 = vcmp.ge.f32.partialorder %v1329, -1.0
          %vm1332 = vcmp.le.f32.partialorder %v1328, 4.0
          %vm1333 = vcmp.le.f32.partialorder %v1329, 4.0
          %vm1334 = vmand %vm1330, %vm1332
          %vm1335 = vmand %vm1331, %vm1333
          %v1336 = vmax.f32 %v1328, 0.0
          %v1337 = vmax.f32 %v1329, 0.0
          %v1338 = vfloor.f32 %v1336
          %v1339 = vfloor.f32 %v1337
          %vm1340 = vcmp.ge.f32.partialorder %v1338, 3.0
          %vm1341 = vcmp.ge.f32.partialorder %v1339, 3.0
          %v1342 = vsel %vm1340, 3.0, %v1338
          %v1343 = vsel %vm1341, 3.0, %v1339
          %v1344 = vsel %vm1340, 3.0, %v1336
          %v1345 = vsel %vm1341, 3.0, %v1337
          %v1346 = vadd.f32 %v1342, 1.0
          %v1347 = vadd.f32 %v1343, 1.0
          %v1348 = vsel %vm1340, 3.0, %v1346
          %v1349 = vsel %vm1341, 3.0, %v1347
          %v1350 = vsub.f32 %v1344, %v1342
          %v1351 = vsub.f32 %v1345, %v1343
          %v1352 = vsub.f32 1.0, %v1350
          %v1353 = vsub.f32 1.0, %v1351
          %vm1354 = vcmp.eq.f32.partialorder %v1161, %v1342
          %vm1355 = vcmp.eq.f32.partialorder %v1161, %v1343
          %v1356 = vsel %vm1354, %v1352, 0.0
          %v1357 = vsel %vm1355, %v1353, 0.0
          %vm1358 = vcmp.eq.f32.partialorder %v1161, %v1348
          %vm1359 = vcmp.eq.f32.partialorder %v1161, %v1349
          %v1360 = vsel %vm1358, %v1350, 0.0
          %v1361 = vsel %vm1359, %v1351, 0.0
          %v1362 = vadd.f32 %v1356, %v1360
          %v1363 = vadd.f32 %v1357, %v1361
          %v1364 = vsel %vm1334, %v1362, 0.0
          %v1365 = vsel %vm1335, %v1363, 0.0
          %v1366 = vmul.f32 %v1364, %v1272
          %v1367 = vmul.f32 %v1365, %v1273
          %v1368 = vadd.f32 %v1322, %v1366
          %v1369 = vadd.f32 %v1323, %v1367
          %v1370 = vmul.f32 %v1364, %v1318
          %v1371 = vmul.f32 %v1365, %v1319
          %v1372 = vadd.f32 %v1368, %v1370
          %v1373 = vadd.f32 %v1369, %v1371
          %v1374 = vmul.f32 %v1372, 0.25
          %v1375 = vmul.f32 %v1373, 0.25
          %v1376 = vld [vmem:[%s326] sm:$0xff]
          %v1377 = vld [vmem:[%s326 + $0x8] sm:$0xff]
          %vm1378 = vcmask 130048
          %v1380 = vsel %vm1378, %v1374, 0
          %v1383 = vsel %vm1378, %v1375, 0
          %1385 = vmatpush.msra.mxu0 0.0
          %1386 = vmatpush.msra.mxu0 0.0
          %1387 = vmatpush.msra.mxu0 0.0
          %1388 = vmatpush.msra.mxu0 0.0
          %1389 = vmatpush.msra.mxu0 0.0
          %1390 = vmatpush.msra.mxu0 0.0
          %1391 = vmatpush.msra.mxu0 0.0
          %1392 = vmatpush.msra.mxu0 0.0
          %1393 = vmatpush.msra.mxu0 0.0
          %1394 = vmatpush.msra.mxu0 0.0
          %1395 = vmatpush.msra.mxu0 0.0
          %1396 = vmatpush.msra.mxu0 0.0
          %1397 = vmatpush.msra.mxu0 0.0
          %1398 = vmatpush.msra.mxu0 0.0
          %1399 = vmatpush.msra.mxu0 %v1377
          %1400 = vmatpush.msra.mxu0 %v1376
          %1401 = vmatmul.f32.gmra.mxu0 %v1380
          %v1402 = vpop.f32.mrf.mxu0
          %v1403 = vadd.f32 0.0, %v1402
          %1404 = vmatmul.f32.gmra.mxu0 %v1383
          %v1405 = vpop.f32.mrf.mxu0
          %v1406 = vadd.f32 0.0, %v1405
          %1407 = vdwg.mxu0
          %1408 = vst.msk [vmem:[%s338] sm:$0xff] %vm360, %v1403
          %1409 = vst.msk [vmem:[%s338 + $0x8] sm:$0xff] %vm360, %v1406
        $region56: #{tpu_custom_call.1} parent=39 // pred_fallthru
          _
        %p1410 = scmp.eq.s32.totalorder %s339, 3
        // Predicated region
        $region57: #{tpu_custom_call.1} parent=39 // pred_check
          %p1411 = pneg %p1410
        $region58: #{tpu_custom_call.1} parent=39 // pred_check_branch
          %1413 = sbr.rel (%p1411) target = $region60
        $region59: #{tpu_custom_call.1} parent=39 // pred_region
          %s1414 = smul.f32 %s347, 0.03125
          %s1415 = smul.f32 %s351, 0.03125
          %s1416 = smul.f32 %s355, 0.03125
          %s1417 = ssub.f32 %s1416, %s1414
          %s1418 = smax.f32 %s1417, 1.0
          %s1419 = smul.f32 %s359, 0.03125
          %s1420 = ssub.f32 %s1419, %s1415
          %s1421 = smax.f32 %s1420, 1.0
          %v1422 = vrcp.pop 4.0
          %v1423 = vmul.f32 4.0, %v1422
          %v1424 = vsub.f32 1.0, %v1423
          %v1425 = vmul.f32 %v1422, %v1424
          %v1426 = vadd.f32 %v1422, %v1425
          %vm1427 = vweird.f32 %v1422
          %v1428 = vsel %vm1427, %v1422, %v1426
          %s1429 = vtos %v1428
          %s1430 = smul.f32 %s1421, %s1429
          %v1431 = vrcp.pop 4.0
          %v1432 = vmul.f32 4.0, %v1431
          %v1433 = vsub.f32 1.0, %v1432
          %v1434 = vmul.f32 %v1431, %v1433
          %v1435 = vadd.f32 %v1431, %v1434
          %vm1436 = vweird.f32 %v1431
          %v1437 = vsel %vm1436, %v1431, %v1435
          %s1438 = vtos %v1437
          %s1439 = smul.f32 %s1418, %s1438
          %v1440 = vlaneseq
          %v1441 = vshrl.u32 %v1440, 7
          %v1442 = vadd.s32 %v1441, 8
          %v1443 = vcvt.s32.f32 %v1441
          %v1444 = vcvt.s32.f32 %v1442
          %v1445 = vlaneseq
          %v1446 = vand.u32 %v1445, 127
          %v1447 = vcvt.s32.f32 %v1446
          %v1448 = vrcp.pop 4.0
          %v1449 = vmul.f32 4.0, %v1448
          %v1450 = vsub.f32 1.0, %v1449
          %v1451 = vmul.f32 %v1448, %v1450
          %v1452 = vadd.f32 %v1448, %v1451
          %vm1453 = vweird.f32 %v1448
          %v1454 = vsel %vm1453, %v1448, %v1452
          %v1455 = vmul.f32 %v1443, %v1454
          %v1456 = vmul.f32 %v1444, %v1454
          %v1457 = vfloor.f32 %v1455
          %v1458 = vfloor.f32 %v1456
          %v1459 = vmul.f32 %v1457, 4.0
          %v1460 = vmul.f32 %v1458, 4.0
          %v1461 = vsub.f32 %v1443, %v1459
          %v1462 = vsub.f32 %v1444, %v1460
          %v1463 = vrcp.pop 2.0
          %v1464 = vmul.f32 2.0, %v1463
          %v1465 = vsub.f32 1.0, %v1464
          %v1466 = vmul.f32 %v1463, %v1465
          %v1467 = vadd.f32 %v1463, %v1466
          %vm1468 = vweird.f32 %v1463
          %v1469 = vsel %vm1468, %v1463, %v1467
          %v1470 = vmul.f32 %v1447, %v1469
          %v1471 = vfloor.f32 %v1470
          %v1472 = vmul.f32 %v1471, 2.0
          %v1473 = vsub.f32 %v1447, %v1472
          %v1474 = vmul.f32 %v1457, 2.0
          %v1475 = vmul.f32 %v1458, 2.0
          %v1476 = vadd.f32 %v1474, 0.5
          %v1477 = vadd.f32 %v1475, 0.5
          %v1478 = vrcp.pop 2.0
          %v1479 = vmul.f32 2.0, %v1478
          %v1480 = vsub.f32 1.0, %v1479
          %v1481 = vmul.f32 %v1478, %v1480
          %v1482 = vadd.f32 %v1478, %v1481
          %vm1483 = vweird.f32 %v1478
          %v1484 = vsel %vm1483, %v1478, %v1482
          %s1485 = vtos %v1484
          %s1486 = smul.f32 %s1430, %s1485
          %v1487 = vstv %s1486
          %v1488 = vmul.f32 %v1476, %v1487
          %v1489 = vmul.f32 %v1477, %v1487
          %v1490 = vstv %s1415
          %v1491 = vadd.f32 %v1490, %v1488
          %v1492 = vadd.f32 %v1490, %v1489
          %vm1493 = vcmp.ge.f32.partialorder %v1491, -1.0
          %vm1494 = vcmp.ge.f32.partialorder %v1492, -1.0
          %vm1495 = vcmp.le.f32.partialorder %v1491, 2.0
          %vm1496 = vcmp.le.f32.partialorder %v1492, 2.0
          %vm1497 = vmand %vm1493, %vm1495
          %vm1498 = vmand %vm1494, %vm1496
          %v1499 = vmax.f32 %v1491, 0.0
          %v1500 = vmax.f32 %v1492, 0.0
          %v1501 = vfloor.f32 %v1499
          %v1502 = vfloor.f32 %v1500
          %vm1503 = vcmp.ge.f32.partialorder %v1501, 1.0
          %vm1504 = vcmp.ge.f32.partialorder %v1502, 1.0
          %v1505 = vsel %vm1503, 1.0, %v1501
          %v1506 = vsel %vm1504, 1.0, %v1502
          %v1507 = vsel %vm1503, 1.0, %v1499
          %v1508 = vsel %vm1504, 1.0, %v1500
          %v1509 = vadd.f32 %v1505, 1.0
          %v1510 = vadd.f32 %v1506, 1.0
          %v1511 = vsel %vm1503, 1.0, %v1509
          %v1512 = vsel %vm1504, 1.0, %v1510
          %v1513 = vsub.f32 %v1507, %v1505
          %v1514 = vsub.f32 %v1508, %v1506
          %v1515 = vsub.f32 1.0, %v1513
          %v1516 = vsub.f32 1.0, %v1514
          %vm1517 = vcmp.eq.f32.partialorder %v1471, %v1505
          %vm1518 = vcmp.eq.f32.partialorder %v1471, %v1506
          %v1519 = vsel %vm1517, %v1515, 0.0
          %v1520 = vsel %vm1518, %v1516, 0.0
          %vm1521 = vcmp.eq.f32.partialorder %v1471, %v1511
          %vm1522 = vcmp.eq.f32.partialorder %v1471, %v1512
          %v1523 = vsel %vm1521, %v1513, 0.0
          %v1524 = vsel %vm1522, %v1514, 0.0
          %v1525 = vadd.f32 %v1519, %v1523
          %v1526 = vadd.f32 %v1520, %v1524
          %v1527 = vsel %vm1497, %v1525, 0.0
          %v1528 = vsel %vm1498, %v1526, 0.0
          %v1529 = vmul.f32 %v1461, 2.0
          %v1530 = vmul.f32 %v1462, 2.0
          %v1531 = vadd.f32 %v1529, 0.5
          %v1532 = vadd.f32 %v1530, 0.5
          %v1533 = vrcp.pop 2.0
          %v1534 = vmul.f32 2.0, %v1533
          %v1535 = vsub.f32 1.0, %v1534
          %v1536 = vmul.f32 %v1533, %v1535
          %v1537 = vadd.f32 %v1533, %v1536
          %vm1538 = vweird.f32 %v1533
          %v1539 = vsel %vm1538, %v1533, %v1537
          %s1540 = vtos %v1539
          %s1541 = smul.f32 %s1439, %s1540
          %v1542 = vstv %s1541
          %v1543 = vmul.f32 %v1531, %v1542
          %v1544 = vmul.f32 %v1532, %v1542
          %v1545 = vstv %s1414
          %v1546 = vadd.f32 %v1545, %v1543
          %v1547 = vadd.f32 %v1545, %v1544
          %vm1548 = vcmp.ge.f32.partialorder %v1546, -1.0
          %vm1549 = vcmp.ge.f32.partialorder %v1547, -1.0
          %vm1550 = vcmp.le.f32.partialorder %v1546, 2.0
          %vm1551 = vcmp.le.f32.partialorder %v1547, 2.0
          %vm1552 = vmand %vm1548, %vm1550
          %vm1553 = vmand %vm1549, %vm1551
          %v1554 = vmax.f32 %v1546, 0.0
          %v1555 = vmax.f32 %v1547, 0.0
          %v1556 = vfloor.f32 %v1554
          %v1557 = vfloor.f32 %v1555
          %vm1558 = vcmp.ge.f32.partialorder %v1556, 1.0
          %vm1559 = vcmp.ge.f32.partialorder %v1557, 1.0
          %v1560 = vsel %vm1558, 1.0, %v1556
          %v1561 = vsel %vm1559, 1.0, %v1557
          %v1562 = vsel %vm1558, 1.0, %v1554
          %v1563 = vsel %vm1559, 1.0, %v1555
          %v1564 = vadd.f32 %v1560, 1.0
          %v1565 = vadd.f32 %v1561, 1.0
          %v1566 = vsel %vm1558, 1.0, %v1564
          %v1567 = vsel %vm1559, 1.0, %v1565
          %v1568 = vsub.f32 %v1562, %v1560
          %v1569 = vsub.f32 %v1563, %v1561
          %v1570 = vsub.f32 1.0, %v1568
          %v1571 = vsub.f32 1.0, %v1569
          %vm1572 = vcmp.eq.f32.partialorder %v1473, %v1560
          %vm1573 = vcmp.eq.f32.partialorder %v1473, %v1561
          %v1574 = vsel %vm1572, %v1570, 0.0
          %v1575 = vsel %vm1573, %v1571, 0.0
          %vm1576 = vcmp.eq.f32.partialorder %v1473, %v1566
          %vm1577 = vcmp.eq.f32.partialorder %v1473, %v1567
          %v1578 = vsel %vm1576, %v1568, 0.0
          %v1579 = vsel %vm1577, %v1569, 0.0
          %v1580 = vadd.f32 %v1574, %v1578
          %v1581 = vadd.f32 %v1575, %v1579
          %v1582 = vsel %vm1552, %v1580, 0.0
          %v1583 = vsel %vm1553, %v1581, 0.0
          %v1584 = vmul.f32 %v1527, %v1582
          %v1585 = vmul.f32 %v1528, %v1583
          %v1586 = vadd.f32 %v1584, 0.0
          %v1587 = vadd.f32 %v1585, 0.0
          %v1588 = vadd.f32 %v1529, 1.5
          %v1589 = vadd.f32 %v1530, 1.5
          %v1590 = vmul.f32 %v1588, %v1542
          %v1591 = vmul.f32 %v1589, %v1542
          %v1592 = vadd.f32 %v1545, %v1590
          %v1593 = vadd.f32 %v1545, %v1591
          %vm1594 = vcmp.ge.f32.partialorder %v1592, -1.0
          %vm1595 = vcmp.ge.f32.partialorder %v1593, -1.0
          %vm1596 = vcmp.le.f32.partialorder %v1592, 2.0
          %vm1597 = vcmp.le.f32.partialorder %v1593, 2.0
          %vm1598 = vmand %vm1594, %vm1596
          %vm1599 = vmand %vm1595, %vm1597
          %v1600 = vmax.f32 %v1592, 0.0
          %v1601 = vmax.f32 %v1593, 0.0
          %v1602 = vfloor.f32 %v1600
          %v1603 = vfloor.f32 %v1601
          %vm1604 = vcmp.ge.f32.partialorder %v1602, 1.0
          %vm1605 = vcmp.ge.f32.partialorder %v1603, 1.0
          %v1606 = vsel %vm1604, 1.0, %v1602
          %v1607 = vsel %vm1605, 1.0, %v1603
          %v1608 = vsel %vm1604, 1.0, %v1600
          %v1609 = vsel %vm1605, 1.0, %v1601
          %v1610 = vadd.f32 %v1606, 1.0
          %v1611 = vadd.f32 %v1607, 1.0
          %v1612 = vsel %vm1604, 1.0, %v1610
          %v1613 = vsel %vm1605, 1.0, %v1611
          %v1614 = vsub.f32 %v1608, %v1606
          %v1615 = vsub.f32 %v1609, %v1607
          %v1616 = vsub.f32 1.0, %v1614
          %v1617 = vsub.f32 1.0, %v1615
          %vm1618 = vcmp.eq.f32.partialorder %v1473, %v1606
          %vm1619 = vcmp.eq.f32.partialorder %v1473, %v1607
          %v1620 = vsel %vm1618, %v1616, 0.0
          %v1621 = vsel %vm1619, %v1617, 0.0
          %vm1622 = vcmp.eq.f32.partialorder %v1473, %v1612
          %vm1623 = vcmp.eq.f32.partialorder %v1473, %v1613
          %v1624 = vsel %vm1622, %v1614, 0.0
          %v1625 = vsel %vm1623, %v1615, 0.0
          %v1626 = vadd.f32 %v1620, %v1624
          %v1627 = vadd.f32 %v1621, %v1625
          %v1628 = vsel %vm1598, %v1626, 0.0
          %v1629 = vsel %vm1599, %v1627, 0.0
          %v1630 = vmul.f32 %v1527, %v1628
          %v1631 = vmul.f32 %v1528, %v1629
          %v1632 = vadd.f32 %v1586, %v1630
          %v1633 = vadd.f32 %v1587, %v1631
          %v1634 = vadd.f32 %v1474, 1.5
          %v1635 = vadd.f32 %v1475, 1.5
          %v1636 = vmul.f32 %v1634, %v1487
          %v1637 = vmul.f32 %v1635, %v1487
          %v1638 = vadd.f32 %v1490, %v1636
          %v1639 = vadd.f32 %v1490, %v1637
          %vm1640 = vcmp.ge.f32.partialorder %v1638, -1.0
          %vm1641 = vcmp.ge.f32.partialorder %v1639, -1.0
          %vm1642 = vcmp.le.f32.partialorder %v1638, 2.0
          %vm1643 = vcmp.le.f32.partialorder %v1639, 2.0
          %vm1644 = vmand %vm1640, %vm1642
          %vm1645 = vmand %vm1641, %vm1643
          %v1646 = vmax.f32 %v1638, 0.0
          %v1647 = vmax.f32 %v1639, 0.0
          %v1648 = vfloor.f32 %v1646
          %v1649 = vfloor.f32 %v1647
          %vm1650 = vcmp.ge.f32.partialorder %v1648, 1.0
          %vm1651 = vcmp.ge.f32.partialorder %v1649, 1.0
          %v1652 = vsel %vm1650, 1.0, %v1648
          %v1653 = vsel %vm1651, 1.0, %v1649
          %v1654 = vsel %vm1650, 1.0, %v1646
          %v1655 = vsel %vm1651, 1.0, %v1647
          %v1656 = vadd.f32 %v1652, 1.0
          %v1657 = vadd.f32 %v1653, 1.0
          %v1658 = vsel %vm1650, 1.0, %v1656
          %v1659 = vsel %vm1651, 1.0, %v1657
          %v1660 = vsub.f32 %v1654, %v1652
          %v1661 = vsub.f32 %v1655, %v1653
          %v1662 = vsub.f32 1.0, %v1660
          %v1663 = vsub.f32 1.0, %v1661
          %vm1664 = vcmp.eq.f32.partialorder %v1471, %v1652
          %vm1665 = vcmp.eq.f32.partialorder %v1471, %v1653
          %v1666 = vsel %vm1664, %v1662, 0.0
          %v1667 = vsel %vm1665, %v1663, 0.0
          %vm1668 = vcmp.eq.f32.partialorder %v1471, %v1658
          %vm1669 = vcmp.eq.f32.partialorder %v1471, %v1659
          %v1670 = vsel %vm1668, %v1660, 0.0
          %v1671 = vsel %vm1669, %v1661, 0.0
          %v1672 = vadd.f32 %v1666, %v1670
          %v1673 = vadd.f32 %v1667, %v1671
          %v1674 = vsel %vm1644, %v1672, 0.0
          %v1675 = vsel %vm1645, %v1673, 0.0
          %v1676 = vmul.f32 %v1674, %v1582
          %v1677 = vmul.f32 %v1675, %v1583
          %v1678 = vadd.f32 %v1632, %v1676
          %v1679 = vadd.f32 %v1633, %v1677
          %v1680 = vmul.f32 %v1674, %v1628
          %v1681 = vmul.f32 %v1675, %v1629
          %v1682 = vadd.f32 %v1678, %v1680
          %v1683 = vadd.f32 %v1679, %v1681
          %v1684 = vmul.f32 %v1682, 0.25
          %v1685 = vmul.f32 %v1683, 0.25
          %v1686 = vld [vmem:[%s332] sm:$0xf]
          %v1688 = vsel %vm360, %v1684, 0
          %v1691 = vsel %vm360, %v1685, 0
          %vm1693 = vcmask 1043456
          %v1695 = vsel %vm1693, %v1686, 0
          %1697 = vmatpush.msra.mxu0 0.0
          %1698 = vmatpush.msra.mxu0 0.0
          %1699 = vmatpush.msra.mxu0 0.0
          %1700 = vmatpush.msra.mxu0 0.0
          %1701 = vmatpush.msra.mxu0 0.0
          %1702 = vmatpush.msra.mxu0 0.0
          %1703 = vmatpush.msra.mxu0 0.0
          %1704 = vmatpush.msra.mxu0 0.0
          %1705 = vmatpush.msra.mxu0 0.0
          %1706 = vmatpush.msra.mxu0 0.0
          %1707 = vmatpush.msra.mxu0 0.0
          %1708 = vmatpush.msra.mxu0 0.0
          %1709 = vmatpush.msra.mxu0 0.0
          %1710 = vmatpush.msra.mxu0 0.0
          %1711 = vmatpush.msra.mxu0 0.0
          %1712 = vmatpush.msra.mxu0 %v1695
          %1713 = vmatmul.f32.gmra.mxu0 %v1688
          %v1714 = vpop.f32.mrf.mxu0
          %v1715 = vadd.f32 0.0, %v1714
          %1716 = vmatmul.f32.gmra.mxu0 %v1691
          %v1717 = vpop.f32.mrf.mxu0
          %v1718 = vadd.f32 0.0, %v1717
          %1719 = vdwg.mxu0
          %1720 = vst.msk [vmem:[%s338] sm:$0xff] %vm360, %v1715
          %1721 = vst.msk [vmem:[%s338 + $0x8] sm:$0xff] %vm360, %v1718
        $region60: #{tpu_custom_call.1} parent=39 // pred_fallthru
          _
        %p1722 = scmp.lt.s32.totalorder %s32, 7
        %s1723 = scalar_select %p1722, %s32, 7
        %s1724 = smul.addr %s1723, 2
        %s1725 = smul.addr %s1724, 8
        %s1726 = scalar_lea.vmem %s7, %s1725
        // Predicated region
        $region61: #{tpu_custom_call.1} parent=39 // pred_check
          %p1727 = pneg %p183
        $region62: #{tpu_custom_call.1} parent=39 // pred_check_branch
          %1729 = sbr.rel (%p1727) target = $region64
        $region63: #{tpu_custom_call.1} parent=39 // pred_region
          _
        $region64: #{tpu_custom_call.1} parent=39 // pred_fallthru
          _
      $region40: #{tpu_custom_call.1} parent=5 // pred_fallthru
        _
      %p1730 = scmp.le.s32.totalorder 2, %s27
      // Predicated region
      $region65: #{tpu_custom_call.1} parent=5 // pred_check
        %p1731 = pneg %p1730
      $region66: #{tpu_custom_call.1} parent=5 // pred_check_branch
        %1733 = sbr.rel (%p1731) target = $region68
      $region67: #{tpu_custom_call.1} parent=5 // pred_region
        %s1734 = ssub.s32 %s27, 2
        // Predicated region
        $region69: #{tpu_custom_call.1} parent=67 // pred_check
          %p1735 = pneg %p189
        $region70: #{tpu_custom_call.1} parent=67 // pred_check_branch
          %1737 = sbr.rel (%p1735) target = $region72
        $region71: #{tpu_custom_call.1} parent=67 // pred_region
          %p1738 = scmp.lt.s32.totalorder %s33, 7
          %s1739 = scalar_select %p1738, %s33, 7
          %s1740 = smul.addr %s1739, 2
          %s1741 = smul.addr %s1740, 8
          %s1742 = scalar_lea.vmem %s7, %s1741
        $region72: #{tpu_custom_call.1} parent=67 // pred_fallthru
          _
      $region68: #{tpu_custom_call.1} parent=5 // pred_fallthru
        _
    $region6: #{tpu_custom_call.1} parent=1 // loop_footer
      %s31 = sadd.s32 1, %s27
    $region7: #{tpu_custom_call.1} parent=1 // loop_footer_branch
      %26 = sbr.rel target = $region3
    $region8: #{tpu_custom_call.1} parent=1 // loop_exit
      _
    %1743 = vsyncpa [#allocation6], 1
    %s1744 = scalar_lea.sflag [#allocation6], 1
    %1745 = vsyncpa %s1744, 1

</llo_original>
